<compile_context>
chip_gen: v7x
topology: tpu7x:2x2x1
jax: 0.10.0
libtpu: 0.0.40
codegen_flags: <defaults>
</compile_context>

<pallas_src>
import functools

import jax
import jax.numpy as jnp
from jax.experimental import pallas as pl
from jax.experimental.pallas import tpu as pltpu


def _round_up(x, m):
    return ((x + m - 1) // m) * m


# ----------------------------------------------------------------------------
# Fused Pallas kernel: all LSTM layers + FC head in one call
# ----------------------------------------------------------------------------
def _fused_lstm_fc_kernel(x_ref, *refs, num_layers, T, Bp, Hp):
    """refs = [w_ih_0, w_hh_0, b_0,
               w_cat_1, b_1, ..., w_cat_{L-1}, b_{L-1},
               w_fc, b_fc, out_ref]

    x_ref   : (T*Bp, Dp)   time-major, batch- and feature-padded input
    w_ih_0  : (Dp, 4Hp)    layer-0 input->gates, gate order [i, f, o, g]
    w_hh_0  : (Hp, 4Hp)    layer-0 hidden->gates
    w_cat_l : (2Hp, 4Hp)   layers>=1 fused [w_ih; w_hh]
    b_l     : (1, 4Hp)     b_ih + b_hh (zero in padded lanes)
    w_fc    : (Hp, Op), b_fc: (1, Op)
    out_ref : (Bp, Op)
    """
    out_ref = refs[-1]

    # Hoist all weight loads out of the unrolled time loop.
    w0_ih = refs[0][...]                                           # (Dp, 4Hp)
    w0_hh = refs[1][...]                                           # (Hp, 4Hp)
    b0 = refs[2][...]                                              # (1, 4Hp)
    w_cat = [refs[3 + 2 * (l - 1)][...] for l in range(1, num_layers)]
    b_l = [refs[4 + 2 * (l - 1)][...] for l in range(1, num_layers)]
    w_fc = refs[-3][...]                                           # (Hp, Op)
    b_fc = refs[-2][...]                                           # (1, Op)

    # Layer-0 input projection hoisted out of the recurrence: ONE GEMM over all
    # T*Bp rows, bias folded in.  Off the per-step critical path.
    gx0 = jnp.dot(x_ref[...], w0_ih,
                  preferred_element_type=jnp.float32) + b0         # (T*Bp, 4Hp)

    def lstm_cell(gates, c_prev):
        # Gate order [i, f, o | g]; each gate owns a lane-aligned 128-wide
        # block, so all slices below are free vreg selects.
        sig = jax.nn.sigmoid(gates[:, :3 * Hp])                    # (Bp, 3Hp)
        g_g = jnp.tanh(gates[:, 3 * Hp:])                          # (Bp, Hp)
        c = sig[:, Hp:2 * Hp] * c_prev + sig[:, :Hp] * g_g
        h = sig[:, 2 * Hp:] * jnp.tanh(c)
        return h, c

    h = [jnp.zeros((Bp, Hp), jnp.float32) for _ in range(num_layers)]
    c = [jnp.zeros((Bp, Hp), jnp.float32) for _ in range(num_layers)]

    # Single fused time loop (wavefront).  Static unroll: T is small & static,
    # so the scheduler can overlap layer l step t with layer l-1 step t+1.
    for t in range(T):
        # Layer 0: aligned sublane slice (t*Bp is a multiple of 8) + one push.
        gates0 = gx0[t * Bp:(t + 1) * Bp, :] + jnp.dot(
            h[0], w0_hh, preferred_element_type=jnp.float32)       # (Bp, 4Hp)
        h[0], c[0] = lstm_cell(gates0, c[0])
        # Layers >= 1: one fused [h_below, h_prev] @ [w_ih; w_hh] push each.
        for l in range(1, num_layers):
            hcat = jnp.concatenate([h[l - 1], h[l]], axis=-1)      # (Bp, 2Hp)
            gates = jnp.dot(hcat, w_cat[l - 1],
                            preferred_element_type=jnp.float32) + b_l[l - 1]
            h[l], c[l] = lstm_cell(gates, c[l])

    # FC head on the final hidden state only (lane-dense padded store).
    out_ref[...] = jnp.dot(h[num_layers - 1], w_fc,
                           preferred_element_type=jnp.float32) + b_fc


# ----------------------------------------------------------------------------
# Wrapper
# ----------------------------------------------------------------------------
def _vmem_spec():
    return pl.BlockSpec(memory_space=pltpu.MemorySpace.VMEM)


@functools.partial(jax.jit, static_argnames=("num_layers", "output_size"))
def basic_lstm_forward(x, kparams, num_layers, output_size):
    """x: (B, T, input_size) -> (B, output_size).  h_0 = c_0 = 0."""
    x = x.astype(jnp.float32)
    B, T, D = x.shape
    Bp = _round_up(max(B, 8), 8)
    Dp = kparams["lstm_0"][0].shape[0]
    Hp = kparams["lstm_0"][1].shape[0]
    Op = kparams["fc"][0].shape[1]

    # Time-major flatten + sublane batch padding + feature padding, done
    # wrapper-side as one cheap XLA relayout (kept out of the kernel).
    x_tm = jnp.transpose(x, (1, 0, 2))                       # (T, B, D)
    x_tm = jnp.pad(x_tm, ((0, 0), (0, Bp - B), (0, Dp - D)))  # (T, Bp, Dp)
    x_tm = x_tm.reshape(T * Bp, Dp)

    flat = list(kparams["lstm_0"])
    for layer in range(1, num_layers):
        flat.extend(kparams[f"lstm_{layer}"])
    flat.extend(kparams["fc"])

    kernel = functools.partial(
        _fused_lstm_fc_kernel, num_layers=num_layers, T=T, Bp=Bp, Hp=Hp)

    out_pad = pl.pallas_call(
        kernel,
        out_shape=jax.ShapeDtypeStruct((Bp, Op), jnp.float32),
        in_specs=[_vmem_spec()] * (1 + len(flat)),
        out_specs=_vmem_spec(),
    )(x_tm, *flat)

    return out_pad[:B, :output_size]


# ----------------------------------------------------------------------------
# Parameters: PyTorch-layout init + conversion to padded kernel layout
# ----------------------------------------------------------------------------
def init_torch_params(key, input_size, hidden_size, num_layers, output_size):
    """Weights in PyTorch nn.LSTM / nn.Linear layout, gate order [i, f, g, o]."""
    params = {}
    bound = 1.0 / (hidden_size ** 0.5)
    for layer in range(num_layers):
        d_in = input_size if layer == 0 else hidden_size
        key, k1, k2, k3, k4 = jax.random.split(key, 5)
        params[f"weight_ih_l{layer}"] = jax.random.uniform(
            k1, (4 * hidden_size, d_in), jnp.float32, -bound, bound)
        params[f"weight_hh_l{layer}"] = jax.random.uniform(
            k2, (4 * hidden_size, hidden_size), jnp.float32, -bound, bound)
        params[f"bias_ih_l{layer}"] = jax.random.uniform(
            k3, (4 * hidden_size,), jnp.float32, -bound, bound)
        params[f"bias_hh_l{layer}"] = jax.random.uniform(
            k4, (4 * hidden_size,), jnp.float32, -bound, bound)
    key, k1, k2 = jax.random.split(key, 3)
    params["fc_weight"] = jax.random.uniform(
        k1, (output_size, hidden_size), jnp.float32, -bound, bound)
    params["fc_bias"] = jax.random.uniform(
        k2, (output_size,), jnp.float32, -bound, bound)
    return params


def _reorder_gates_ifog(w, H):
    """PyTorch gate order [i, f, g, o] -> kernel order [i, f, o, g] (axis 0)."""
    return jnp.concatenate([w[:2 * H], w[3 * H:4 * H], w[2 * H:3 * H]], axis=0)


def prepare_params(torch_params, input_size, hidden_size, num_layers,
                   output_size):
    """One-time host-side transform: gate permute + transpose + bias fold +
    (8,128)-friendly zero padding + fused [w_ih; w_hh] for layers >= 1."""
    H, O = hidden_size, output_size
    Hp = _round_up(H, 128)
    Op = _round_up(O, 128)
    Dp = _round_up(input_size, 8)

    def pad_gate_cols(w):
        # w: (K, 4H) -> (K, 4Hp): each gate's H columns zero-padded to Hp so
        # every gate owns its own lane-aligned 128-wide block.
        return jnp.concatenate(
            [jnp.pad(w[:, g * H:(g + 1) * H], ((0, 0), (0, Hp - H)))
             for g in range(4)], axis=-1)

    kparams = {}
    for layer in range(num_layers):
        w_ih = _reorder_gates_ifog(torch_params[f"weight_ih_l{layer}"], H)
        w_hh = _reorder_gates_ifog(torch_params[f"weight_hh_l{layer}"], H)
        b = _reorder_gates_ifog(
            torch_params[f"bias_ih_l{layer}"]
            + torch_params[f"bias_hh_l{layer}"], H)

        w_ih_t = pad_gate_cols(w_ih.T)                              # (d_in, 4Hp)
        w_hh_t = jnp.pad(pad_gate_cols(w_hh.T),
                         ((0, Hp - H), (0, 0)))                     # (Hp, 4Hp)
        b_pad = pad_gate_cols(b.reshape(1, -1))                     # (1, 4Hp)

        if layer == 0:
            w_ih_t = jnp.pad(w_ih_t, ((0, Dp - input_size), (0, 0)))  # (Dp, 4Hp)
            kparams["lstm_0"] = (w_ih_t, w_hh_t, b_pad)
        else:
            w_ih_t = jnp.pad(w_ih_t, ((0, Hp - H), (0, 0)))         # (Hp, 4Hp)
            # Fused [h_below; h_prev] weight -> one MXU push per layer-step.
            w_cat = jnp.concatenate([w_ih_t, w_hh_t], axis=0)       # (2Hp, 4Hp)
            kparams[f"lstm_{layer}"] = (w_cat, b_pad)

    w_fc = jnp.pad(torch_params["fc_weight"].T, ((0, Hp - H), (0, Op - O)))
    b_fc = jnp.pad(torch_params["fc_bias"].reshape(1, -1), ((0, 0), (0, Op - O)))
    kparams["fc"] = (w_fc, b_fc)
    return kparams


# ----------------------------------------------------------------------------
# Pure-JAX reference in the original PyTorch layout (sanity check)
# ----------------------------------------------------------------------------
def reference_forward(x, torch_params, num_layers, hidden_size):
    H = hidden_size
    B, T, _ = x.shape
    out = x.astype(jnp.float32)
    for layer in range(num_layers):
        w_ih = torch_params[f"weight_ih_l{layer}"]
        w_hh = torch_params[f"weight_hh_l{layer}"]
        b = torch_params[f"bias_ih_l{layer}"] + torch_params[f"bias_hh_l{layer}"]
        h = jnp.zeros((B, H), jnp.float32)
        c = jnp.zeros((B, H), jnp.float32)
        hs = []
        for t in range(T):
            gates = out[:, t, :] @ w_ih.T + h @ w_hh.T + b
            i_g = jax.nn.sigmoid(gates[:, :H])
            f_g = jax.nn.sigmoid(gates[:, H:2 * H])
            g_g = jnp.tanh(gates[:, 2 * H:3 * H])
            o_g = jax.nn.sigmoid(gates[:, 3 * H:])
            c = f_g * c + i_g * g_g
            h = o_g * jnp.tanh(c)
            hs.append(h)
        out = jnp.stack(hs, axis=1)
    return out[:, -1, :] @ torch_params["fc_weight"].T + torch_params["fc_bias"]


# ----------------------------------------------------------------------------
if __name__ == "__main__":
    # Small shapes consistent with the module's forward:
    #   x: (batch=2, seq=8, input_size=5), hidden=32, layers=2, output=4
    batch, seq, input_size = 2, 8, 5
    hidden_size, num_layers, output_size = 32, 2, 4

    key = jax.random.PRNGKey(0)
    key, kx = jax.random.split(key)
    x = jax.random.normal(kx, (batch, seq, input_size), jnp.float32)

    torch_params = init_torch_params(
        key, input_size, hidden_size, num_layers, output_size)
    kparams = prepare_params(
        torch_params, input_size, hidden_size, num_layers, output_size)

    y = basic_lstm_forward(x, kparams, num_layers, output_size)
    y = jax.block_until_ready(y)

    y_ref = reference_forward(x, torch_params, num_layers, hidden_size)
    assert y.shape == (batch, output_size)
    assert jnp.allclose(y, y_ref, atol=1e-5, rtol=1e-5), "mismatch vs reference"

    print("KERNEL_OK")
</pallas_src>

<mosaic_0001>
module attributes {stable_mosaic.version = 11 : i64} {
  func.func @_fused_lstm_fc_kernel(%arg0: memref<64x8xf32, #tpu.memory_space<vmem>>, %arg1: memref<8x512xf32, #tpu.memory_space<vmem>>, %arg2: memref<128x512xf32, #tpu.memory_space<vmem>>, %arg3: memref<1x512xf32, #tpu.memory_space<vmem>>, %arg4: memref<256x512xf32, #tpu.memory_space<vmem>>, %arg5: memref<1x512xf32, #tpu.memory_space<vmem>>, %arg6: memref<128x128xf32, #tpu.memory_space<vmem>>, %arg7: memref<1x128xf32, #tpu.memory_space<vmem>>, %arg8: memref<8x128xf32, #tpu.memory_space<vmem>>) attributes {dimension_semantics = [], scalar_prefetch = 0 : i64, scratch_operands = 0 : i64, tpu.core_type = #tpu.core_type<tc>} {
    %c0 = arith.constant 0 : index
    %c0_0 = arith.constant 0 : index
    %0 = vector.load %arg1[%c0, %c0_0] : memref<8x512xf32, #tpu.memory_space<vmem>>, vector<8x512xf32>
    %c0_1 = arith.constant 0 : index
    %c0_2 = arith.constant 0 : index
    %1 = vector.load %arg2[%c0_1, %c0_2] : memref<128x512xf32, #tpu.memory_space<vmem>>, vector<128x512xf32>
    %c0_3 = arith.constant 0 : index
    %c0_4 = arith.constant 0 : index
    %2 = vector.load %arg3[%c0_3, %c0_4] : memref<1x512xf32, #tpu.memory_space<vmem>>, vector<1x512xf32>
    %c0_5 = arith.constant 0 : index
    %c0_6 = arith.constant 0 : index
    %3 = vector.load %arg4[%c0_5, %c0_6] : memref<256x512xf32, #tpu.memory_space<vmem>>, vector<256x512xf32>
    %c0_7 = arith.constant 0 : index
    %c0_8 = arith.constant 0 : index
    %4 = vector.load %arg5[%c0_7, %c0_8] : memref<1x512xf32, #tpu.memory_space<vmem>>, vector<1x512xf32>
    %c0_9 = arith.constant 0 : index
    %c0_10 = arith.constant 0 : index
    %5 = vector.load %arg6[%c0_9, %c0_10] : memref<128x128xf32, #tpu.memory_space<vmem>>, vector<128x128xf32>
    %c0_11 = arith.constant 0 : index
    %c0_12 = arith.constant 0 : index
    %6 = vector.load %arg7[%c0_11, %c0_12] : memref<1x128xf32, #tpu.memory_space<vmem>>, vector<1x128xf32>
    %c0_13 = arith.constant 0 : index
    %c0_14 = arith.constant 0 : index
    %7 = vector.load %arg0[%c0_13, %c0_14] : memref<64x8xf32, #tpu.memory_space<vmem>>, vector<64x8xf32>
    %cst = arith.constant dense<0.000000e+00> : vector<64x512xf32>
    %8 = tpu.matmul %7, %0, %cst {dimension_numbers = #tpu.dot_dimension_numbers<[1], [0], [0], [1], [0, 0, 1, 1], [], []>} : vector<64x8xf32>, vector<8x512xf32>, vector<64x512xf32> -> vector<64x512xf32>
    %9 = vector.broadcast %2 : vector<1x512xf32> to vector<64x512xf32>
    %10 = arith.addf %8, %9 : vector<64x512xf32>
    %cst_15 = arith.constant 0.000000e+00 : f32
    %11 = vector.broadcast %cst_15 : f32 to vector<8x128xf32>
    %cst_16 = arith.constant 0.000000e+00 : f32
    %12 = vector.broadcast %cst_16 : f32 to vector<8x128xf32>
    %cst_17 = arith.constant 0.000000e+00 : f32
    %13 = vector.broadcast %cst_17 : f32 to vector<8x128xf32>
    %cst_18 = arith.constant 0.000000e+00 : f32
    %14 = vector.broadcast %cst_18 : f32 to vector<8x128xf32>
    %15 = vector.extract_strided_slice %10 {offsets = [0, 0], sizes = [8, 512], strides = [1, 1]} : vector<64x512xf32> to vector<8x512xf32>
    %cst_19 = arith.constant dense<0.000000e+00> : vector<8x512xf32>
    %16 = tpu.matmul %11, %1, %cst_19 {dimension_numbers = #tpu.dot_dimension_numbers<[1], [0], [0], [1], [0, 0, 1, 1], [], []>} : vector<8x128xf32>, vector<128x512xf32>, vector<8x512xf32> -> vector<8x512xf32>
    %17 = arith.addf %15, %16 : vector<8x512xf32>
    %18 = vector.extract_strided_slice %17 {offsets = [0, 0], sizes = [8, 384], strides = [1, 1]} : vector<8x512xf32> to vector<8x384xf32>
    %19 = arith.negf %18 : vector<8x384xf32>
    %20 = math.exp %19 : vector<8x384xf32>
    %cst_20 = arith.constant 1.000000e+00 : f32
    %21 = vector.broadcast %cst_20 : f32 to vector<8x384xf32>
    %22 = arith.addf %21, %20 : vector<8x384xf32>
    %23 = arith.divf %21, %22 : vector<8x384xf32>
    %24 = vector.extract_strided_slice %17 {offsets = [0, 384], sizes = [8, 128], strides = [1, 1]} : vector<8x512xf32> to vector<8x128xf32>
    %25 = math.tanh %24 : vector<8x128xf32>
    %26 = vector.extract_strided_slice %23 {offsets = [0, 128], sizes = [8, 128], strides = [1, 1]} : vector<8x384xf32> to vector<8x128xf32>
    %27 = arith.mulf %26, %13 : vector<8x128xf32>
    %28 = vector.extract_strided_slice %23 {offsets = [0, 0], sizes = [8, 128], strides = [1, 1]} : vector<8x384xf32> to vector<8x128xf32>
    %29 = arith.mulf %28, %25 : vector<8x128xf32>
    %30 = arith.addf %27, %29 : vector<8x128xf32>
    %31 = vector.extract_strided_slice %23 {offsets = [0, 256], sizes = [8, 128], strides = [1, 1]} : vector<8x384xf32> to vector<8x128xf32>
    %32 = math.tanh %30 : vector<8x128xf32>
    %33 = arith.mulf %31, %32 : vector<8x128xf32>
    %34 = tpu.concatenate %33, %12 in 1 : vector<8x128xf32>, vector<8x128xf32> -> vector<8x256xf32>
    %cst_21 = arith.constant dense<0.000000e+00> : vector<8x512xf32>
    %35 = tpu.matmul %34, %3, %cst_21 {dimension_numbers = #tpu.dot_dimension_numbers<[1], [0], [0], [1], [0, 0, 1, 1], [], []>} : vector<8x256xf32>, vector<256x512xf32>, vector<8x512xf32> -> vector<8x512xf32>
    %36 = vector.broadcast %4 : vector<1x512xf32> to vector<8x512xf32>
    %37 = arith.addf %35, %36 : vector<8x512xf32>
    %38 = vector.extract_strided_slice %37 {offsets = [0, 0], sizes = [8, 384], strides = [1, 1]} : vector<8x512xf32> to vector<8x384xf32>
    %39 = arith.negf %38 : vector<8x384xf32>
    %40 = math.exp %39 : vector<8x384xf32>
    %cst_22 = arith.constant 1.000000e+00 : f32
    %41 = vector.broadcast %cst_22 : f32 to vector<8x384xf32>
    %42 = arith.addf %41, %40 : vector<8x384xf32>
    %43 = arith.divf %41, %42 : vector<8x384xf32>
    %44 = vector.extract_strided_slice %37 {offsets = [0, 384], sizes = [8, 128], strides = [1, 1]} : vector<8x512xf32> to vector<8x128xf32>
    %45 = math.tanh %44 : vector<8x128xf32>
    %46 = vector.extract_strided_slice %43 {offsets = [0, 128], sizes = [8, 128], strides = [1, 1]} : vector<8x384xf32> to vector<8x128xf32>
    %47 = arith.mulf %46, %14 : vector<8x128xf32>
    %48 = vector.extract_strided_slice %43 {offsets = [0, 0], sizes = [8, 128], strides = [1, 1]} : vector<8x384xf32> to vector<8x128xf32>
    %49 = arith.mulf %48, %45 : vector<8x128xf32>
    %50 = arith.addf %47, %49 : vector<8x128xf32>
    %51 = vector.extract_strided_slice %43 {offsets = [0, 256], sizes = [8, 128], strides = [1, 1]} : vector<8x384xf32> to vector<8x128xf32>
    %52 = math.tanh %50 : vector<8x128xf32>
    %53 = arith.mulf %51, %52 : vector<8x128xf32>
    %54 = vector.extract_strided_slice %10 {offsets = [8, 0], sizes = [8, 512], strides = [1, 1]} : vector<64x512xf32> to vector<8x512xf32>
    %cst_23 = arith.constant dense<0.000000e+00> : vector<8x512xf32>
    %55 = tpu.matmul %33, %1, %cst_23 {dimension_numbers = #tpu.dot_dimension_numbers<[1], [0], [0], [1], [0, 0, 1, 1], [], []>} : vector<8x128xf32>, vector<128x512xf32>, vector<8x512xf32> -> vector<8x512xf32>
    %56 = arith.addf %54, %55 : vector<8x512xf32>
    %57 = vector.extract_strided_slice %56 {offsets = [0, 0], sizes = [8, 384], strides = [1, 1]} : vector<8x512xf32> to vector<8x384xf32>
    %58 = arith.negf %57 : vector<8x384xf32>
    %59 = math.exp %58 : vector<8x384xf32>
    %cst_24 = arith.constant 1.000000e+00 : f32
    %60 = vector.broadcast %cst_24 : f32 to vector<8x384xf32>
    %61 = arith.addf %60, %59 : vector<8x384xf32>
    %62 = arith.divf %60, %61 : vector<8x384xf32>
    %63 = vector.extract_strided_slice %56 {offsets = [0, 384], sizes = [8, 128], strides = [1, 1]} : vector<8x512xf32> to vector<8x128xf32>
    %64 = math.tanh %63 : vector<8x128xf32>
    %65 = vector.extract_strided_slice %62 {offsets = [0, 128], sizes = [8, 128], strides = [1, 1]} : vector<8x384xf32> to vector<8x128xf32>
    %66 = arith.mulf %65, %30 : vector<8x128xf32>
    %67 = vector.extract_strided_slice %62 {offsets = [0, 0], sizes = [8, 128], strides = [1, 1]} : vector<8x384xf32> to vector<8x128xf32>
    %68 = arith.mulf %67, %64 : vector<8x128xf32>
    %69 = arith.addf %66, %68 : vector<8x128xf32>
    %70 = vector.extract_strided_slice %62 {offsets = [0, 256], sizes = [8, 128], strides = [1, 1]} : vector<8x384xf32> to vector<8x128xf32>
    %71 = math.tanh %69 : vector<8x128xf32>
    %72 = arith.mulf %70, %71 : vector<8x128xf32>
    %73 = tpu.concatenate %72, %53 in 1 : vector<8x128xf32>, vector<8x128xf32> -> vector<8x256xf32>
    %cst_25 = arith.constant dense<0.000000e+00> : vector<8x512xf32>
    %74 = tpu.matmul %73, %3, %cst_25 {dimension_numbers = #tpu.dot_dimension_numbers<[1], [0], [0], [1], [0, 0, 1, 1], [], []>} : vector<8x256xf32>, vector<256x512xf32>, vector<8x512xf32> -> vector<8x512xf32>
    %75 = vector.broadcast %4 : vector<1x512xf32> to vector<8x512xf32>
    %76 = arith.addf %74, %75 : vector<8x512xf32>
    %77 = vector.extract_strided_slice %76 {offsets = [0, 0], sizes = [8, 384], strides = [1, 1]} : vector<8x512xf32> to vector<8x384xf32>
    %78 = arith.negf %77 : vector<8x384xf32>
    %79 = math.exp %78 : vector<8x384xf32>
    %cst_26 = arith.constant 1.000000e+00 : f32
    %80 = vector.broadcast %cst_26 : f32 to vector<8x384xf32>
    %81 = arith.addf %80, %79 : vector<8x384xf32>
    %82 = arith.divf %80, %81 : vector<8x384xf32>
    %83 = vector.extract_strided_slice %76 {offsets = [0, 384], sizes = [8, 128], strides = [1, 1]} : vector<8x512xf32> to vector<8x128xf32>
    %84 = math.tanh %83 : vector<8x128xf32>
    %85 = vector.extract_strided_slice %82 {offsets = [0, 128], sizes = [8, 128], strides = [1, 1]} : vector<8x384xf32> to vector<8x128xf32>
    %86 = arith.mulf %85, %50 : vector<8x128xf32>
    %87 = vector.extract_strided_slice %82 {offsets = [0, 0], sizes = [8, 128], strides = [1, 1]} : vector<8x384xf32> to vector<8x128xf32>
    %88 = arith.mulf %87, %84 : vector<8x128xf32>
    %89 = arith.addf %86, %88 : vector<8x128xf32>
    %90 = vector.extract_strided_slice %82 {offsets = [0, 256], sizes = [8, 128], strides = [1, 1]} : vector<8x384xf32> to vector<8x128xf32>
    %91 = math.tanh %89 : vector<8x128xf32>
    %92 = arith.mulf %90, %91 : vector<8x128xf32>
    %93 = vector.extract_strided_slice %10 {offsets = [16, 0], sizes = [8, 512], strides = [1, 1]} : vector<64x512xf32> to vector<8x512xf32>
    %cst_27 = arith.constant dense<0.000000e+00> : vector<8x512xf32>
    %94 = tpu.matmul %72, %1, %cst_27 {dimension_numbers = #tpu.dot_dimension_numbers<[1], [0], [0], [1], [0, 0, 1, 1], [], []>} : vector<8x128xf32>, vector<128x512xf32>, vector<8x512xf32> -> vector<8x512xf32>
    %95 = arith.addf %93, %94 : vector<8x512xf32>
    %96 = vector.extract_strided_slice %95 {offsets = [0, 0], sizes = [8, 384], strides = [1, 1]} : vector<8x512xf32> to vector<8x384xf32>
    %97 = arith.negf %96 : vector<8x384xf32>
    %98 = math.exp %97 : vector<8x384xf32>
    %cst_28 = arith.constant 1.000000e+00 : f32
    %99 = vector.broadcast %cst_28 : f32 to vector<8x384xf32>
    %100 = arith.addf %99, %98 : vector<8x384xf32>
    %101 = arith.divf %99, %100 : vector<8x384xf32>
    %102 = vector.extract_strided_slice %95 {offsets = [0, 384], sizes = [8, 128], strides = [1, 1]} : vector<8x512xf32> to vector<8x128xf32>
    %103 = math.tanh %102 : vector<8x128xf32>
    %104 = vector.extract_strided_slice %101 {offsets = [0, 128], sizes = [8, 128], strides = [1, 1]} : vector<8x384xf32> to vector<8x128xf32>
    %105 = arith.mulf %104, %69 : vector<8x128xf32>
    %106 = vector.extract_strided_slice %101 {offsets = [0, 0], sizes = [8, 128], strides = [1, 1]} : vector<8x384xf32> to vector<8x128xf32>
    %107 = arith.mulf %106, %103 : vector<8x128xf32>
    %108 = arith.addf %105, %107 : vector<8x128xf32>
    %109 = vector.extract_strided_slice %101 {offsets = [0, 256], sizes = [8, 128], strides = [1, 1]} : vector<8x384xf32> to vector<8x128xf32>
    %110 = math.tanh %108 : vector<8x128xf32>
    %111 = arith.mulf %109, %110 : vector<8x128xf32>
    %112 = tpu.concatenate %111, %92 in 1 : vector<8x128xf32>, vector<8x128xf32> -> vector<8x256xf32>
    %cst_29 = arith.constant dense<0.000000e+00> : vector<8x512xf32>
    %113 = tpu.matmul %112, %3, %cst_29 {dimension_numbers = #tpu.dot_dimension_numbers<[1], [0], [0], [1], [0, 0, 1, 1], [], []>} : vector<8x256xf32>, vector<256x512xf32>, vector<8x512xf32> -> vector<8x512xf32>
    %114 = vector.broadcast %4 : vector<1x512xf32> to vector<8x512xf32>
    %115 = arith.addf %113, %114 : vector<8x512xf32>
    %116 = vector.extract_strided_slice %115 {offsets = [0, 0], sizes = [8, 384], strides = [1, 1]} : vector<8x512xf32> to vector<8x384xf32>
    %117 = arith.negf %116 : vector<8x384xf32>
    %118 = math.exp %117 : vector<8x384xf32>
    %cst_30 = arith.constant 1.000000e+00 : f32
    %119 = vector.broadcast %cst_30 : f32 to vector<8x384xf32>
    %120 = arith.addf %119, %118 : vector<8x384xf32>
    %121 = arith.divf %119, %120 : vector<8x384xf32>
    %122 = vector.extract_strided_slice %115 {offsets = [0, 384], sizes = [8, 128], strides = [1, 1]} : vector<8x512xf32> to vector<8x128xf32>
    %123 = math.tanh %122 : vector<8x128xf32>
    %124 = vector.extract_strided_slice %121 {offsets = [0, 128], sizes = [8, 128], strides = [1, 1]} : vector<8x384xf32> to vector<8x128xf32>
    %125 = arith.mulf %124, %89 : vector<8x128xf32>
    %126 = vector.extract_strided_slice %121 {offsets = [0, 0], sizes = [8, 128], strides = [1, 1]} : vector<8x384xf32> to vector<8x128xf32>
    %127 = arith.mulf %126, %123 : vector<8x128xf32>
    %128 = arith.addf %125, %127 : vector<8x128xf32>
    %129 = vector.extract_strided_slice %121 {offsets = [0, 256], sizes = [8, 128], strides = [1, 1]} : vector<8x384xf32> to vector<8x128xf32>
    %130 = math.tanh %128 : vector<8x128xf32>
    %131 = arith.mulf %129, %130 : vector<8x128xf32>
    %132 = vector.extract_strided_slice %10 {offsets = [24, 0], sizes = [8, 512], strides = [1, 1]} : vector<64x512xf32> to vector<8x512xf32>
    %cst_31 = arith.constant dense<0.000000e+00> : vector<8x512xf32>
    %133 = tpu.matmul %111, %1, %cst_31 {dimension_numbers = #tpu.dot_dimension_numbers<[1], [0], [0], [1], [0, 0, 1, 1], [], []>} : vector<8x128xf32>, vector<128x512xf32>, vector<8x512xf32> -> vector<8x512xf32>
    %134 = arith.addf %132, %133 : vector<8x512xf32>
    %135 = vector.extract_strided_slice %134 {offsets = [0, 0], sizes = [8, 384], strides = [1, 1]} : vector<8x512xf32> to vector<8x384xf32>
    %136 = arith.negf %135 : vector<8x384xf32>
    %137 = math.exp %136 : vector<8x384xf32>
    %cst_32 = arith.constant 1.000000e+00 : f32
    %138 = vector.broadcast %cst_32 : f32 to vector<8x384xf32>
    %139 = arith.addf %138, %137 : vector<8x384xf32>
    %140 = arith.divf %138, %139 : vector<8x384xf32>
    %141 = vector.extract_strided_slice %134 {offsets = [0, 384], sizes = [8, 128], strides = [1, 1]} : vector<8x512xf32> to vector<8x128xf32>
    %142 = math.tanh %141 : vector<8x128xf32>
    %143 = vector.extract_strided_slice %140 {offsets = [0, 128], sizes = [8, 128], strides = [1, 1]} : vector<8x384xf32> to vector<8x128xf32>
    %144 = arith.mulf %143, %108 : vector<8x128xf32>
    %145 = vector.extract_strided_slice %140 {offsets = [0, 0], sizes = [8, 128], strides = [1, 1]} : vector<8x384xf32> to vector<8x128xf32>
    %146 = arith.mulf %145, %142 : vector<8x128xf32>
    %147 = arith.addf %144, %146 : vector<8x128xf32>
    %148 = vector.extract_strided_slice %140 {offsets = [0, 256], sizes = [8, 128], strides = [1, 1]} : vector<8x384xf32> to vector<8x128xf32>
    %149 = math.tanh %147 : vector<8x128xf32>
    %150 = arith.mulf %148, %149 : vector<8x128xf32>
    %151 = tpu.concatenate %150, %131 in 1 : vector<8x128xf32>, vector<8x128xf32> -> vector<8x256xf32>
    %cst_33 = arith.constant dense<0.000000e+00> : vector<8x512xf32>
    %152 = tpu.matmul %151, %3, %cst_33 {dimension_numbers = #tpu.dot_dimension_numbers<[1], [0], [0], [1], [0, 0, 1, 1], [], []>} : vector<8x256xf32>, vector<256x512xf32>, vector<8x512xf32> -> vector<8x512xf32>
    %153 = vector.broadcast %4 : vector<1x512xf32> to vector<8x512xf32>
    %154 = arith.addf %152, %153 : vector<8x512xf32>
    %155 = vector.extract_strided_slice %154 {offsets = [0, 0], sizes = [8, 384], strides = [1, 1]} : vector<8x512xf32> to vector<8x384xf32>
    %156 = arith.negf %155 : vector<8x384xf32>
    %157 = math.exp %156 : vector<8x384xf32>
    %cst_34 = arith.constant 1.000000e+00 : f32
    %158 = vector.broadcast %cst_34 : f32 to vector<8x384xf32>
    %159 = arith.addf %158, %157 : vector<8x384xf32>
    %160 = arith.divf %158, %159 : vector<8x384xf32>
    %161 = vector.extract_strided_slice %154 {offsets = [0, 384], sizes = [8, 128], strides = [1, 1]} : vector<8x512xf32> to vector<8x128xf32>
    %162 = math.tanh %161 : vector<8x128xf32>
    %163 = vector.extract_strided_slice %160 {offsets = [0, 128], sizes = [8, 128], strides = [1, 1]} : vector<8x384xf32> to vector<8x128xf32>
    %164 = arith.mulf %163, %128 : vector<8x128xf32>
    %165 = vector.extract_strided_slice %160 {offsets = [0, 0], sizes = [8, 128], strides = [1, 1]} : vector<8x384xf32> to vector<8x128xf32>
    %166 = arith.mulf %165, %162 : vector<8x128xf32>
    %167 = arith.addf %164, %166 : vector<8x128xf32>
    %168 = vector.extract_strided_slice %160 {offsets = [0, 256], sizes = [8, 128], strides = [1, 1]} : vector<8x384xf32> to vector<8x128xf32>
    %169 = math.tanh %167 : vector<8x128xf32>
    %170 = arith.mulf %168, %169 : vector<8x128xf32>
    %171 = vector.extract_strided_slice %10 {offsets = [32, 0], sizes = [8, 512], strides = [1, 1]} : vector<64x512xf32> to vector<8x512xf32>
    %cst_35 = arith.constant dense<0.000000e+00> : vector<8x512xf32>
    %172 = tpu.matmul %150, %1, %cst_35 {dimension_numbers = #tpu.dot_dimension_numbers<[1], [0], [0], [1], [0, 0, 1, 1], [], []>} : vector<8x128xf32>, vector<128x512xf32>, vector<8x512xf32> -> vector<8x512xf32>
    %173 = arith.addf %171, %172 : vector<8x512xf32>
    %174 = vector.extract_strided_slice %173 {offsets = [0, 0], sizes = [8, 384], strides = [1, 1]} : vector<8x512xf32> to vector<8x384xf32>
    %175 = arith.negf %174 : vector<8x384xf32>
    %176 = math.exp %175 : vector<8x384xf32>
    %cst_36 = arith.constant 1.000000e+00 : f32
    %177 = vector.broadcast %cst_36 : f32 to vector<8x384xf32>
    %178 = arith.addf %177, %176 : vector<8x384xf32>
    %179 = arith.divf %177, %178 : vector<8x384xf32>
    %180 = vector.extract_strided_slice %173 {offsets = [0, 384], sizes = [8, 128], strides = [1, 1]} : vector<8x512xf32> to vector<8x128xf32>
    %181 = math.tanh %180 : vector<8x128xf32>
    %182 = vector.extract_strided_slice %179 {offsets = [0, 128], sizes = [8, 128], strides = [1, 1]} : vector<8x384xf32> to vector<8x128xf32>
    %183 = arith.mulf %182, %147 : vector<8x128xf32>
    %184 = vector.extract_strided_slice %179 {offsets = [0, 0], sizes = [8, 128], strides = [1, 1]} : vector<8x384xf32> to vector<8x128xf32>
    %185 = arith.mulf %184, %181 : vector<8x128xf32>
    %186 = arith.addf %183, %185 : vector<8x128xf32>
    %187 = vector.extract_strided_slice %179 {offsets = [0, 256], sizes = [8, 128], strides = [1, 1]} : vector<8x384xf32> to vector<8x128xf32>
    %188 = math.tanh %186 : vector<8x128xf32>
    %189 = arith.mulf %187, %188 : vector<8x128xf32>
    %190 = tpu.concatenate %189, %170 in 1 : vector<8x128xf32>, vector<8x128xf32> -> vector<8x256xf32>
    %cst_37 = arith.constant dense<0.000000e+00> : vector<8x512xf32>
    %191 = tpu.matmul %190, %3, %cst_37 {dimension_numbers = #tpu.dot_dimension_numbers<[1], [0], [0], [1], [0, 0, 1, 1], [], []>} : vector<8x256xf32>, vector<256x512xf32>, vector<8x512xf32> -> vector<8x512xf32>
    %192 = vector.broadcast %4 : vector<1x512xf32> to vector<8x512xf32>
    %193 = arith.addf %191, %192 : vector<8x512xf32>
    %194 = vector.extract_strided_slice %193 {offsets = [0, 0], sizes = [8, 384], strides = [1, 1]} : vector<8x512xf32> to vector<8x384xf32>
    %195 = arith.negf %194 : vector<8x384xf32>
    %196 = math.exp %195 : vector<8x384xf32>
    %cst_38 = arith.constant 1.000000e+00 : f32
    %197 = vector.broadcast %cst_38 : f32 to vector<8x384xf32>
    %198 = arith.addf %197, %196 : vector<8x384xf32>
    %199 = arith.divf %197, %198 : vector<8x384xf32>
    %200 = vector.extract_strided_slice %193 {offsets = [0, 384], sizes = [8, 128], strides = [1, 1]} : vector<8x512xf32> to vector<8x128xf32>
    %201 = math.tanh %200 : vector<8x128xf32>
    %202 = vector.extract_strided_slice %199 {offsets = [0, 128], sizes = [8, 128], strides = [1, 1]} : vector<8x384xf32> to vector<8x128xf32>
    %203 = arith.mulf %202, %167 : vector<8x128xf32>
    %204 = vector.extract_strided_slice %199 {offsets = [0, 0], sizes = [8, 128], strides = [1, 1]} : vector<8x384xf32> to vector<8x128xf32>
    %205 = arith.mulf %204, %201 : vector<8x128xf32>
    %206 = arith.addf %203, %205 : vector<8x128xf32>
    %207 = vector.extract_strided_slice %199 {offsets = [0, 256], sizes = [8, 128], strides = [1, 1]} : vector<8x384xf32> to vector<8x128xf32>
    %208 = math.tanh %206 : vector<8x128xf32>
    %209 = arith.mulf %207, %208 : vector<8x128xf32>
    %210 = vector.extract_strided_slice %10 {offsets = [40, 0], sizes = [8, 512], strides = [1, 1]} : vector<64x512xf32> to vector<8x512xf32>
    %cst_39 = arith.constant dense<0.000000e+00> : vector<8x512xf32>
    %211 = tpu.matmul %189, %1, %cst_39 {dimension_numbers = #tpu.dot_dimension_numbers<[1], [0], [0], [1], [0, 0, 1, 1], [], []>} : vector<8x128xf32>, vector<128x512xf32>, vector<8x512xf32> -> vector<8x512xf32>
    %212 = arith.addf %210, %211 : vector<8x512xf32>
    %213 = vector.extract_strided_slice %212 {offsets = [0, 0], sizes = [8, 384], strides = [1, 1]} : vector<8x512xf32> to vector<8x384xf32>
    %214 = arith.negf %213 : vector<8x384xf32>
    %215 = math.exp %214 : vector<8x384xf32>
    %cst_40 = arith.constant 1.000000e+00 : f32
    %216 = vector.broadcast %cst_40 : f32 to vector<8x384xf32>
    %217 = arith.addf %216, %215 : vector<8x384xf32>
    %218 = arith.divf %216, %217 : vector<8x384xf32>
    %219 = vector.extract_strided_slice %212 {offsets = [0, 384], sizes = [8, 128], strides = [1, 1]} : vector<8x512xf32> to vector<8x128xf32>
    %220 = math.tanh %219 : vector<8x128xf32>
    %221 = vector.extract_strided_slice %218 {offsets = [0, 128], sizes = [8, 128], strides = [1, 1]} : vector<8x384xf32> to vector<8x128xf32>
    %222 = arith.mulf %221, %186 : vector<8x128xf32>
    %223 = vector.extract_strided_slice %218 {offsets = [0, 0], sizes = [8, 128], strides = [1, 1]} : vector<8x384xf32> to vector<8x128xf32>
    %224 = arith.mulf %223, %220 : vector<8x128xf32>
    %225 = arith.addf %222, %224 : vector<8x128xf32>
    %226 = vector.extract_strided_slice %218 {offsets = [0, 256], sizes = [8, 128], strides = [1, 1]} : vector<8x384xf32> to vector<8x128xf32>
    %227 = math.tanh %225 : vector<8x128xf32>
    %228 = arith.mulf %226, %227 : vector<8x128xf32>
    %229 = tpu.concatenate %228, %209 in 1 : vector<8x128xf32>, vector<8x128xf32> -> vector<8x256xf32>
    %cst_41 = arith.constant dense<0.000000e+00> : vector<8x512xf32>
    %230 = tpu.matmul %229, %3, %cst_41 {dimension_numbers = #tpu.dot_dimension_numbers<[1], [0], [0], [1], [0, 0, 1, 1], [], []>} : vector<8x256xf32>, vector<256x512xf32>, vector<8x512xf32> -> vector<8x512xf32>
    %231 = vector.broadcast %4 : vector<1x512xf32> to vector<8x512xf32>
    %232 = arith.addf %230, %231 : vector<8x512xf32>
    %233 = vector.extract_strided_slice %232 {offsets = [0, 0], sizes = [8, 384], strides = [1, 1]} : vector<8x512xf32> to vector<8x384xf32>
    %234 = arith.negf %233 : vector<8x384xf32>
    %235 = math.exp %234 : vector<8x384xf32>
    %cst_42 = arith.constant 1.000000e+00 : f32
    %236 = vector.broadcast %cst_42 : f32 to vector<8x384xf32>
    %237 = arith.addf %236, %235 : vector<8x384xf32>
    %238 = arith.divf %236, %237 : vector<8x384xf32>
    %239 = vector.extract_strided_slice %232 {offsets = [0, 384], sizes = [8, 128], strides = [1, 1]} : vector<8x512xf32> to vector<8x128xf32>
    %240 = math.tanh %239 : vector<8x128xf32>
    %241 = vector.extract_strided_slice %238 {offsets = [0, 128], sizes = [8, 128], strides = [1, 1]} : vector<8x384xf32> to vector<8x128xf32>
    %242 = arith.mulf %241, %206 : vector<8x128xf32>
    %243 = vector.extract_strided_slice %238 {offsets = [0, 0], sizes = [8, 128], strides = [1, 1]} : vector<8x384xf32> to vector<8x128xf32>
    %244 = arith.mulf %243, %240 : vector<8x128xf32>
    %245 = arith.addf %242, %244 : vector<8x128xf32>
    %246 = vector.extract_strided_slice %238 {offsets = [0, 256], sizes = [8, 128], strides = [1, 1]} : vector<8x384xf32> to vector<8x128xf32>
    %247 = math.tanh %245 : vector<8x128xf32>
    %248 = arith.mulf %246, %247 : vector<8x128xf32>
    %249 = vector.extract_strided_slice %10 {offsets = [48, 0], sizes = [8, 512], strides = [1, 1]} : vector<64x512xf32> to vector<8x512xf32>
    %cst_43 = arith.constant dense<0.000000e+00> : vector<8x512xf32>
    %250 = tpu.matmul %228, %1, %cst_43 {dimension_numbers = #tpu.dot_dimension_numbers<[1], [0], [0], [1], [0, 0, 1, 1], [], []>} : vector<8x128xf32>, vector<128x512xf32>, vector<8x512xf32> -> vector<8x512xf32>
    %251 = arith.addf %249, %250 : vector<8x512xf32>
    %252 = vector.extract_strided_slice %251 {offsets = [0, 0], sizes = [8, 384], strides = [1, 1]} : vector<8x512xf32> to vector<8x384xf32>
    %253 = arith.negf %252 : vector<8x384xf32>
    %254 = math.exp %253 : vector<8x384xf32>
    %cst_44 = arith.constant 1.000000e+00 : f32
    %255 = vector.broadcast %cst_44 : f32 to vector<8x384xf32>
    %256 = arith.addf %255, %254 : vector<8x384xf32>
    %257 = arith.divf %255, %256 : vector<8x384xf32>
    %258 = vector.extract_strided_slice %251 {offsets = [0, 384], sizes = [8, 128], strides = [1, 1]} : vector<8x512xf32> to vector<8x128xf32>
    %259 = math.tanh %258 : vector<8x128xf32>
    %260 = vector.extract_strided_slice %257 {offsets = [0, 128], sizes = [8, 128], strides = [1, 1]} : vector<8x384xf32> to vector<8x128xf32>
    %261 = arith.mulf %260, %225 : vector<8x128xf32>
    %262 = vector.extract_strided_slice %257 {offsets = [0, 0], sizes = [8, 128], strides = [1, 1]} : vector<8x384xf32> to vector<8x128xf32>
    %263 = arith.mulf %262, %259 : vector<8x128xf32>
    %264 = arith.addf %261, %263 : vector<8x128xf32>
    %265 = vector.extract_strided_slice %257 {offsets = [0, 256], sizes = [8, 128], strides = [1, 1]} : vector<8x384xf32> to vector<8x128xf32>
    %266 = math.tanh %264 : vector<8x128xf32>
    %267 = arith.mulf %265, %266 : vector<8x128xf32>
    %268 = tpu.concatenate %267, %248 in 1 : vector<8x128xf32>, vector<8x128xf32> -> vector<8x256xf32>
    %cst_45 = arith.constant dense<0.000000e+00> : vector<8x512xf32>
    %269 = tpu.matmul %268, %3, %cst_45 {dimension_numbers = #tpu.dot_dimension_numbers<[1], [0], [0], [1], [0, 0, 1, 1], [], []>} : vector<8x256xf32>, vector<256x512xf32>, vector<8x512xf32> -> vector<8x512xf32>
    %270 = vector.broadcast %4 : vector<1x512xf32> to vector<8x512xf32>
    %271 = arith.addf %269, %270 : vector<8x512xf32>
    %272 = vector.extract_strided_slice %271 {offsets = [0, 0], sizes = [8, 384], strides = [1, 1]} : vector<8x512xf32> to vector<8x384xf32>
    %273 = arith.negf %272 : vector<8x384xf32>
    %274 = math.exp %273 : vector<8x384xf32>
    %cst_46 = arith.constant 1.000000e+00 : f32
    %275 = vector.broadcast %cst_46 : f32 to vector<8x384xf32>
    %276 = arith.addf %275, %274 : vector<8x384xf32>
    %277 = arith.divf %275, %276 : vector<8x384xf32>
    %278 = vector.extract_strided_slice %271 {offsets = [0, 384], sizes = [8, 128], strides = [1, 1]} : vector<8x512xf32> to vector<8x128xf32>
    %279 = math.tanh %278 : vector<8x128xf32>
    %280 = vector.extract_strided_slice %277 {offsets = [0, 128], sizes = [8, 128], strides = [1, 1]} : vector<8x384xf32> to vector<8x128xf32>
    %281 = arith.mulf %280, %245 : vector<8x128xf32>
    %282 = vector.extract_strided_slice %277 {offsets = [0, 0], sizes = [8, 128], strides = [1, 1]} : vector<8x384xf32> to vector<8x128xf32>
    %283 = arith.mulf %282, %279 : vector<8x128xf32>
    %284 = arith.addf %281, %283 : vector<8x128xf32>
    %285 = vector.extract_strided_slice %277 {offsets = [0, 256], sizes = [8, 128], strides = [1, 1]} : vector<8x384xf32> to vector<8x128xf32>
    %286 = math.tanh %284 : vector<8x128xf32>
    %287 = arith.mulf %285, %286 : vector<8x128xf32>
    %288 = vector.extract_strided_slice %10 {offsets = [56, 0], sizes = [8, 512], strides = [1, 1]} : vector<64x512xf32> to vector<8x512xf32>
    %cst_47 = arith.constant dense<0.000000e+00> : vector<8x512xf32>
    %289 = tpu.matmul %267, %1, %cst_47 {dimension_numbers = #tpu.dot_dimension_numbers<[1], [0], [0], [1], [0, 0, 1, 1], [], []>} : vector<8x128xf32>, vector<128x512xf32>, vector<8x512xf32> -> vector<8x512xf32>
    %290 = arith.addf %288, %289 : vector<8x512xf32>
    %291 = vector.extract_strided_slice %290 {offsets = [0, 0], sizes = [8, 384], strides = [1, 1]} : vector<8x512xf32> to vector<8x384xf32>
    %292 = arith.negf %291 : vector<8x384xf32>
    %293 = math.exp %292 : vector<8x384xf32>
    %cst_48 = arith.constant 1.000000e+00 : f32
    %294 = vector.broadcast %cst_48 : f32 to vector<8x384xf32>
    %295 = arith.addf %294, %293 : vector<8x384xf32>
    %296 = arith.divf %294, %295 : vector<8x384xf32>
    %297 = vector.extract_strided_slice %290 {offsets = [0, 384], sizes = [8, 128], strides = [1, 1]} : vector<8x512xf32> to vector<8x128xf32>
    %298 = math.tanh %297 : vector<8x128xf32>
    %299 = vector.extract_strided_slice %296 {offsets = [0, 128], sizes = [8, 128], strides = [1, 1]} : vector<8x384xf32> to vector<8x128xf32>
    %300 = arith.mulf %299, %264 : vector<8x128xf32>
    %301 = vector.extract_strided_slice %296 {offsets = [0, 0], sizes = [8, 128], strides = [1, 1]} : vector<8x384xf32> to vector<8x128xf32>
    %302 = arith.mulf %301, %298 : vector<8x128xf32>
    %303 = arith.addf %300, %302 : vector<8x128xf32>
    %304 = vector.extract_strided_slice %296 {offsets = [0, 256], sizes = [8, 128], strides = [1, 1]} : vector<8x384xf32> to vector<8x128xf32>
    %305 = math.tanh %303 : vector<8x128xf32>
    %306 = arith.mulf %304, %305 : vector<8x128xf32>
    %307 = tpu.concatenate %306, %287 in 1 : vector<8x128xf32>, vector<8x128xf32> -> vector<8x256xf32>
    %cst_49 = arith.constant dense<0.000000e+00> : vector<8x512xf32>
    %308 = tpu.matmul %307, %3, %cst_49 {dimension_numbers = #tpu.dot_dimension_numbers<[1], [0], [0], [1], [0, 0, 1, 1], [], []>} : vector<8x256xf32>, vector<256x512xf32>, vector<8x512xf32> -> vector<8x512xf32>
    %309 = vector.broadcast %4 : vector<1x512xf32> to vector<8x512xf32>
    %310 = arith.addf %308, %309 : vector<8x512xf32>
    %311 = vector.extract_strided_slice %310 {offsets = [0, 0], sizes = [8, 384], strides = [1, 1]} : vector<8x512xf32> to vector<8x384xf32>
    %312 = arith.negf %311 : vector<8x384xf32>
    %313 = math.exp %312 : vector<8x384xf32>
    %cst_50 = arith.constant 1.000000e+00 : f32
    %314 = vector.broadcast %cst_50 : f32 to vector<8x384xf32>
    %315 = arith.addf %314, %313 : vector<8x384xf32>
    %316 = arith.divf %314, %315 : vector<8x384xf32>
    %317 = vector.extract_strided_slice %310 {offsets = [0, 384], sizes = [8, 128], strides = [1, 1]} : vector<8x512xf32> to vector<8x128xf32>
    %318 = math.tanh %317 : vector<8x128xf32>
    %319 = vector.extract_strided_slice %316 {offsets = [0, 128], sizes = [8, 128], strides = [1, 1]} : vector<8x384xf32> to vector<8x128xf32>
    %320 = arith.mulf %319, %284 : vector<8x128xf32>
    %321 = vector.extract_strided_slice %316 {offsets = [0, 0], sizes = [8, 128], strides = [1, 1]} : vector<8x384xf32> to vector<8x128xf32>
    %322 = arith.mulf %321, %318 : vector<8x128xf32>
    %323 = arith.addf %320, %322 : vector<8x128xf32>
    %324 = vector.extract_strided_slice %316 {offsets = [0, 256], sizes = [8, 128], strides = [1, 1]} : vector<8x384xf32> to vector<8x128xf32>
    %325 = math.tanh %323 : vector<8x128xf32>
    %326 = arith.mulf %324, %325 : vector<8x128xf32>
    %cst_51 = arith.constant dense<0.000000e+00> : vector<8x128xf32>
    %327 = tpu.matmul %326, %5, %cst_51 {dimension_numbers = #tpu.dot_dimension_numbers<[1], [0], [0], [1], [0, 0, 1, 1], [], []>} : vector<8x128xf32>, vector<128x128xf32>, vector<8x128xf32> -> vector<8x128xf32>
    %328 = vector.broadcast %6 : vector<1x128xf32> to vector<8x128xf32>
    %329 = arith.addf %327, %328 : vector<8x128xf32>
    %c0_52 = arith.constant 0 : index
    %c0_53 = arith.constant 0 : index
    %330 = vector.load %arg8[%c0_52, %c0_53] : memref<8x128xf32, #tpu.memory_space<vmem>>, vector<8x128xf32>
    tpu.vector_store %arg8[%c0_52, %c0_53], %329 {strides = array<i32>} : memref<8x128xf32, #tpu.memory_space<vmem>>, vector<8x128xf32>,
    return
  }
}

</mosaic_0001>

<llo_original>
// kernel: basic_lstm_forward.1
$region0: #{basic_lstm_forward.1}
  #allocation0 [shape = 'u32[]', space=smem, size = 0x4, offset = 0x4, fixed_abs, tag = 'smem constant byte address 0x4 - core index']
  #allocation1 [shape = 'u32[144,128]{1,0:T(1,128)}', space=vmem, size = 0x12000, scoped, tag = 'internal scratch']
  %s0 = inlined_call_operand.vmem [shape: f32[64,8], index: 0, kind: input, shape index: {}]
  %s1 = inlined_call_operand.vmem [shape: f32[8,512], index: 1, kind: input, shape index: {}]
  %s2 = inlined_call_operand.hbm [shape: f32[128,512], index: 2, kind: input, shape index: {}]
  %s3 = inlined_call_operand.vmem [shape: f32[1,512], index: 3, kind: input, shape index: {}]
  %s4 = inlined_call_operand.hbm [shape: f32[256,512], index: 4, kind: input, shape index: {}]
  %s5 = inlined_call_operand.vmem [shape: f32[1,512], index: 5, kind: input, shape index: {}]
  %s6 = inlined_call_operand.hbm [shape: f32[128,128], index: 6, kind: input, shape index: {}]
  %s7 = inlined_call_operand.vmem [shape: f32[1,128], index: 7, kind: input, shape index: {}]
  %s8 = inlined_call_operand.vmem [shape: f32[8,128], index: 8, kind: output, shape index: {}]
  %s9 = sld [smem:[#allocation0]]
  $region54: #{basic_lstm_forward.1} parent=0
    _
  %s11 = ssub.s32 1, %s9
  %s12 = scalar_select 0, %s11, %s9
  $region1: #{basic_lstm_forward.1} parent=0
    #allocation2 [shape = 'u8[262144]{0}', space=vmem, size = 0x40000, scoped, tag = 'input window, operand 2, single buffered']
    #allocation3 [shape = 's32[1]{0}', space=sflag, size = 0x4, scoped, tag = 'scoped memory for basic_lstm_forward.1']
    #allocation4 [shape = 'u8[524288]{0}', space=vmem, size = 0x80000, scoped, tag = 'input window, operand 4, single buffered']
    #allocation5 [shape = 's32[1]{0}', space=sflag, size = 0x4, scoped, tag = 'scoped memory for basic_lstm_forward.1']
    #allocation6 [shape = 'u8[65536]{0}', space=vmem, size = 0x10000, scoped, tag = 'input window, operand 6, single buffered']
    %13 = vsyncpa [#allocation3], 0
    %14 = vsyncpa [#allocation5], 0
    // Predicated region
    $region2: #{basic_lstm_forward.1} parent=1 // pred_check
      _
    $region3: #{basic_lstm_forward.1} parent=1 // pred_check_branch
      %16 = sbr.rel (0) target = $region5
    $region4: #{basic_lstm_forward.1} parent=1 // pred_region
      _
    $region5: #{basic_lstm_forward.1} parent=1 // pred_fallthru
      _
    // Predicated region
    $region6: #{basic_lstm_forward.1} parent=1 // pred_check
      _
    $region7: #{basic_lstm_forward.1} parent=1 // pred_check_branch
      %18 = sbr.rel (0) target = $region9
    $region8: #{basic_lstm_forward.1} parent=1 // pred_region
      _
    $region9: #{basic_lstm_forward.1} parent=1 // pred_fallthru
      _
    // Predicated region
    $region10: #{basic_lstm_forward.1} parent=1 // pred_check
      _
    $region11: #{basic_lstm_forward.1} parent=1 // pred_check_branch
      %20 = sbr.rel (0) target = $region13
    $region12: #{basic_lstm_forward.1} parent=1 // pred_region
      %s22 = ssub.s32 8192, 8192
      %23 = vsyncadd [#allocation3], %s22
      %s24 = sshll.u32 [#allocation2], 4
      %s25 = int_to_ptr.vmem [resolvable:$true] %s24
      %30 = dma.hbm_to_vmem [thread:$0]  %s2, 8192, %s25, [#allocation3], 512, 512, 32
    $region13: #{basic_lstm_forward.1} parent=1 // pred_fallthru
      _
    // Predicated region
    $region14: #{basic_lstm_forward.1} parent=1 // pred_check
      _
    $region15: #{basic_lstm_forward.1} parent=1 // pred_check_branch
      %32 = sbr.rel (0) target = $region17
    $region16: #{basic_lstm_forward.1} parent=1 // pred_region
      _
    $region17: #{basic_lstm_forward.1} parent=1 // pred_fallthru
      _
    // Predicated region
    $region18: #{basic_lstm_forward.1} parent=1 // pred_check
      _
    $region19: #{basic_lstm_forward.1} parent=1 // pred_check_branch
      %34 = sbr.rel (0) target = $region21
    $region20: #{basic_lstm_forward.1} parent=1 // pred_region
      %s36 = ssub.s32 16384, 16384
      %37 = vsyncadd [#allocation5], %s36
      %s38 = sshll.u32 [#allocation4], 4
      %s39 = int_to_ptr.vmem [resolvable:$true] %s38
      %44 = dma.hbm_to_vmem [thread:$0]  %s4, 16384, %s39, [#allocation5], 512, 512, 32
    $region21: #{basic_lstm_forward.1} parent=1 // pred_fallthru
      _
    // Predicated region
    $region22: #{basic_lstm_forward.1} parent=1 // pred_check
      _
    $region23: #{basic_lstm_forward.1} parent=1 // pred_check_branch
      %46 = sbr.rel (0) target = $region25
    $region24: #{basic_lstm_forward.1} parent=1 // pred_region
      _
    $region25: #{basic_lstm_forward.1} parent=1 // pred_fallthru
      _
    // Predicated region
    $region26: #{basic_lstm_forward.1} parent=1 // pred_check
      _
    $region27: #{basic_lstm_forward.1} parent=1 // pred_check_branch
      %48 = sbr.rel (0) target = $region29
    $region28: #{basic_lstm_forward.1} parent=1 // pred_region
      %s50 = ssub.s32 2048, 2048
      %51 = vsyncadd [#allocation5], %s50
      %s52 = sshll.u32 [#allocation6], 4
      %s53 = int_to_ptr.vmem [resolvable:$true] %s52
      %58 = dma.hbm_to_vmem [thread:$0]  %s6, 2048, %s53, [#allocation5], 128, 128, 8
    $region29: #{basic_lstm_forward.1} parent=1 // pred_fallthru
      _
    // Predicated region
    $region30: #{basic_lstm_forward.1} parent=1 // pred_check
      _
    $region31: #{basic_lstm_forward.1} parent=1 // pred_check_branch
      %60 = sbr.rel (0) target = $region33
    $region32: #{basic_lstm_forward.1} parent=1 // pred_region
      _
    $region33: #{basic_lstm_forward.1} parent=1 // pred_fallthru
      _
    // Predicated region
    $region34: #{basic_lstm_forward.1} parent=1 // pred_check
      _
    $region35: #{basic_lstm_forward.1} parent=1 // pred_check_branch
      %62 = sbr.rel (0) target = $region37
    $region36: #{basic_lstm_forward.1} parent=1 // pred_region
      %63 = dma.done [#allocation3], 8192
    $region37: #{basic_lstm_forward.1} parent=1 // pred_fallthru
      _
    // Predicated region
    $region38: #{basic_lstm_forward.1} parent=1 // pred_check
      _
    $region39: #{basic_lstm_forward.1} parent=1 // pred_check_branch
      %65 = sbr.rel (0) target = $region41
    $region40: #{basic_lstm_forward.1} parent=1 // pred_region
      %66 = dma.done [#allocation5], 16384
    $region41: #{basic_lstm_forward.1} parent=1 // pred_fallthru
      _
    // Predicated region
    $region42: #{basic_lstm_forward.1} parent=1 // pred_check
      _
    $region43: #{basic_lstm_forward.1} parent=1 // pred_check_branch
      %68 = sbr.rel (0) target = $region45
    $region44: #{basic_lstm_forward.1} parent=1 // pred_region
      %69 = dma.done [#allocation5], 2048
    $region45: #{basic_lstm_forward.1} parent=1 // pred_fallthru
      _
    %v70 = vld [vmem:[%s1] sm:$0xff]
    %v71 = vld [vmem:[%s1 + $0x8] sm:$0xff]
    %v72 = vld [vmem:[%s1 + $0x10] sm:$0xff]
    %v73 = vld [vmem:[%s1 + $0x18] sm:$0xff]
    %v74 = vld [vmem:[#allocation2] sm:$0xff]
    %v75 = vld [vmem:[#allocation2 + $0x8] sm:$0xff]
    %v76 = vld [vmem:[#allocation2 + $0x10] sm:$0xff]
    %v77 = vld [vmem:[#allocation2 + $0x18] sm:$0xff]
    %v78 = vld [vmem:[#allocation2 + $0x20] sm:$0xff]
    %v79 = vld [vmem:[#allocation2 + $0x28] sm:$0xff]
    %v80 = vld [vmem:[#allocation2 + $0x30] sm:$0xff]
    %v81 = vld [vmem:[#allocation2 + $0x38] sm:$0xff]
    %v82 = vld [vmem:[#allocation2 + $0x40] sm:$0xff]
    %v83 = vld [vmem:[#allocation2 + $0x48] sm:$0xff]
    %v84 = vld [vmem:[#allocation2 + $0x50] sm:$0xff]
    %v85 = vld [vmem:[#allocation2 + $0x58] sm:$0xff]
    %v86 = vld [vmem:[#allocation2 + $0x60] sm:$0xff]
    %v87 = vld [vmem:[#allocation2 + $0x68] sm:$0xff]
    %v88 = vld [vmem:[#allocation2 + $0x70] sm:$0xff]
    %v89 = vld [vmem:[#allocation2 + $0x78] sm:$0xff]
    %v90 = vld [vmem:[#allocation2 + $0x80] sm:$0xff]
    %v91 = vld [vmem:[#allocation2 + $0x88] sm:$0xff]
    %v92 = vld [vmem:[#allocation2 + $0x90] sm:$0xff]
    %v93 = vld [vmem:[#allocation2 + $0x98] sm:$0xff]
    %v94 = vld [vmem:[#allocation2 + $0xa0] sm:$0xff]
    %v95 = vld [vmem:[#allocation2 + $0xa8] sm:$0xff]
    %v96 = vld [vmem:[#allocation2 + $0xb0] sm:$0xff]
    %v97 = vld [vmem:[#allocation2 + $0xb8] sm:$0xff]
    %v98 = vld [vmem:[#allocation2 + $0xc0] sm:$0xff]
    %v99 = vld [vmem:[#allocation2 + $0xc8] sm:$0xff]
    %v100 = vld [vmem:[#allocation2 + $0xd0] sm:$0xff]
    %v101 = vld [vmem:[#allocation2 + $0xd8] sm:$0xff]
    %v102 = vld [vmem:[#allocation2 + $0xe0] sm:$0xff]
    %v103 = vld [vmem:[#allocation2 + $0xe8] sm:$0xff]
    %v104 = vld [vmem:[#allocation2 + $0xf0] sm:$0xff]
    %v105 = vld [vmem:[#allocation2 + $0xf8] sm:$0xff]
    %v106 = vld [vmem:[#allocation2 + $0x100] sm:$0xff]
    %v107 = vld [vmem:[#allocation2 + $0x108] sm:$0xff]
    %v108 = vld [vmem:[#allocation2 + $0x110] sm:$0xff]
    %v109 = vld [vmem:[#allocation2 + $0x118] sm:$0xff]
    %v110 = vld [vmem:[#allocation2 + $0x120] sm:$0xff]
    %v111 = vld [vmem:[#allocation2 + $0x128] sm:$0xff]
    %v112 = vld [vmem:[#allocation2 + $0x130] sm:$0xff]
    %v113 = vld [vmem:[#allocation2 + $0x138] sm:$0xff]
    %v114 = vld [vmem:[#allocation2 + $0x140] sm:$0xff]
    %v115 = vld [vmem:[#allocation2 + $0x148] sm:$0xff]
    %v116 = vld [vmem:[#allocation2 + $0x150] sm:$0xff]
    %v117 = vld [vmem:[#allocation2 + $0x158] sm:$0xff]
    %v118 = vld [vmem:[#allocation2 + $0x160] sm:$0xff]
    %v119 = vld [vmem:[#allocation2 + $0x168] sm:$0xff]
    %v120 = vld [vmem:[#allocation2 + $0x170] sm:$0xff]
    %v121 = vld [vmem:[#allocation2 + $0x178] sm:$0xff]
    %v122 = vld [vmem:[#allocation2 + $0x180] sm:$0xff]
    %v123 = vld [vmem:[#allocation2 + $0x188] sm:$0xff]
    %v124 = vld [vmem:[#allocation2 + $0x190] sm:$0xff]
    %v125 = vld [vmem:[#allocation2 + $0x198] sm:$0xff]
    %v126 = vld [vmem:[#allocation2 + $0x1a0] sm:$0xff]
    %v127 = vld [vmem:[#allocation2 + $0x1a8] sm:$0xff]
    %v128 = vld [vmem:[#allocation2 + $0x1b0] sm:$0xff]
    %v129 = vld [vmem:[#allocation2 + $0x1b8] sm:$0xff]
    %v130 = vld [vmem:[#allocation2 + $0x1c0] sm:$0xff]
    %v131 = vld [vmem:[#allocation2 + $0x1c8] sm:$0xff]
    %v132 = vld [vmem:[#allocation2 + $0x1d0] sm:$0xff]
    %v133 = vld [vmem:[#allocation2 + $0x1d8] sm:$0xff]
    %v134 = vld [vmem:[#allocation2 + $0x1e0] sm:$0xff]
    %v135 = vld [vmem:[#allocation2 + $0x1e8] sm:$0xff]
    %v136 = vld [vmem:[#allocation2 + $0x1f0] sm:$0xff]
    %v137 = vld [vmem:[#allocation2 + $0x1f8] sm:$0xff]
    %v138 = vld [vmem:[%s3] sm:$0xf]
    %v139 = vld [vmem:[#allocation4] sm:$0xff]
    %v140 = vld [vmem:[#allocation4 + $0x8] sm:$0xff]
    %v141 = vld [vmem:[#allocation4 + $0x10] sm:$0xff]
    %v142 = vld [vmem:[#allocation4 + $0x18] sm:$0xff]
    %v143 = vld [vmem:[#allocation4 + $0x20] sm:$0xff]
    %v144 = vld [vmem:[#allocation4 + $0x28] sm:$0xff]
    %v145 = vld [vmem:[#allocation4 + $0x30] sm:$0xff]
    %v146 = vld [vmem:[#allocation4 + $0x38] sm:$0xff]
    %v147 = vld [vmem:[#allocation4 + $0x40] sm:$0xff]
    %v148 = vld [vmem:[#allocation4 + $0x48] sm:$0xff]
    %v149 = vld [vmem:[#allocation4 + $0x50] sm:$0xff]
    %v150 = vld [vmem:[#allocation4 + $0x58] sm:$0xff]
    %v151 = vld [vmem:[#allocation4 + $0x60] sm:$0xff]
    %v152 = vld [vmem:[#allocation4 + $0x68] sm:$0xff]
    %v153 = vld [vmem:[#allocation4 + $0x70] sm:$0xff]
    %v154 = vld [vmem:[#allocation4 + $0x78] sm:$0xff]
    %v155 = vld [vmem:[#allocation4 + $0x80] sm:$0xff]
    %v156 = vld [vmem:[#allocation4 + $0x88] sm:$0xff]
    %v157 = vld [vmem:[#allocation4 + $0x90] sm:$0xff]
    %v158 = vld [vmem:[#allocation4 + $0x98] sm:$0xff]
    %v159 = vld [vmem:[#allocation4 + $0xa0] sm:$0xff]
    %v160 = vld [vmem:[#allocation4 + $0xa8] sm:$0xff]
    %v161 = vld [vmem:[#allocation4 + $0xb0] sm:$0xff]
    %v162 = vld [vmem:[#allocation4 + $0xb8] sm:$0xff]
    %v163 = vld [vmem:[#allocation4 + $0xc0] sm:$0xff]
    %v164 = vld [vmem:[#allocation4 + $0xc8] sm:$0xff]
    %v165 = vld [vmem:[#allocation4 + $0xd0] sm:$0xff]
    %v166 = vld [vmem:[#allocation4 + $0xd8] sm:$0xff]
    %v167 = vld [vmem:[#allocation4 + $0xe0] sm:$0xff]
    %v168 = vld [vmem:[#allocation4 + $0xe8] sm:$0xff]
    %v169 = vld [vmem:[#allocation4 + $0xf0] sm:$0xff]
    %v170 = vld [vmem:[#allocation4 + $0xf8] sm:$0xff]
    %v171 = vld [vmem:[#allocation4 + $0x100] sm:$0xff]
    %v172 = vld [vmem:[#allocation4 + $0x108] sm:$0xff]
    %v173 = vld [vmem:[#allocation4 + $0x110] sm:$0xff]
    %v174 = vld [vmem:[#allocation4 + $0x118] sm:$0xff]
    %v175 = vld [vmem:[#allocation4 + $0x120] sm:$0xff]
    %v176 = vld [vmem:[#allocation4 + $0x128] sm:$0xff]
    %v177 = vld [vmem:[#allocation4 + $0x130] sm:$0xff]
    %v178 = vld [vmem:[#allocation4 + $0x138] sm:$0xff]
    %v179 = vld [vmem:[#allocation4 + $0x140] sm:$0xff]
    %v180 = vld [vmem:[#allocation4 + $0x148] sm:$0xff]
    %v181 = vld [vmem:[#allocation4 + $0x150] sm:$0xff]
    %v182 = vld [vmem:[#allocation4 + $0x158] sm:$0xff]
    %v183 = vld [vmem:[#allocation4 + $0x160] sm:$0xff]
    %v184 = vld [vmem:[#allocation4 + $0x168] sm:$0xff]
    %v185 = vld [vmem:[#allocation4 + $0x170] sm:$0xff]
    %v186 = vld [vmem:[#allocation4 + $0x178] sm:$0xff]
    %v187 = vld [vmem:[#allocation4 + $0x180] sm:$0xff]
    %v188 = vld [vmem:[#allocation4 + $0x188] sm:$0xff]
    %v189 = vld [vmem:[#allocation4 + $0x190] sm:$0xff]
    %v190 = vld [vmem:[#allocation4 + $0x198] sm:$0xff]
    %v191 = vld [vmem:[#allocation4 + $0x1a0] sm:$0xff]
    %v192 = vld [vmem:[#allocation4 + $0x1a8] sm:$0xff]
    %v193 = vld [vmem:[#allocation4 + $0x1b0] sm:$0xff]
    %v194 = vld [vmem:[#allocation4 + $0x1b8] sm:$0xff]
    %v195 = vld [vmem:[#allocation4 + $0x1c0] sm:$0xff]
    %v196 = vld [vmem:[#allocation4 + $0x1c8] sm:$0xff]
    %v197 = vld [vmem:[#allocation4 + $0x1d0] sm:$0xff]
    %v198 = vld [vmem:[#allocation4 + $0x1d8] sm:$0xff]
    %v199 = vld [vmem:[#allocation4 + $0x1e0] sm:$0xff]
    %v200 = vld [vmem:[#allocation4 + $0x1e8] sm:$0xff]
    %v201 = vld [vmem:[#allocation4 + $0x1f0] sm:$0xff]
    %v202 = vld [vmem:[#allocation4 + $0x1f8] sm:$0xff]
    %v203 = vld [vmem:[#allocation4 + $0x200] sm:$0xff]
    %v204 = vld [vmem:[#allocation4 + $0x208] sm:$0xff]
    %v205 = vld [vmem:[#allocation4 + $0x210] sm:$0xff]
    %v206 = vld [vmem:[#allocation4 + $0x218] sm:$0xff]
    %v207 = vld [vmem:[#allocation4 + $0x220] sm:$0xff]
    %v208 = vld [vmem:[#allocation4 + $0x228] sm:$0xff]
    %v209 = vld [vmem:[#allocation4 + $0x230] sm:$0xff]
    %v210 = vld [vmem:[#allocation4 + $0x238] sm:$0xff]
    %v211 = vld [vmem:[#allocation4 + $0x240] sm:$0xff]
    %v212 = vld [vmem:[#allocation4 + $0x248] sm:$0xff]
    %v213 = vld [vmem:[#allocation4 + $0x250] sm:$0xff]
    %v214 = vld [vmem:[#allocation4 + $0x258] sm:$0xff]
    %v215 = vld [vmem:[#allocation4 + $0x260] sm:$0xff]
    %v216 = vld [vmem:[#allocation4 + $0x268] sm:$0xff]
    %v217 = vld [vmem:[#allocation4 + $0x270] sm:$0xff]
    %v218 = vld [vmem:[#allocation4 + $0x278] sm:$0xff]
    %v219 = vld [vmem:[#allocation4 + $0x280] sm:$0xff]
    %v220 = vld [vmem:[#allocation4 + $0x288] sm:$0xff]
    %v221 = vld [vmem:[#allocation4 + $0x290] sm:$0xff]
    %v222 = vld [vmem:[#allocation4 + $0x298] sm:$0xff]
    %v223 = vld [vmem:[#allocation4 + $0x2a0] sm:$0xff]
    %v224 = vld [vmem:[#allocation4 + $0x2a8] sm:$0xff]
    %v225 = vld [vmem:[#allocation4 + $0x2b0] sm:$0xff]
    %v226 = vld [vmem:[#allocation4 + $0x2b8] sm:$0xff]
    %v227 = vld [vmem:[#allocation4 + $0x2c0] sm:$0xff]
    %v228 = vld [vmem:[#allocation4 + $0x2c8] sm:$0xff]
    %v229 = vld [vmem:[#allocation4 + $0x2d0] sm:$0xff]
    %v230 = vld [vmem:[#allocation4 + $0x2d8] sm:$0xff]
    %v231 = vld [vmem:[#allocation4 + $0x2e0] sm:$0xff]
    %v232 = vld [vmem:[#allocation4 + $0x2e8] sm:$0xff]
    %v233 = vld [vmem:[#allocation4 + $0x2f0] sm:$0xff]
    %v234 = vld [vmem:[#allocation4 + $0x2f8] sm:$0xff]
    %v235 = vld [vmem:[#allocation4 + $0x300] sm:$0xff]
    %v236 = vld [vmem:[#allocation4 + $0x308] sm:$0xff]
    %v237 = vld [vmem:[#allocation4 + $0x310] sm:$0xff]
    %v238 = vld [vmem:[#allocation4 + $0x318] sm:$0xff]
    %v239 = vld [vmem:[#allocation4 + $0x320] sm:$0xff]
    %v240 = vld [vmem:[#allocation4 + $0x328] sm:$0xff]
    %v241 = vld [vmem:[#allocation4 + $0x330] sm:$0xff]
    %v242 = vld [vmem:[#allocation4 + $0x338] sm:$0xff]
    %v243 = vld [vmem:[#allocation4 + $0x340] sm:$0xff]
    %v244 = vld [vmem:[#allocation4 + $0x348] sm:$0xff]
    %v245 = vld [vmem:[#allocation4 + $0x350] sm:$0xff]
    %v246 = vld [vmem:[#allocation4 + $0x358] sm:$0xff]
    %v247 = vld [vmem:[#allocation4 + $0x360] sm:$0xff]
    %v248 = vld [vmem:[#allocation4 + $0x368] sm:$0xff]
    %v249 = vld [vmem:[#allocation4 + $0x370] sm:$0xff]
    %v250 = vld [vmem:[#allocation4 + $0x378] sm:$0xff]
    %v251 = vld [vmem:[#allocation4 + $0x380] sm:$0xff]
    %v252 = vld [vmem:[#allocation4 + $0x388] sm:$0xff]
    %v253 = vld [vmem:[#allocation4 + $0x390] sm:$0xff]
    %v254 = vld [vmem:[#allocation4 + $0x398] sm:$0xff]
    %v255 = vld [vmem:[#allocation4 + $0x3a0] sm:$0xff]
    %v256 = vld [vmem:[#allocation4 + $0x3a8] sm:$0xff]
    %v257 = vld [vmem:[#allocation4 + $0x3b0] sm:$0xff]
    %v258 = vld [vmem:[#allocation4 + $0x3b8] sm:$0xff]
    %v259 = vld [vmem:[#allocation4 + $0x3c0] sm:$0xff]
    %v260 = vld [vmem:[#allocation4 + $0x3c8] sm:$0xff]
    %v261 = vld [vmem:[#allocation4 + $0x3d0] sm:$0xff]
    %v262 = vld [vmem:[#allocation4 + $0x3d8] sm:$0xff]
    %v263 = vld [vmem:[#allocation4 + $0x3e0] sm:$0xff]
    %v264 = vld [vmem:[#allocation4 + $0x3e8] sm:$0xff]
    %v265 = vld [vmem:[#allocation4 + $0x3f0] sm:$0xff]
    %v266 = vld [vmem:[#allocation4 + $0x3f8] sm:$0xff]
    %v267 = vld [vmem:[%s5] sm:$0xf]
    %v268 = vld [vmem:[#allocation6] sm:$0xff]
    %v269 = vld [vmem:[#allocation6 + $0x8] sm:$0xff]
    %v270 = vld [vmem:[#allocation6 + $0x10] sm:$0xff]
    %v271 = vld [vmem:[#allocation6 + $0x18] sm:$0xff]
    %v272 = vld [vmem:[#allocation6 + $0x20] sm:$0xff]
    %v273 = vld [vmem:[#allocation6 + $0x28] sm:$0xff]
    %v274 = vld [vmem:[#allocation6 + $0x30] sm:$0xff]
    %v275 = vld [vmem:[#allocation6 + $0x38] sm:$0xff]
    %v276 = vld [vmem:[#allocation6 + $0x40] sm:$0xff]
    %v277 = vld [vmem:[#allocation6 + $0x48] sm:$0xff]
    %v278 = vld [vmem:[#allocation6 + $0x50] sm:$0xff]
    %v279 = vld [vmem:[#allocation6 + $0x58] sm:$0xff]
    %v280 = vld [vmem:[#allocation6 + $0x60] sm:$0xff]
    %v281 = vld [vmem:[#allocation6 + $0x68] sm:$0xff]
    %v282 = vld [vmem:[#allocation6 + $0x70] sm:$0xff]
    %v283 = vld [vmem:[#allocation6 + $0x78] sm:$0xff]
    %v284 = vld [vmem:[%s7] sm:$0x1]
    %v285 = vld [vmem:[%s0] sm:$0xff]
    %v286 = vld [vmem:[%s0 + $0x8] sm:$0xff]
    %v287 = vld [vmem:[%s0 + $0x10] sm:$0xff]
    %v288 = vld [vmem:[%s0 + $0x18] sm:$0xff]
    %v289 = vld [vmem:[%s0 + $0x20] sm:$0xff]
    %v290 = vld [vmem:[%s0 + $0x28] sm:$0xff]
    %v291 = vld [vmem:[%s0 + $0x30] sm:$0xff]
    %v292 = vld [vmem:[%s0 + $0x38] sm:$0xff]
    %v294 = vlaneseq
    %v295 = vshrl.u32 %v294, 7
    %v296 = vsub.s32 0, %v295
    %v297 = vrot.slane %v138, %v296
    %v298 = vlaneseq
    %v299 = vshrl.u32 %v298, 7
    %v300 = vsub.s32 1, %v299
    %v301 = vrot.slane %v138, %v300
    %v302 = vlaneseq
    %v303 = vshrl.u32 %v302, 7
    %v304 = vsub.s32 2, %v303
    %v305 = vrot.slane %v138, %v304
    %v306 = vlaneseq
    %v307 = vshrl.u32 %v306, 7
    %v308 = vsub.s32 3, %v307
    %v309 = vrot.slane %v138, %v308
    %vm314 = vcmask 64512
    %v316 = vsel %vm314, %v285, 0
    %v319 = vsel %vm314, %v286, 0
    %v322 = vsel %vm314, %v287, 0
    %v325 = vsel %vm314, %v288, 0
    %v328 = vsel %vm314, %v289, 0
    %v331 = vsel %vm314, %v290, 0
    %v334 = vsel %vm314, %v291, 0
    %v337 = vsel %vm314, %v292, 0
    %339 = vmatprep.subr.mxu0 %v71
    %340 = vmatpush1.msra.mxu0 %v70
    %341 = vmatprep.subr.mxu0 0.0
    %342 = vmatpush1.msra.mxu0 0.0
    %343 = vmatprep.subr.mxu0 0.0
    %344 = vmatpush1.msra.mxu0 0.0
    %345 = vmatprep.subr.mxu0 0.0
    %346 = vmatpush1.msra.mxu0 0.0
    %347 = vmatprep.subr.mxu0 0.0
    %348 = vmatpush1.msra.mxu0 0.0
    %349 = vmatprep.subr.mxu0 0.0
    %350 = vmatpush1.msra.mxu0 0.0
    %351 = vmatprep.subr.mxu0 0.0
    %352 = vmatpush1.msra.mxu0 0.0
    %353 = vmatprep.subr.mxu0 0.0
    %354 = vmatpush1.msra.mxu0 0.0
    %355 = vmatprep.subr.mxu0 0.0
    %356 = vmatpush1.msra.mxu0 0.0
    %357 = vmatprep.subr.mxu0 0.0
    %358 = vmatpush1.msra.mxu0 0.0
    %359 = vmatprep.subr.mxu0 0.0
    %360 = vmatpush1.msra.mxu0 0.0
    %361 = vmatprep.subr.mxu0 0.0
    %362 = vmatpush1.msra.mxu0 0.0
    %363 = vmatprep.subr.mxu0 0.0
    %364 = vmatpush1.msra.mxu0 0.0
    %365 = vmatprep.subr.mxu0 0.0
    %366 = vmatpush1.msra.mxu0 0.0
    %367 = vmatprep.subr.mxu0 0.0
    %368 = vmatpush1.msra.mxu0 0.0
    %369 = vmatprep.subr.mxu0 0.0
    %370 = vmatpush1.msra.mxu0 0.0
    %371 = vmatprep.subr.mxu0 0.0
    %372 = vmatpush1.msra.mxu0 0.0
    %373 = vmatprep.subr.mxu0 0.0
    %374 = vmatpush1.msra.mxu0 0.0
    %375 = vmatprep.subr.mxu0 0.0
    %376 = vmatpush1.msra.mxu0 0.0
    %377 = vmatprep.subr.mxu0 0.0
    %378 = vmatpush1.msra.mxu0 0.0
    %379 = vmatprep.subr.mxu0 0.0
    %380 = vmatpush1.msra.mxu0 0.0
    %381 = vmatprep.subr.mxu0 0.0
    %382 = vmatpush1.msra.mxu0 0.0
    %383 = vmatprep.subr.mxu0 0.0
    %384 = vmatpush1.msra.mxu0 0.0
    %385 = vmatprep.subr.mxu0 0.0
    %386 = vmatpush1.msra.mxu0 0.0
    %387 = vmatprep.subr.mxu0 0.0
    %388 = vmatpush1.msra.mxu0 0.0
    %389 = vmatprep.subr.mxu0 0.0
    %390 = vmatpush1.msra.mxu0 0.0
    %391 = vmatprep.subr.mxu0 0.0
    %392 = vmatpush1.msra.mxu0 0.0
    %393 = vmatprep.subr.mxu0 0.0
    %394 = vmatpush1.msra.mxu0 0.0
    %395 = vmatprep.subr.mxu0 0.0
    %396 = vmatpush1.msra.mxu0 0.0
    %397 = vmatprep.subr.mxu0 0.0
    %398 = vmatpush1.msra.mxu0 0.0
    %399 = vmatprep.subr.mxu0 0.0
    %400 = vmatpush1.msra.mxu0 0.0
    %401 = vmatprep.subr.mxu0 0.0
    %402 = vmatpush1.msra.mxu0 0.0
    %403 = vmatprep.mubr.f32.mxu0 0.0
    %404 = vmatmul.mubr.f32.gmra.mrb[0].mxu0 %v316
    %v405 = vpop.f32.mrb[0].mxu0
    %v406 = vadd.f32 %v297, %v405
    %v407 = vpop.f32.mrb[0].mxu0
    %v408 = vadd.f32 %v301, %v407
    %409 = vmatprep.mubr.f32.mxu0 0.0
    %410 = vmatmul.mubr.f32.gmra.mrb[0].mxu0 %v319
    %v411 = vpop.f32.mrb[0].mxu0
    %v412 = vadd.f32 %v297, %v411
    %v413 = vpop.f32.mrb[0].mxu0
    %v414 = vadd.f32 %v301, %v413
    %415 = vmatprep.mubr.f32.mxu0 0.0
    %416 = vmatmul.mubr.f32.gmra.mrb[0].mxu0 %v322
    %v417 = vpop.f32.mrb[0].mxu0
    %v418 = vadd.f32 %v297, %v417
    %v419 = vpop.f32.mrb[0].mxu0
    %v420 = vadd.f32 %v301, %v419
    %421 = vmatprep.mubr.f32.mxu0 0.0
    %422 = vmatmul.mubr.f32.gmra.mrb[0].mxu0 %v325
    %v423 = vpop.f32.mrb[0].mxu0
    %v424 = vadd.f32 %v297, %v423
    %v425 = vpop.f32.mrb[0].mxu0
    %v426 = vadd.f32 %v301, %v425
    %427 = vmatprep.mubr.f32.mxu0 0.0
    %428 = vmatmul.mubr.f32.gmra.mrb[0].mxu0 %v328
    %v429 = vpop.f32.mrb[0].mxu0
    %v430 = vadd.f32 %v297, %v429
    %v431 = vpop.f32.mrb[0].mxu0
    %v432 = vadd.f32 %v301, %v431
    %433 = vmatprep.mubr.f32.mxu0 0.0
    %434 = vmatmul.mubr.f32.gmra.mrb[0].mxu0 %v331
    %v435 = vpop.f32.mrb[0].mxu0
    %v436 = vadd.f32 %v297, %v435
    %v437 = vpop.f32.mrb[0].mxu0
    %v438 = vadd.f32 %v301, %v437
    %439 = vmatprep.mubr.f32.mxu0 0.0
    %440 = vmatmul.mubr.f32.gmra.mrb[0].mxu0 %v334
    %v441 = vpop.f32.mrb[0].mxu0
    %v442 = vadd.f32 %v297, %v441
    %v443 = vpop.f32.mrb[0].mxu0
    %v444 = vadd.f32 %v301, %v443
    %445 = vmatprep.mubr.f32.mxu0 0.0
    %446 = vmatmul.mubr.f32.gmra.mrb[0].mxu0 %v337
    %v447 = vpop.f32.mrb[0].mxu0
    %v448 = vadd.f32 %v297, %v447
    %v449 = vpop.f32.mrb[0].mxu0
    %v450 = vadd.f32 %v301, %v449
    %451 = vdwg.mxu0
    %452 = vmatprep.subr.mxu0 %v73
    %453 = vmatpush1.msra.mxu0 %v72
    %454 = vmatprep.subr.mxu0 0.0
    %455 = vmatpush1.msra.mxu0 0.0
    %456 = vmatprep.subr.mxu0 0.0
    %457 = vmatpush1.msra.mxu0 0.0
    %458 = vmatprep.subr.mxu0 0.0
    %459 = vmatpush1.msra.mxu0 0.0
    %460 = vmatprep.subr.mxu0 0.0
    %461 = vmatpush1.msra.mxu0 0.0
    %462 = vmatprep.subr.mxu0 0.0
    %463 = vmatpush1.msra.mxu0 0.0
    %464 = vmatprep.subr.mxu0 0.0
    %465 = vmatpush1.msra.mxu0 0.0
    %466 = vmatprep.subr.mxu0 0.0
    %467 = vmatpush1.msra.mxu0 0.0
    %468 = vmatprep.subr.mxu0 0.0
    %469 = vmatpush1.msra.mxu0 0.0
    %470 = vmatprep.subr.mxu0 0.0
    %471 = vmatpush1.msra.mxu0 0.0
    %472 = vmatprep.subr.mxu0 0.0
    %473 = vmatpush1.msra.mxu0 0.0
    %474 = vmatprep.subr.mxu0 0.0
    %475 = vmatpush1.msra.mxu0 0.0
    %476 = vmatprep.subr.mxu0 0.0
    %477 = vmatpush1.msra.mxu0 0.0
    %478 = vmatprep.subr.mxu0 0.0
    %479 = vmatpush1.msra.mxu0 0.0
    %480 = vmatprep.subr.mxu0 0.0
    %481 = vmatpush1.msra.mxu0 0.0
    %482 = vmatprep.subr.mxu0 0.0
    %483 = vmatpush1.msra.mxu0 0.0
    %484 = vmatprep.subr.mxu0 0.0
    %485 = vmatpush1.msra.mxu0 0.0
    %486 = vmatprep.subr.mxu0 0.0
    %487 = vmatpush1.msra.mxu0 0.0
    %488 = vmatprep.subr.mxu0 0.0
    %489 = vmatpush1.msra.mxu0 0.0
    %490 = vmatprep.subr.mxu0 0.0
    %491 = vmatpush1.msra.mxu0 0.0
    %492 = vmatprep.subr.mxu0 0.0
    %493 = vmatpush1.msra.mxu0 0.0
    %494 = vmatprep.subr.mxu0 0.0
    %495 = vmatpush1.msra.mxu0 0.0
    %496 = vmatprep.subr.mxu0 0.0
    %497 = vmatpush1.msra.mxu0 0.0
    %498 = vmatprep.subr.mxu0 0.0
    %499 = vmatpush1.msra.mxu0 0.0
    %500 = vmatprep.subr.mxu0 0.0
    %501 = vmatpush1.msra.mxu0 0.0
    %502 = vmatprep.subr.mxu0 0.0
    %503 = vmatpush1.msra.mxu0 0.0
    %504 = vmatprep.subr.mxu0 0.0
    %505 = vmatpush1.msra.mxu0 0.0
    %506 = vmatprep.subr.mxu0 0.0
    %507 = vmatpush1.msra.mxu0 0.0
    %508 = vmatprep.subr.mxu0 0.0
    %509 = vmatpush1.msra.mxu0 0.0
    %510 = vmatprep.subr.mxu0 0.0
    %511 = vmatpush1.msra.mxu0 0.0
    %512 = vmatprep.subr.mxu0 0.0
    %513 = vmatpush1.msra.mxu0 0.0
    %514 = vmatprep.subr.mxu0 0.0
    %515 = vmatpush1.msra.mxu0 0.0
    %516 = vmatprep.mubr.f32.mxu0 0.0
    %517 = vmatmul.mubr.f32.gmra.mrb[0].mxu0 %v316
    %v518 = vpop.f32.mrb[0].mxu0
    %v519 = vadd.f32 %v305, %v518
    %v520 = vpop.f32.mrb[0].mxu0
    %v521 = vadd.f32 %v309, %v520
    %522 = vmatprep.mubr.f32.mxu0 0.0
    %523 = vmatmul.mubr.f32.gmra.mrb[0].mxu0 %v319
    %v524 = vpop.f32.mrb[0].mxu0
    %v525 = vadd.f32 %v305, %v524
    %v526 = vpop.f32.mrb[0].mxu0
    %v527 = vadd.f32 %v309, %v526
    %528 = vmatprep.mubr.f32.mxu0 0.0
    %529 = vmatmul.mubr.f32.gmra.mrb[0].mxu0 %v322
    %v530 = vpop.f32.mrb[0].mxu0
    %v531 = vadd.f32 %v305, %v530
    %v532 = vpop.f32.mrb[0].mxu0
    %v533 = vadd.f32 %v309, %v532
    %534 = vmatprep.mubr.f32.mxu0 0.0
    %535 = vmatmul.mubr.f32.gmra.mrb[0].mxu0 %v325
    %v536 = vpop.f32.mrb[0].mxu0
    %v537 = vadd.f32 %v305, %v536
    %v538 = vpop.f32.mrb[0].mxu0
    %v539 = vadd.f32 %v309, %v538
    %540 = vmatprep.mubr.f32.mxu0 0.0
    %541 = vmatmul.mubr.f32.gmra.mrb[0].mxu0 %v328
    %v542 = vpop.f32.mrb[0].mxu0
    %v543 = vadd.f32 %v305, %v542
    %v544 = vpop.f32.mrb[0].mxu0
    %v545 = vadd.f32 %v309, %v544
    %546 = vmatprep.mubr.f32.mxu0 0.0
    %547 = vmatmul.mubr.f32.gmra.mrb[0].mxu0 %v331
    %v548 = vpop.f32.mrb[0].mxu0
    %v549 = vadd.f32 %v305, %v548
    %v550 = vpop.f32.mrb[0].mxu0
    %v551 = vadd.f32 %v309, %v550
    %552 = vmatprep.mubr.f32.mxu0 0.0
    %553 = vmatmul.mubr.f32.gmra.mrb[0].mxu0 %v334
    %v554 = vpop.f32.mrb[0].mxu0
    %v555 = vadd.f32 %v305, %v554
    %v556 = vpop.f32.mrb[0].mxu0
    %v557 = vadd.f32 %v309, %v556
    %558 = vmatprep.mubr.f32.mxu0 0.0
    %559 = vmatmul.mubr.f32.gmra.mrb[0].mxu0 %v337
    %v560 = vpop.f32.mrb[0].mxu0
    %v561 = vadd.f32 %v305, %v560
    %v562 = vpop.f32.mrb[0].mxu0
    %v563 = vadd.f32 %v309, %v562
    %564 = vdwg.mxu0
    %565 = vmatprep.subr.mxu0 %v75
    %566 = vmatpush1.msra.mxu0 %v74
    %567 = vmatprep.subr.mxu0 %v79
    %568 = vmatpush1.msra.mxu0 %v78
    %569 = vmatprep.subr.mxu0 %v83
    %570 = vmatpush1.msra.mxu0 %v82
    %571 = vmatprep.subr.mxu0 %v87
    %572 = vmatpush1.msra.mxu0 %v86
    %573 = vmatprep.subr.mxu0 %v91
    %574 = vmatpush1.msra.mxu0 %v90
    %575 = vmatprep.subr.mxu0 %v95
    %576 = vmatpush1.msra.mxu0 %v94
    %577 = vmatprep.subr.mxu0 %v99
    %578 = vmatpush1.msra.mxu0 %v98
    %579 = vmatprep.subr.mxu0 %v103
    %580 = vmatpush1.msra.mxu0 %v102
    %581 = vmatprep.subr.mxu0 %v107
    %582 = vmatpush1.msra.mxu0 %v106
    %583 = vmatprep.subr.mxu0 %v111
    %584 = vmatpush1.msra.mxu0 %v110
    %585 = vmatprep.subr.mxu0 %v115
    %586 = vmatpush1.msra.mxu0 %v114
    %587 = vmatprep.subr.mxu0 %v119
    %588 = vmatpush1.msra.mxu0 %v118
    %589 = vmatprep.subr.mxu0 %v123
    %590 = vmatpush1.msra.mxu0 %v122
    %591 = vmatprep.subr.mxu0 %v127
    %592 = vmatpush1.msra.mxu0 %v126
    %593 = vmatprep.subr.mxu0 %v131
    %594 = vmatpush1.msra.mxu0 %v130
    %595 = vmatprep.subr.mxu0 %v135
    %596 = vmatpush1.msra.mxu0 %v134
    %597 = vmatprep.subr.mxu0 0.0
    %598 = vmatpush1.msra.mxu0 0.0
    %599 = vmatprep.subr.mxu0 0.0
    %600 = vmatpush1.msra.mxu0 0.0
    %601 = vmatprep.subr.mxu0 0.0
    %602 = vmatpush1.msra.mxu0 0.0
    %603 = vmatprep.subr.mxu0 0.0
    %604 = vmatpush1.msra.mxu0 0.0
    %605 = vmatprep.subr.mxu0 0.0
    %606 = vmatpush1.msra.mxu0 0.0
    %607 = vmatprep.subr.mxu0 0.0
    %608 = vmatpush1.msra.mxu0 0.0
    %609 = vmatprep.subr.mxu0 0.0
    %610 = vmatpush1.msra.mxu0 0.0
    %611 = vmatprep.subr.mxu0 0.0
    %612 = vmatpush1.msra.mxu0 0.0
    %613 = vmatprep.subr.mxu0 0.0
    %614 = vmatpush1.msra.mxu0 0.0
    %615 = vmatprep.subr.mxu0 0.0
    %616 = vmatpush1.msra.mxu0 0.0
    %617 = vmatprep.subr.mxu0 0.0
    %618 = vmatpush1.msra.mxu0 0.0
    %619 = vmatprep.subr.mxu0 0.0
    %620 = vmatpush1.msra.mxu0 0.0
    %621 = vmatprep.subr.mxu0 0.0
    %622 = vmatpush1.msra.mxu0 0.0
    %623 = vmatprep.subr.mxu0 0.0
    %624 = vmatpush1.msra.mxu0 0.0
    %625 = vmatprep.subr.mxu0 0.0
    %626 = vmatpush1.msra.mxu0 0.0
    %627 = vmatprep.subr.mxu0 0.0
    %628 = vmatpush1.msra.mxu0 0.0
    %629 = vmatprep.mubr.f32.mxu0 0.0
    %630 = vmatmul.mubr.f32.gmra.mrb[0].mxu0 0.0
    %v631 = vpop.f32.mrb[0].mxu0
    %v632 = vadd.f32 0.0, %v631
    %v633 = vpop.f32.mrb[0].mxu0
    %v634 = vadd.f32 0.0, %v633
    %635 = vdwg.mxu0
    %636 = vmatprep.subr.mxu0 %v77
    %637 = vmatpush1.msra.mxu0 %v76
    %638 = vmatprep.subr.mxu0 %v81
    %639 = vmatpush1.msra.mxu0 %v80
    %640 = vmatprep.subr.mxu0 %v85
    %641 = vmatpush1.msra.mxu0 %v84
    %642 = vmatprep.subr.mxu0 %v89
    %643 = vmatpush1.msra.mxu0 %v88
    %644 = vmatprep.subr.mxu0 %v93
    %645 = vmatpush1.msra.mxu0 %v92
    %646 = vmatprep.subr.mxu0 %v97
    %647 = vmatpush1.msra.mxu0 %v96
    %648 = vmatprep.subr.mxu0 %v101
    %649 = vmatpush1.msra.mxu0 %v100
    %650 = vmatprep.subr.mxu0 %v105
    %651 = vmatpush1.msra.mxu0 %v104
    %652 = vmatprep.subr.mxu0 %v109
    %653 = vmatpush1.msra.mxu0 %v108
    %654 = vmatprep.subr.mxu0 %v113
    %655 = vmatpush1.msra.mxu0 %v112
    %656 = vmatprep.subr.mxu0 %v117
    %657 = vmatpush1.msra.mxu0 %v116
    %658 = vmatprep.subr.mxu0 %v121
    %659 = vmatpush1.msra.mxu0 %v120
    %660 = vmatprep.subr.mxu0 %v125
    %661 = vmatpush1.msra.mxu0 %v124
    %662 = vmatprep.subr.mxu0 %v129
    %663 = vmatpush1.msra.mxu0 %v128
    %664 = vmatprep.subr.mxu0 %v133
    %665 = vmatpush1.msra.mxu0 %v132
    %666 = vmatprep.subr.mxu0 %v137
    %667 = vmatpush1.msra.mxu0 %v136
    %668 = vmatprep.subr.mxu0 0.0
    %669 = vmatpush1.msra.mxu0 0.0
    %670 = vmatprep.subr.mxu0 0.0
    %671 = vmatpush1.msra.mxu0 0.0
    %672 = vmatprep.subr.mxu0 0.0
    %673 = vmatpush1.msra.mxu0 0.0
    %674 = vmatprep.subr.mxu0 0.0
    %675 = vmatpush1.msra.mxu0 0.0
    %676 = vmatprep.subr.mxu0 0.0
    %677 = vmatpush1.msra.mxu0 0.0
    %678 = vmatprep.subr.mxu0 0.0
    %679 = vmatpush1.msra.mxu0 0.0
    %680 = vmatprep.subr.mxu0 0.0
    %681 = vmatpush1.msra.mxu0 0.0
    %682 = vmatprep.subr.mxu0 0.0
    %683 = vmatpush1.msra.mxu0 0.0
    %684 = vmatprep.subr.mxu0 0.0
    %685 = vmatpush1.msra.mxu0 0.0
    %686 = vmatprep.subr.mxu0 0.0
    %687 = vmatpush1.msra.mxu0 0.0
    %688 = vmatprep.subr.mxu0 0.0
    %689 = vmatpush1.msra.mxu0 0.0
    %690 = vmatprep.subr.mxu0 0.0
    %691 = vmatpush1.msra.mxu0 0.0
    %692 = vmatprep.subr.mxu0 0.0
    %693 = vmatpush1.msra.mxu0 0.0
    %694 = vmatprep.subr.mxu0 0.0
    %695 = vmatpush1.msra.mxu0 0.0
    %696 = vmatprep.subr.mxu0 0.0
    %697 = vmatpush1.msra.mxu0 0.0
    %698 = vmatprep.subr.mxu0 0.0
    %699 = vmatpush1.msra.mxu0 0.0
    %700 = vmatprep.mubr.f32.mxu0 0.0
    %701 = vmatmul.mubr.f32.gmra.mrb[0].mxu0 0.0
    %v702 = vpop.f32.mrb[0].mxu0
    %v703 = vadd.f32 0.0, %v702
    %v704 = vpop.f32.mrb[0].mxu0
    %v705 = vadd.f32 0.0, %v704
    %706 = vdwg.mxu0
    %v707 = vadd.f32 %v406, %v632
    %v708 = vadd.f32 %v408, %v634
    %v709 = vadd.f32 %v519, %v703
    %v710 = vadd.f32 %v521, %v705
    %v711 = vxor.u32 %v707, 2147483648
    %v712 = vxor.u32 %v708, 2147483648
    %v713 = vxor.u32 %v709, 2147483648
    %v714 = vmul.f32 %v711, 1.442695
    %v715 = vpow.pop %v714
    %v716 = vmul.f32 %v712, 1.442695
    %v717 = vpow.pop %v716
    %v718 = vmul.f32 %v713, 1.442695
    %v719 = vpow.pop %v718
    %v720 = vadd.f32 %v715, 1.0
    %v721 = vadd.f32 %v717, 1.0
    %v722 = vadd.f32 %v719, 1.0
    %v723 = vrcp.pop %v720
    %v724 = vmul.f32 1.0, %v723
    %v725 = vrcp.pop %v721
    %v726 = vmul.f32 1.0, %v725
    %v727 = vrcp.pop %v722
    %v728 = vmul.f32 1.0, %v727
    %v729 = vtanh.pop %v710
    %v730 = vmul.f32 %v726, 0.0
    %v731 = vmul.f32 %v724, %v729
    %v732 = vadd.f32 %v730, %v731
    %v733 = vtanh.pop %v732
    %v734 = vmul.f32 %v728, %v733
    %v736 = vlaneseq
    %v737 = vshrl.u32 %v736, 7
    %v738 = vsub.s32 0, %v737
    %v739 = vrot.slane %v267, %v738
    %v740 = vlaneseq
    %v741 = vshrl.u32 %v740, 7
    %v742 = vsub.s32 1, %v741
    %v743 = vrot.slane %v267, %v742
    %v744 = vlaneseq
    %v745 = vshrl.u32 %v744, 7
    %v746 = vsub.s32 2, %v745
    %v747 = vrot.slane %v267, %v746
    %v748 = vlaneseq
    %v749 = vshrl.u32 %v748, 7
    %v750 = vsub.s32 3, %v749
    %v751 = vrot.slane %v267, %v750
    %756 = vmatprep.subr.mxu0 %v140
    %757 = vmatpush1.msra.mxu0 %v139
    %758 = vmatprep.subr.mxu0 %v144
    %759 = vmatpush1.msra.mxu0 %v143
    %760 = vmatprep.subr.mxu0 %v148
    %761 = vmatpush1.msra.mxu0 %v147
    %762 = vmatprep.subr.mxu0 %v152
    %763 = vmatpush1.msra.mxu0 %v151
    %764 = vmatprep.subr.mxu0 %v156
    %765 = vmatpush1.msra.mxu0 %v155
    %766 = vmatprep.subr.mxu0 %v160
    %767 = vmatpush1.msra.mxu0 %v159
    %768 = vmatprep.subr.mxu0 %v164
    %769 = vmatpush1.msra.mxu0 %v163
    %770 = vmatprep.subr.mxu0 %v168
    %771 = vmatpush1.msra.mxu0 %v167
    %772 = vmatprep.subr.mxu0 %v172
    %773 = vmatpush1.msra.mxu0 %v171
    %774 = vmatprep.subr.mxu0 %v176
    %775 = vmatpush1.msra.mxu0 %v175
    %776 = vmatprep.subr.mxu0 %v180
    %777 = vmatpush1.msra.mxu0 %v179
    %778 = vmatprep.subr.mxu0 %v184
    %779 = vmatpush1.msra.mxu0 %v183
    %780 = vmatprep.subr.mxu0 %v188
    %781 = vmatpush1.msra.mxu0 %v187
    %782 = vmatprep.subr.mxu0 %v192
    %783 = vmatpush1.msra.mxu0 %v191
    %784 = vmatprep.subr.mxu0 %v196
    %785 = vmatpush1.msra.mxu0 %v195
    %786 = vmatprep.subr.mxu0 %v200
    %787 = vmatpush1.msra.mxu0 %v199
    %788 = vmatprep.subr.mxu0 %v204
    %789 = vmatpush1.msra.mxu0 %v203
    %790 = vmatprep.subr.mxu0 %v208
    %791 = vmatpush1.msra.mxu0 %v207
    %792 = vmatprep.subr.mxu0 %v212
    %793 = vmatpush1.msra.mxu0 %v211
    %794 = vmatprep.subr.mxu0 %v216
    %795 = vmatpush1.msra.mxu0 %v215
    %796 = vmatprep.subr.mxu0 %v220
    %797 = vmatpush1.msra.mxu0 %v219
    %798 = vmatprep.subr.mxu0 %v224
    %799 = vmatpush1.msra.mxu0 %v223
    %800 = vmatprep.subr.mxu0 %v228
    %801 = vmatpush1.msra.mxu0 %v227
    %802 = vmatprep.subr.mxu0 %v232
    %803 = vmatpush1.msra.mxu0 %v231
    %804 = vmatprep.subr.mxu0 %v236
    %805 = vmatpush1.msra.mxu0 %v235
    %806 = vmatprep.subr.mxu0 %v240
    %807 = vmatpush1.msra.mxu0 %v239
    %808 = vmatprep.subr.mxu0 %v244
    %809 = vmatpush1.msra.mxu0 %v243
    %810 = vmatprep.subr.mxu0 %v248
    %811 = vmatpush1.msra.mxu0 %v247
    %812 = vmatprep.subr.mxu0 %v252
    %813 = vmatpush1.msra.mxu0 %v251
    %814 = vmatprep.subr.mxu0 %v256
    %815 = vmatpush1.msra.mxu0 %v255
    %816 = vmatprep.subr.mxu0 %v260
    %817 = vmatpush1.msra.mxu0 %v259
    %818 = vmatprep.subr.mxu0 %v264
    %819 = vmatpush1.msra.mxu0 %v263
    %820 = vmatprep.mubr.f32.mxu0 0.0
    %821 = vmatmul.mubr.f32.gmra.mrb[0].mxu0 %v734
    %v822 = vpop.f32.mrb[0].mxu0
    %v823 = vadd.f32 %v739, %v822
    %v824 = vpop.f32.mrb[0].mxu0
    %v825 = vadd.f32 %v743, %v824
    %826 = vdwg.mxu0
    %827 = vmatprep.subr.mxu0 %v142
    %828 = vmatpush1.msra.mxu0 %v141
    %829 = vmatprep.subr.mxu0 %v146
    %830 = vmatpush1.msra.mxu0 %v145
    %831 = vmatprep.subr.mxu0 %v150
    %832 = vmatpush1.msra.mxu0 %v149
    %833 = vmatprep.subr.mxu0 %v154
    %834 = vmatpush1.msra.mxu0 %v153
    %835 = vmatprep.subr.mxu0 %v158
    %836 = vmatpush1.msra.mxu0 %v157
    %837 = vmatprep.subr.mxu0 %v162
    %838 = vmatpush1.msra.mxu0 %v161
    %839 = vmatprep.subr.mxu0 %v166
    %840 = vmatpush1.msra.mxu0 %v165
    %841 = vmatprep.subr.mxu0 %v170
    %842 = vmatpush1.msra.mxu0 %v169
    %843 = vmatprep.subr.mxu0 %v174
    %844 = vmatpush1.msra.mxu0 %v173
    %845 = vmatprep.subr.mxu0 %v178
    %846 = vmatpush1.msra.mxu0 %v177
    %847 = vmatprep.subr.mxu0 %v182
    %848 = vmatpush1.msra.mxu0 %v181
    %849 = vmatprep.subr.mxu0 %v186
    %850 = vmatpush1.msra.mxu0 %v185
    %851 = vmatprep.subr.mxu0 %v190
    %852 = vmatpush1.msra.mxu0 %v189
    %853 = vmatprep.subr.mxu0 %v194
    %854 = vmatpush1.msra.mxu0 %v193
    %855 = vmatprep.subr.mxu0 %v198
    %856 = vmatpush1.msra.mxu0 %v197
    %857 = vmatprep.subr.mxu0 %v202
    %858 = vmatpush1.msra.mxu0 %v201
    %859 = vmatprep.subr.mxu0 %v206
    %860 = vmatpush1.msra.mxu0 %v205
    %861 = vmatprep.subr.mxu0 %v210
    %862 = vmatpush1.msra.mxu0 %v209
    %863 = vmatprep.subr.mxu0 %v214
    %864 = vmatpush1.msra.mxu0 %v213
    %865 = vmatprep.subr.mxu0 %v218
    %866 = vmatpush1.msra.mxu0 %v217
    %867 = vmatprep.subr.mxu0 %v222
    %868 = vmatpush1.msra.mxu0 %v221
    %869 = vmatprep.subr.mxu0 %v226
    %870 = vmatpush1.msra.mxu0 %v225
    %871 = vmatprep.subr.mxu0 %v230
    %872 = vmatpush1.msra.mxu0 %v229
    %873 = vmatprep.subr.mxu0 %v234
    %874 = vmatpush1.msra.mxu0 %v233
    %875 = vmatprep.subr.mxu0 %v238
    %876 = vmatpush1.msra.mxu0 %v237
    %877 = vmatprep.subr.mxu0 %v242
    %878 = vmatpush1.msra.mxu0 %v241
    %879 = vmatprep.subr.mxu0 %v246
    %880 = vmatpush1.msra.mxu0 %v245
    %881 = vmatprep.subr.mxu0 %v250
    %882 = vmatpush1.msra.mxu0 %v249
    %883 = vmatprep.subr.mxu0 %v254
    %884 = vmatpush1.msra.mxu0 %v253
    %885 = vmatprep.subr.mxu0 %v258
    %886 = vmatpush1.msra.mxu0 %v257
    %887 = vmatprep.subr.mxu0 %v262
    %888 = vmatpush1.msra.mxu0 %v261
    %889 = vmatprep.subr.mxu0 %v266
    %890 = vmatpush1.msra.mxu0 %v265
    %891 = vmatprep.mubr.f32.mxu0 0.0
    %892 = vmatmul.mubr.f32.gmra.mrb[0].mxu0 %v734
    %v893 = vpop.f32.mrb[0].mxu0
    %v894 = vadd.f32 %v747, %v893
    %v895 = vpop.f32.mrb[0].mxu0
    %v896 = vadd.f32 %v751, %v895
    %897 = vdwg.mxu0
    %v898 = vxor.u32 %v823, 2147483648
    %v899 = vxor.u32 %v825, 2147483648
    %v900 = vxor.u32 %v894, 2147483648
    %v901 = vmul.f32 %v898, 1.442695
    %v902 = vpow.pop %v901
    %v903 = vmul.f32 %v899, 1.442695
    %v904 = vpow.pop %v903
    %v905 = vmul.f32 %v900, 1.442695
    %v906 = vpow.pop %v905
    %v907 = vadd.f32 %v902, 1.0
    %v908 = vadd.f32 %v904, 1.0
    %v909 = vadd.f32 %v906, 1.0
    %v910 = vrcp.pop %v907
    %v911 = vmul.f32 1.0, %v910
    %v912 = vrcp.pop %v908
    %v913 = vmul.f32 1.0, %v912
    %v914 = vrcp.pop %v909
    %v915 = vmul.f32 1.0, %v914
    %v916 = vtanh.pop %v896
    %v917 = vmul.f32 %v913, 0.0
    %v918 = vmul.f32 %v911, %v916
    %v919 = vadd.f32 %v917, %v918
    %v920 = vtanh.pop %v919
    %v921 = vmul.f32 %v915, %v920
    %922 = vmatprep.subr.mxu0 %v75
    %923 = vmatpush1.msra.mxu0 %v74
    %924 = vmatprep.subr.mxu0 %v79
    %925 = vmatpush1.msra.mxu0 %v78
    %926 = vmatprep.subr.mxu0 %v83
    %927 = vmatpush1.msra.mxu0 %v82
    %928 = vmatprep.subr.mxu0 %v87
    %929 = vmatpush1.msra.mxu0 %v86
    %930 = vmatprep.subr.mxu0 %v91
    %931 = vmatpush1.msra.mxu0 %v90
    %932 = vmatprep.subr.mxu0 %v95
    %933 = vmatpush1.msra.mxu0 %v94
    %934 = vmatprep.subr.mxu0 %v99
    %935 = vmatpush1.msra.mxu0 %v98
    %936 = vmatprep.subr.mxu0 %v103
    %937 = vmatpush1.msra.mxu0 %v102
    %938 = vmatprep.subr.mxu0 %v107
    %939 = vmatpush1.msra.mxu0 %v106
    %940 = vmatprep.subr.mxu0 %v111
    %941 = vmatpush1.msra.mxu0 %v110
    %942 = vmatprep.subr.mxu0 %v115
    %943 = vmatpush1.msra.mxu0 %v114
    %944 = vmatprep.subr.mxu0 %v119
    %945 = vmatpush1.msra.mxu0 %v118
    %946 = vmatprep.subr.mxu0 %v123
    %947 = vmatpush1.msra.mxu0 %v122
    %948 = vmatprep.subr.mxu0 %v127
    %949 = vmatpush1.msra.mxu0 %v126
    %950 = vmatprep.subr.mxu0 %v131
    %951 = vmatpush1.msra.mxu0 %v130
    %952 = vmatprep.subr.mxu0 %v135
    %953 = vmatpush1.msra.mxu0 %v134
    %954 = vmatprep.subr.mxu0 0.0
    %955 = vmatpush1.msra.mxu0 0.0
    %956 = vmatprep.subr.mxu0 0.0
    %957 = vmatpush1.msra.mxu0 0.0
    %958 = vmatprep.subr.mxu0 0.0
    %959 = vmatpush1.msra.mxu0 0.0
    %960 = vmatprep.subr.mxu0 0.0
    %961 = vmatpush1.msra.mxu0 0.0
    %962 = vmatprep.subr.mxu0 0.0
    %963 = vmatpush1.msra.mxu0 0.0
    %964 = vmatprep.subr.mxu0 0.0
    %965 = vmatpush1.msra.mxu0 0.0
    %966 = vmatprep.subr.mxu0 0.0
    %967 = vmatpush1.msra.mxu0 0.0
    %968 = vmatprep.subr.mxu0 0.0
    %969 = vmatpush1.msra.mxu0 0.0
    %970 = vmatprep.subr.mxu0 0.0
    %971 = vmatpush1.msra.mxu0 0.0
    %972 = vmatprep.subr.mxu0 0.0
    %973 = vmatpush1.msra.mxu0 0.0
    %974 = vmatprep.subr.mxu0 0.0
    %975 = vmatpush1.msra.mxu0 0.0
    %976 = vmatprep.subr.mxu0 0.0
    %977 = vmatpush1.msra.mxu0 0.0
    %978 = vmatprep.subr.mxu0 0.0
    %979 = vmatpush1.msra.mxu0 0.0
    %980 = vmatprep.subr.mxu0 0.0
    %981 = vmatpush1.msra.mxu0 0.0
    %982 = vmatprep.subr.mxu0 0.0
    %983 = vmatpush1.msra.mxu0 0.0
    %984 = vmatprep.subr.mxu0 0.0
    %985 = vmatpush1.msra.mxu0 0.0
    %986 = vmatprep.mubr.f32.mxu0 0.0
    %987 = vmatmul.mubr.f32.gmra.mrb[0].mxu0 %v734
    %v988 = vpop.f32.mrb[0].mxu0
    %v989 = vadd.f32 0.0, %v988
    %v990 = vpop.f32.mrb[0].mxu0
    %v991 = vadd.f32 0.0, %v990
    %992 = vdwg.mxu0
    %993 = vmatprep.subr.mxu0 %v77
    %994 = vmatpush1.msra.mxu0 %v76
    %995 = vmatprep.subr.mxu0 %v81
    %996 = vmatpush1.msra.mxu0 %v80
    %997 = vmatprep.subr.mxu0 %v85
    %998 = vmatpush1.msra.mxu0 %v84
    %999 = vmatprep.subr.mxu0 %v89
    %1000 = vmatpush1.msra.mxu0 %v88
    %1001 = vmatprep.subr.mxu0 %v93
    %1002 = vmatpush1.msra.mxu0 %v92
    %1003 = vmatprep.subr.mxu0 %v97
    %1004 = vmatpush1.msra.mxu0 %v96
    %1005 = vmatprep.subr.mxu0 %v101
    %1006 = vmatpush1.msra.mxu0 %v100
    %1007 = vmatprep.subr.mxu0 %v105
    %1008 = vmatpush1.msra.mxu0 %v104
    %1009 = vmatprep.subr.mxu0 %v109
    %1010 = vmatpush1.msra.mxu0 %v108
    %1011 = vmatprep.subr.mxu0 %v113
    %1012 = vmatpush1.msra.mxu0 %v112
    %1013 = vmatprep.subr.mxu0 %v117
    %1014 = vmatpush1.msra.mxu0 %v116
    %1015 = vmatprep.subr.mxu0 %v121
    %1016 = vmatpush1.msra.mxu0 %v120
    %1017 = vmatprep.subr.mxu0 %v125
    %1018 = vmatpush1.msra.mxu0 %v124
    %1019 = vmatprep.subr.mxu0 %v129
    %1020 = vmatpush1.msra.mxu0 %v128
    %1021 = vmatprep.subr.mxu0 %v133
    %1022 = vmatpush1.msra.mxu0 %v132
    %1023 = vmatprep.subr.mxu0 %v137
    %1024 = vmatpush1.msra.mxu0 %v136
    %1025 = vmatprep.subr.mxu0 0.0
    %1026 = vmatpush1.msra.mxu0 0.0
    %1027 = vmatprep.subr.mxu0 0.0
    %1028 = vmatpush1.msra.mxu0 0.0
    %1029 = vmatprep.subr.mxu0 0.0
    %1030 = vmatpush1.msra.mxu0 0.0
    %1031 = vmatprep.subr.mxu0 0.0
    %1032 = vmatpush1.msra.mxu0 0.0
    %1033 = vmatprep.subr.mxu0 0.0
    %1034 = vmatpush1.msra.mxu0 0.0
    %1035 = vmatprep.subr.mxu0 0.0
    %1036 = vmatpush1.msra.mxu0 0.0
    %1037 = vmatprep.subr.mxu0 0.0
    %1038 = vmatpush1.msra.mxu0 0.0
    %1039 = vmatprep.subr.mxu0 0.0
    %1040 = vmatpush1.msra.mxu0 0.0
    %1041 = vmatprep.subr.mxu0 0.0
    %1042 = vmatpush1.msra.mxu0 0.0
    %1043 = vmatprep.subr.mxu0 0.0
    %1044 = vmatpush1.msra.mxu0 0.0
    %1045 = vmatprep.subr.mxu0 0.0
    %1046 = vmatpush1.msra.mxu0 0.0
    %1047 = vmatprep.subr.mxu0 0.0
    %1048 = vmatpush1.msra.mxu0 0.0
    %1049 = vmatprep.subr.mxu0 0.0
    %1050 = vmatpush1.msra.mxu0 0.0
    %1051 = vmatprep.subr.mxu0 0.0
    %1052 = vmatpush1.msra.mxu0 0.0
    %1053 = vmatprep.subr.mxu0 0.0
    %1054 = vmatpush1.msra.mxu0 0.0
    %1055 = vmatprep.subr.mxu0 0.0
    %1056 = vmatpush1.msra.mxu0 0.0
    %1057 = vmatprep.mubr.f32.mxu0 0.0
    %1058 = vmatmul.mubr.f32.gmra.mrb[0].mxu0 %v734
    %v1059 = vpop.f32.mrb[0].mxu0
    %v1060 = vadd.f32 0.0, %v1059
    %v1061 = vpop.f32.mrb[0].mxu0
    %v1062 = vadd.f32 0.0, %v1061
    %1063 = vdwg.mxu0
    %v1064 = vadd.f32 %v412, %v989
    %v1065 = vadd.f32 %v414, %v991
    %v1066 = vadd.f32 %v525, %v1060
    %v1067 = vadd.f32 %v527, %v1062
    %v1068 = vxor.u32 %v1064, 2147483648
    %v1069 = vxor.u32 %v1065, 2147483648
    %v1070 = vxor.u32 %v1066, 2147483648
    %v1071 = vmul.f32 %v1068, 1.442695
    %v1072 = vpow.pop %v1071
    %v1073 = vmul.f32 %v1069, 1.442695
    %v1074 = vpow.pop %v1073
    %v1075 = vmul.f32 %v1070, 1.442695
    %v1076 = vpow.pop %v1075
    %v1077 = vadd.f32 %v1072, 1.0
    %v1078 = vadd.f32 %v1074, 1.0
    %v1079 = vadd.f32 %v1076, 1.0
    %v1080 = vrcp.pop %v1077
    %v1081 = vmul.f32 1.0, %v1080
    %v1082 = vrcp.pop %v1078
    %v1083 = vmul.f32 1.0, %v1082
    %v1084 = vrcp.pop %v1079
    %v1085 = vmul.f32 1.0, %v1084
    %v1086 = vtanh.pop %v1067
    %v1087 = vmul.f32 %v1083, %v732
    %v1088 = vmul.f32 %v1081, %v1086
    %v1089 = vadd.f32 %v1087, %v1088
    %v1090 = vtanh.pop %v1089
    %v1091 = vmul.f32 %v1085, %v1090
    %1092 = vmatprep.subr.mxu0 %v140
    %1093 = vmatpush1.msra.mxu0 %v139
    %1094 = vmatprep.subr.mxu0 %v144
    %1095 = vmatpush1.msra.mxu0 %v143
    %1096 = vmatprep.subr.mxu0 %v148
    %1097 = vmatpush1.msra.mxu0 %v147
    %1098 = vmatprep.subr.mxu0 %v152
    %1099 = vmatpush1.msra.mxu0 %v151
    %1100 = vmatprep.subr.mxu0 %v156
    %1101 = vmatpush1.msra.mxu0 %v155
    %1102 = vmatprep.subr.mxu0 %v160
    %1103 = vmatpush1.msra.mxu0 %v159
    %1104 = vmatprep.subr.mxu0 %v164
    %1105 = vmatpush1.msra.mxu0 %v163
    %1106 = vmatprep.subr.mxu0 %v168
    %1107 = vmatpush1.msra.mxu0 %v167
    %1108 = vmatprep.subr.mxu0 %v172
    %1109 = vmatpush1.msra.mxu0 %v171
    %1110 = vmatprep.subr.mxu0 %v176
    %1111 = vmatpush1.msra.mxu0 %v175
    %1112 = vmatprep.subr.mxu0 %v180
    %1113 = vmatpush1.msra.mxu0 %v179
    %1114 = vmatprep.subr.mxu0 %v184
    %1115 = vmatpush1.msra.mxu0 %v183
    %1116 = vmatprep.subr.mxu0 %v188
    %1117 = vmatpush1.msra.mxu0 %v187
    %1118 = vmatprep.subr.mxu0 %v192
    %1119 = vmatpush1.msra.mxu0 %v191
    %1120 = vmatprep.subr.mxu0 %v196
    %1121 = vmatpush1.msra.mxu0 %v195
    %1122 = vmatprep.subr.mxu0 %v200
    %1123 = vmatpush1.msra.mxu0 %v199
    %1124 = vmatprep.subr.mxu0 %v204
    %1125 = vmatpush1.msra.mxu0 %v203
    %1126 = vmatprep.subr.mxu0 %v208
    %1127 = vmatpush1.msra.mxu0 %v207
    %1128 = vmatprep.subr.mxu0 %v212
    %1129 = vmatpush1.msra.mxu0 %v211
    %1130 = vmatprep.subr.mxu0 %v216
    %1131 = vmatpush1.msra.mxu0 %v215
    %1132 = vmatprep.subr.mxu0 %v220
    %1133 = vmatpush1.msra.mxu0 %v219
    %1134 = vmatprep.subr.mxu0 %v224
    %1135 = vmatpush1.msra.mxu0 %v223
    %1136 = vmatprep.subr.mxu0 %v228
    %1137 = vmatpush1.msra.mxu0 %v227
    %1138 = vmatprep.subr.mxu0 %v232
    %1139 = vmatpush1.msra.mxu0 %v231
    %1140 = vmatprep.subr.mxu0 %v236
    %1141 = vmatpush1.msra.mxu0 %v235
    %1142 = vmatprep.subr.mxu0 %v240
    %1143 = vmatpush1.msra.mxu0 %v239
    %1144 = vmatprep.subr.mxu0 %v244
    %1145 = vmatpush1.msra.mxu0 %v243
    %1146 = vmatprep.subr.mxu0 %v248
    %1147 = vmatpush1.msra.mxu0 %v247
    %1148 = vmatprep.subr.mxu0 %v252
    %1149 = vmatpush1.msra.mxu0 %v251
    %1150 = vmatprep.subr.mxu0 %v256
    %1151 = vmatpush1.msra.mxu0 %v255
    %1152 = vmatprep.subr.mxu0 %v260
    %1153 = vmatpush1.msra.mxu0 %v259
    %1154 = vmatprep.subr.mxu0 %v264
    %1155 = vmatpush1.msra.mxu0 %v263
    %1156 = vmatprep.mubr.f32.mxu0 %v921
    %1157 = vmatmul.mubr.f32.gmra.mrb[0].mxu0 %v1091
    %v1158 = vpop.f32.mrb[0].mxu0
    %v1159 = vadd.f32 %v739, %v1158
    %v1160 = vpop.f32.mrb[0].mxu0
    %v1161 = vadd.f32 %v743, %v1160
    %1162 = vdwg.mxu0
    %1163 = vmatprep.subr.mxu0 %v142
    %1164 = vmatpush1.msra.mxu0 %v141
    %1165 = vmatprep.subr.mxu0 %v146
    %1166 = vmatpush1.msra.mxu0 %v145
    %1167 = vmatprep.subr.mxu0 %v150
    %1168 = vmatpush1.msra.mxu0 %v149
    %1169 = vmatprep.subr.mxu0 %v154
    %1170 = vmatpush1.msra.mxu0 %v153
    %1171 = vmatprep.subr.mxu0 %v158
    %1172 = vmatpush1.msra.mxu0 %v157
    %1173 = vmatprep.subr.mxu0 %v162
    %1174 = vmatpush1.msra.mxu0 %v161
    %1175 = vmatprep.subr.mxu0 %v166
    %1176 = vmatpush1.msra.mxu0 %v165
    %1177 = vmatprep.subr.mxu0 %v170
    %1178 = vmatpush1.msra.mxu0 %v169
    %1179 = vmatprep.subr.mxu0 %v174
    %1180 = vmatpush1.msra.mxu0 %v173
    %1181 = vmatprep.subr.mxu0 %v178
    %1182 = vmatpush1.msra.mxu0 %v177
    %1183 = vmatprep.subr.mxu0 %v182
    %1184 = vmatpush1.msra.mxu0 %v181
    %1185 = vmatprep.subr.mxu0 %v186
    %1186 = vmatpush1.msra.mxu0 %v185
    %1187 = vmatprep.subr.mxu0 %v190
    %1188 = vmatpush1.msra.mxu0 %v189
    %1189 = vmatprep.subr.mxu0 %v194
    %1190 = vmatpush1.msra.mxu0 %v193
    %1191 = vmatprep.subr.mxu0 %v198
    %1192 = vmatpush1.msra.mxu0 %v197
    %1193 = vmatprep.subr.mxu0 %v202
    %1194 = vmatpush1.msra.mxu0 %v201
    %1195 = vmatprep.subr.mxu0 %v206
    %1196 = vmatpush1.msra.mxu0 %v205
    %1197 = vmatprep.subr.mxu0 %v210
    %1198 = vmatpush1.msra.mxu0 %v209
    %1199 = vmatprep.subr.mxu0 %v214
    %1200 = vmatpush1.msra.mxu0 %v213
    %1201 = vmatprep.subr.mxu0 %v218
    %1202 = vmatpush1.msra.mxu0 %v217
    %1203 = vmatprep.subr.mxu0 %v222
    %1204 = vmatpush1.msra.mxu0 %v221
    %1205 = vmatprep.subr.mxu0 %v226
    %1206 = vmatpush1.msra.mxu0 %v225
    %1207 = vmatprep.subr.mxu0 %v230
    %1208 = vmatpush1.msra.mxu0 %v229
    %1209 = vmatprep.subr.mxu0 %v234
    %1210 = vmatpush1.msra.mxu0 %v233
    %1211 = vmatprep.subr.mxu0 %v238
    %1212 = vmatpush1.msra.mxu0 %v237
    %1213 = vmatprep.subr.mxu0 %v242
    %1214 = vmatpush1.msra.mxu0 %v241
    %1215 = vmatprep.subr.mxu0 %v246
    %1216 = vmatpush1.msra.mxu0 %v245
    %1217 = vmatprep.subr.mxu0 %v250
    %1218 = vmatpush1.msra.mxu0 %v249
    %1219 = vmatprep.subr.mxu0 %v254
    %1220 = vmatpush1.msra.mxu0 %v253
    %1221 = vmatprep.subr.mxu0 %v258
    %1222 = vmatpush1.msra.mxu0 %v257
    %1223 = vmatprep.subr.mxu0 %v262
    %1224 = vmatpush1.msra.mxu0 %v261
    %1225 = vmatprep.subr.mxu0 %v266
    %1226 = vmatpush1.msra.mxu0 %v265
    %1227 = vmatprep.mubr.f32.mxu0 %v921
    %1228 = vmatmul.mubr.f32.gmra.mrb[0].mxu0 %v1091
    %v1229 = vpop.f32.mrb[0].mxu0
    %v1230 = vadd.f32 %v747, %v1229
    %v1231 = vpop.f32.mrb[0].mxu0
    %v1232 = vadd.f32 %v751, %v1231
    %1233 = vdwg.mxu0
    %v1234 = vxor.u32 %v1159, 2147483648
    %v1235 = vxor.u32 %v1161, 2147483648
    %v1236 = vxor.u32 %v1230, 2147483648
    %v1237 = vmul.f32 %v1234, 1.442695
    %v1238 = vpow.pop %v1237
    %v1239 = vmul.f32 %v1235, 1.442695
    %v1240 = vpow.pop %v1239
    %v1241 = vmul.f32 %v1236, 1.442695
    %v1242 = vpow.pop %v1241
    %v1243 = vadd.f32 %v1238, 1.0
    %v1244 = vadd.f32 %v1240, 1.0
    %v1245 = vadd.f32 %v1242, 1.0
    %v1246 = vrcp.pop %v1243
    %v1247 = vmul.f32 1.0, %v1246
    %v1248 = vrcp.pop %v1244
    %v1249 = vmul.f32 1.0, %v1248
    %v1250 = vrcp.pop %v1245
    %v1251 = vmul.f32 1.0, %v1250
    %v1252 = vtanh.pop %v1232
    %v1253 = vmul.f32 %v1249, %v919
    %v1254 = vmul.f32 %v1247, %v1252
    %v1255 = vadd.f32 %v1253, %v1254
    %v1256 = vtanh.pop %v1255
    %v1257 = vmul.f32 %v1251, %v1256
    %1258 = vmatprep.subr.mxu0 %v75
    %1259 = vmatpush1.msra.mxu0 %v74
    %1260 = vmatprep.subr.mxu0 %v79
    %1261 = vmatpush1.msra.mxu0 %v78
    %1262 = vmatprep.subr.mxu0 %v83
    %1263 = vmatpush1.msra.mxu0 %v82
    %1264 = vmatprep.subr.mxu0 %v87
    %1265 = vmatpush1.msra.mxu0 %v86
    %1266 = vmatprep.subr.mxu0 %v91
    %1267 = vmatpush1.msra.mxu0 %v90
    %1268 = vmatprep.subr.mxu0 %v95
    %1269 = vmatpush1.msra.mxu0 %v94
    %1270 = vmatprep.subr.mxu0 %v99
    %1271 = vmatpush1.msra.mxu0 %v98
    %1272 = vmatprep.subr.mxu0 %v103
    %1273 = vmatpush1.msra.mxu0 %v102
    %1274 = vmatprep.subr.mxu0 %v107
    %1275 = vmatpush1.msra.mxu0 %v106
    %1276 = vmatprep.subr.mxu0 %v111
    %1277 = vmatpush1.msra.mxu0 %v110
    %1278 = vmatprep.subr.mxu0 %v115
    %1279 = vmatpush1.msra.mxu0 %v114
    %1280 = vmatprep.subr.mxu0 %v119
    %1281 = vmatpush1.msra.mxu0 %v118
    %1282 = vmatprep.subr.mxu0 %v123
    %1283 = vmatpush1.msra.mxu0 %v122
    %1284 = vmatprep.subr.mxu0 %v127
    %1285 = vmatpush1.msra.mxu0 %v126
    %1286 = vmatprep.subr.mxu0 %v131
    %1287 = vmatpush1.msra.mxu0 %v130
    %1288 = vmatprep.subr.mxu0 %v135
    %1289 = vmatpush1.msra.mxu0 %v134
    %1290 = vmatprep.subr.mxu0 0.0
    %1291 = vmatpush1.msra.mxu0 0.0
    %1292 = vmatprep.subr.mxu0 0.0
    %1293 = vmatpush1.msra.mxu0 0.0
    %1294 = vmatprep.subr.mxu0 0.0
    %1295 = vmatpush1.msra.mxu0 0.0
    %1296 = vmatprep.subr.mxu0 0.0
    %1297 = vmatpush1.msra.mxu0 0.0
    %1298 = vmatprep.subr.mxu0 0.0
    %1299 = vmatpush1.msra.mxu0 0.0
    %1300 = vmatprep.subr.mxu0 0.0
    %1301 = vmatpush1.msra.mxu0 0.0
    %1302 = vmatprep.subr.mxu0 0.0
    %1303 = vmatpush1.msra.mxu0 0.0
    %1304 = vmatprep.subr.mxu0 0.0
    %1305 = vmatpush1.msra.mxu0 0.0
    %1306 = vmatprep.subr.mxu0 0.0
    %1307 = vmatpush1.msra.mxu0 0.0
    %1308 = vmatprep.subr.mxu0 0.0
    %1309 = vmatpush1.msra.mxu0 0.0
    %1310 = vmatprep.subr.mxu0 0.0
    %1311 = vmatpush1.msra.mxu0 0.0
    %1312 = vmatprep.subr.mxu0 0.0
    %1313 = vmatpush1.msra.mxu0 0.0
    %1314 = vmatprep.subr.mxu0 0.0
    %1315 = vmatpush1.msra.mxu0 0.0
    %1316 = vmatprep.subr.mxu0 0.0
    %1317 = vmatpush1.msra.mxu0 0.0
    %1318 = vmatprep.subr.mxu0 0.0
    %1319 = vmatpush1.msra.mxu0 0.0
    %1320 = vmatprep.subr.mxu0 0.0
    %1321 = vmatpush1.msra.mxu0 0.0
    %1322 = vmatprep.mubr.f32.mxu0 0.0
    %1323 = vmatmul.mubr.f32.gmra.mrb[0].mxu0 %v1091
    %v1324 = vpop.f32.mrb[0].mxu0
    %v1325 = vadd.f32 0.0, %v1324
    %v1326 = vpop.f32.mrb[0].mxu0
    %v1327 = vadd.f32 0.0, %v1326
    %1328 = vdwg.mxu0
    %1329 = vmatprep.subr.mxu0 %v77
    %1330 = vmatpush1.msra.mxu0 %v76
    %1331 = vmatprep.subr.mxu0 %v81
    %1332 = vmatpush1.msra.mxu0 %v80
    %1333 = vmatprep.subr.mxu0 %v85
    %1334 = vmatpush1.msra.mxu0 %v84
    %1335 = vmatprep.subr.mxu0 %v89
    %1336 = vmatpush1.msra.mxu0 %v88
    %1337 = vmatprep.subr.mxu0 %v93
    %1338 = vmatpush1.msra.mxu0 %v92
    %1339 = vmatprep.subr.mxu0 %v97
    %1340 = vmatpush1.msra.mxu0 %v96
    %1341 = vmatprep.subr.mxu0 %v101
    %1342 = vmatpush1.msra.mxu0 %v100
    %1343 = vmatprep.subr.mxu0 %v105
    %1344 = vmatpush1.msra.mxu0 %v104
    %1345 = vmatprep.subr.mxu0 %v109
    %1346 = vmatpush1.msra.mxu0 %v108
    %1347 = vmatprep.subr.mxu0 %v113
    %1348 = vmatpush1.msra.mxu0 %v112
    %1349 = vmatprep.subr.mxu0 %v117
    %1350 = vmatpush1.msra.mxu0 %v116
    %1351 = vmatprep.subr.mxu0 %v121
    %1352 = vmatpush1.msra.mxu0 %v120
    %1353 = vmatprep.subr.mxu0 %v125
    %1354 = vmatpush1.msra.mxu0 %v124
    %1355 = vmatprep.subr.mxu0 %v129
    %1356 = vmatpush1.msra.mxu0 %v128
    %1357 = vmatprep.subr.mxu0 %v133
    %1358 = vmatpush1.msra.mxu0 %v132
    %1359 = vmatprep.subr.mxu0 %v137
    %1360 = vmatpush1.msra.mxu0 %v136
    %1361 = vmatprep.subr.mxu0 0.0
    %1362 = vmatpush1.msra.mxu0 0.0
    %1363 = vmatprep.subr.mxu0 0.0
    %1364 = vmatpush1.msra.mxu0 0.0
    %1365 = vmatprep.subr.mxu0 0.0
    %1366 = vmatpush1.msra.mxu0 0.0
    %1367 = vmatprep.subr.mxu0 0.0
    %1368 = vmatpush1.msra.mxu0 0.0
    %1369 = vmatprep.subr.mxu0 0.0
    %1370 = vmatpush1.msra.mxu0 0.0
    %1371 = vmatprep.subr.mxu0 0.0
    %1372 = vmatpush1.msra.mxu0 0.0
    %1373 = vmatprep.subr.mxu0 0.0
    %1374 = vmatpush1.msra.mxu0 0.0
    %1375 = vmatprep.subr.mxu0 0.0
    %1376 = vmatpush1.msra.mxu0 0.0
    %1377 = vmatprep.subr.mxu0 0.0
    %1378 = vmatpush1.msra.mxu0 0.0
    %1379 = vmatprep.subr.mxu0 0.0
    %1380 = vmatpush1.msra.mxu0 0.0
    %1381 = vmatprep.subr.mxu0 0.0
    %1382 = vmatpush1.msra.mxu0 0.0
    %1383 = vmatprep.subr.mxu0 0.0
    %1384 = vmatpush1.msra.mxu0 0.0
    %1385 = vmatprep.subr.mxu0 0.0
    %1386 = vmatpush1.msra.mxu0 0.0
    %1387 = vmatprep.subr.mxu0 0.0
    %1388 = vmatpush1.msra.mxu0 0.0
    %1389 = vmatprep.subr.mxu0 0.0
    %1390 = vmatpush1.msra.mxu0 0.0
    %1391 = vmatprep.subr.mxu0 0.0
    %1392 = vmatpush1.msra.mxu0 0.0
    %1393 = vmatprep.mubr.f32.mxu0 0.0
    %1394 = vmatmul.mubr.f32.gmra.mrb[0].mxu0 %v1091
    %v1395 = vpop.f32.mrb[0].mxu0
    %v1396 = vadd.f32 0.0, %v1395
    %v1397 = vpop.f32.mrb[0].mxu0
    %v1398 = vadd.f32 0.0, %v1397
    %1399 = vdwg.mxu0
    %v1400 = vadd.f32 %v418, %v1325
    %v1401 = vadd.f32 %v420, %v1327
    %v1402 = vadd.f32 %v531, %v1396
    %v1403 = vadd.f32 %v533, %v1398
    %v1404 = vxor.u32 %v1400, 2147483648
    %v1405 = vxor.u32 %v1401, 2147483648
    %v1406 = vxor.u32 %v1402, 2147483648
    %v1407 = vmul.f32 %v1404, 1.442695
    %v1408 = vpow.pop %v1407
    %v1409 = vmul.f32 %v1405, 1.442695
    %v1410 = vpow.pop %v1409
    %v1411 = vmul.f32 %v1406, 1.442695
    %v1412 = vpow.pop %v1411
    %v1413 = vadd.f32 %v1408, 1.0
    %v1414 = vadd.f32 %v1410, 1.0
    %v1415 = vadd.f32 %v1412, 1.0
    %v1416 = vrcp.pop %v1413
    %v1417 = vmul.f32 1.0, %v1416
    %v1418 = vrcp.pop %v1414
    %v1419 = vmul.f32 1.0, %v1418
    %v1420 = vrcp.pop %v1415
    %v1421 = vmul.f32 1.0, %v1420
    %v1422 = vtanh.pop %v1403
    %v1423 = vmul.f32 %v1419, %v1089
    %v1424 = vmul.f32 %v1417, %v1422
    %v1425 = vadd.f32 %v1423, %v1424
    %v1426 = vtanh.pop %v1425
    %v1427 = vmul.f32 %v1421, %v1426
    %1428 = vmatprep.subr.mxu0 %v140
    %1429 = vmatpush1.msra.mxu0 %v139
    %1430 = vmatprep.subr.mxu0 %v144
    %1431 = vmatpush1.msra.mxu0 %v143
    %1432 = vmatprep.subr.mxu0 %v148
    %1433 = vmatpush1.msra.mxu0 %v147
    %1434 = vmatprep.subr.mxu0 %v152
    %1435 = vmatpush1.msra.mxu0 %v151
    %1436 = vmatprep.subr.mxu0 %v156
    %1437 = vmatpush1.msra.mxu0 %v155
    %1438 = vmatprep.subr.mxu0 %v160
    %1439 = vmatpush1.msra.mxu0 %v159
    %1440 = vmatprep.subr.mxu0 %v164
    %1441 = vmatpush1.msra.mxu0 %v163
    %1442 = vmatprep.subr.mxu0 %v168
    %1443 = vmatpush1.msra.mxu0 %v167
    %1444 = vmatprep.subr.mxu0 %v172
    %1445 = vmatpush1.msra.mxu0 %v171
    %1446 = vmatprep.subr.mxu0 %v176
    %1447 = vmatpush1.msra.mxu0 %v175
    %1448 = vmatprep.subr.mxu0 %v180
    %1449 = vmatpush1.msra.mxu0 %v179
    %1450 = vmatprep.subr.mxu0 %v184
    %1451 = vmatpush1.msra.mxu0 %v183
    %1452 = vmatprep.subr.mxu0 %v188
    %1453 = vmatpush1.msra.mxu0 %v187
    %1454 = vmatprep.subr.mxu0 %v192
    %1455 = vmatpush1.msra.mxu0 %v191
    %1456 = vmatprep.subr.mxu0 %v196
    %1457 = vmatpush1.msra.mxu0 %v195
    %1458 = vmatprep.subr.mxu0 %v200
    %1459 = vmatpush1.msra.mxu0 %v199
    %1460 = vmatprep.subr.mxu0 %v204
    %1461 = vmatpush1.msra.mxu0 %v203
    %1462 = vmatprep.subr.mxu0 %v208
    %1463 = vmatpush1.msra.mxu0 %v207
    %1464 = vmatprep.subr.mxu0 %v212
    %1465 = vmatpush1.msra.mxu0 %v211
    %1466 = vmatprep.subr.mxu0 %v216
    %1467 = vmatpush1.msra.mxu0 %v215
    %1468 = vmatprep.subr.mxu0 %v220
    %1469 = vmatpush1.msra.mxu0 %v219
    %1470 = vmatprep.subr.mxu0 %v224
    %1471 = vmatpush1.msra.mxu0 %v223
    %1472 = vmatprep.subr.mxu0 %v228
    %1473 = vmatpush1.msra.mxu0 %v227
    %1474 = vmatprep.subr.mxu0 %v232
    %1475 = vmatpush1.msra.mxu0 %v231
    %1476 = vmatprep.subr.mxu0 %v236
    %1477 = vmatpush1.msra.mxu0 %v235
    %1478 = vmatprep.subr.mxu0 %v240
    %1479 = vmatpush1.msra.mxu0 %v239
    %1480 = vmatprep.subr.mxu0 %v244
    %1481 = vmatpush1.msra.mxu0 %v243
    %1482 = vmatprep.subr.mxu0 %v248
    %1483 = vmatpush1.msra.mxu0 %v247
    %1484 = vmatprep.subr.mxu0 %v252
    %1485 = vmatpush1.msra.mxu0 %v251
    %1486 = vmatprep.subr.mxu0 %v256
    %1487 = vmatpush1.msra.mxu0 %v255
    %1488 = vmatprep.subr.mxu0 %v260
    %1489 = vmatpush1.msra.mxu0 %v259
    %1490 = vmatprep.subr.mxu0 %v264
    %1491 = vmatpush1.msra.mxu0 %v263
    %1492 = vmatprep.mubr.f32.mxu0 %v1257
    %1493 = vmatmul.mubr.f32.gmra.mrb[0].mxu0 %v1427
    %v1494 = vpop.f32.mrb[0].mxu0
    %v1495 = vadd.f32 %v739, %v1494
    %v1496 = vpop.f32.mrb[0].mxu0
    %v1497 = vadd.f32 %v743, %v1496
    %1498 = vdwg.mxu0
    %1499 = vmatprep.subr.mxu0 %v142
    %1500 = vmatpush1.msra.mxu0 %v141
    %1501 = vmatprep.subr.mxu0 %v146
    %1502 = vmatpush1.msra.mxu0 %v145
    %1503 = vmatprep.subr.mxu0 %v150
    %1504 = vmatpush1.msra.mxu0 %v149
    %1505 = vmatprep.subr.mxu0 %v154
    %1506 = vmatpush1.msra.mxu0 %v153
    %1507 = vmatprep.subr.mxu0 %v158
    %1508 = vmatpush1.msra.mxu0 %v157
    %1509 = vmatprep.subr.mxu0 %v162
    %1510 = vmatpush1.msra.mxu0 %v161
    %1511 = vmatprep.subr.mxu0 %v166
    %1512 = vmatpush1.msra.mxu0 %v165
    %1513 = vmatprep.subr.mxu0 %v170
    %1514 = vmatpush1.msra.mxu0 %v169
    %1515 = vmatprep.subr.mxu0 %v174
    %1516 = vmatpush1.msra.mxu0 %v173
    %1517 = vmatprep.subr.mxu0 %v178
    %1518 = vmatpush1.msra.mxu0 %v177
    %1519 = vmatprep.subr.mxu0 %v182
    %1520 = vmatpush1.msra.mxu0 %v181
    %1521 = vmatprep.subr.mxu0 %v186
    %1522 = vmatpush1.msra.mxu0 %v185
    %1523 = vmatprep.subr.mxu0 %v190
    %1524 = vmatpush1.msra.mxu0 %v189
    %1525 = vmatprep.subr.mxu0 %v194
    %1526 = vmatpush1.msra.mxu0 %v193
    %1527 = vmatprep.subr.mxu0 %v198
    %1528 = vmatpush1.msra.mxu0 %v197
    %1529 = vmatprep.subr.mxu0 %v202
    %1530 = vmatpush1.msra.mxu0 %v201
    %1531 = vmatprep.subr.mxu0 %v206
    %1532 = vmatpush1.msra.mxu0 %v205
    %1533 = vmatprep.subr.mxu0 %v210
    %1534 = vmatpush1.msra.mxu0 %v209
    %1535 = vmatprep.subr.mxu0 %v214
    %1536 = vmatpush1.msra.mxu0 %v213
    %1537 = vmatprep.subr.mxu0 %v218
    %1538 = vmatpush1.msra.mxu0 %v217
    %1539 = vmatprep.subr.mxu0 %v222
    %1540 = vmatpush1.msra.mxu0 %v221
    %1541 = vmatprep.subr.mxu0 %v226
    %1542 = vmatpush1.msra.mxu0 %v225
    %1543 = vmatprep.subr.mxu0 %v230
    %1544 = vmatpush1.msra.mxu0 %v229
    %1545 = vmatprep.subr.mxu0 %v234
    %1546 = vmatpush1.msra.mxu0 %v233
    %1547 = vmatprep.subr.mxu0 %v238
    %1548 = vmatpush1.msra.mxu0 %v237
    %1549 = vmatprep.subr.mxu0 %v242
    %1550 = vmatpush1.msra.mxu0 %v241
    %1551 = vmatprep.subr.mxu0 %v246
    %1552 = vmatpush1.msra.mxu0 %v245
    %1553 = vmatprep.subr.mxu0 %v250
    %1554 = vmatpush1.msra.mxu0 %v249
    %1555 = vmatprep.subr.mxu0 %v254
    %1556 = vmatpush1.msra.mxu0 %v253
    %1557 = vmatprep.subr.mxu0 %v258
    %1558 = vmatpush1.msra.mxu0 %v257
    %1559 = vmatprep.subr.mxu0 %v262
    %1560 = vmatpush1.msra.mxu0 %v261
    %1561 = vmatprep.subr.mxu0 %v266
    %1562 = vmatpush1.msra.mxu0 %v265
    %1563 = vmatprep.mubr.f32.mxu0 %v1257
    %1564 = vmatmul.mubr.f32.gmra.mrb[0].mxu0 %v1427
    %v1565 = vpop.f32.mrb[0].mxu0
    %v1566 = vadd.f32 %v747, %v1565
    %v1567 = vpop.f32.mrb[0].mxu0
    %v1568 = vadd.f32 %v751, %v1567
    %1569 = vdwg.mxu0
    %v1570 = vxor.u32 %v1495, 2147483648
    %v1571 = vxor.u32 %v1497, 2147483648
    %v1572 = vxor.u32 %v1566, 2147483648
    %v1573 = vmul.f32 %v1570, 1.442695
    %v1574 = vpow.pop %v1573
    %v1575 = vmul.f32 %v1571, 1.442695
    %v1576 = vpow.pop %v1575
    %v1577 = vmul.f32 %v1572, 1.442695
    %v1578 = vpow.pop %v1577
    %v1579 = vadd.f32 %v1574, 1.0
    %v1580 = vadd.f32 %v1576, 1.0
    %v1581 = vadd.f32 %v1578, 1.0
    %v1582 = vrcp.pop %v1579
    %v1583 = vmul.f32 1.0, %v1582
    %v1584 = vrcp.pop %v1580
    %v1585 = vmul.f32 1.0, %v1584
    %v1586 = vrcp.pop %v1581
    %v1587 = vmul.f32 1.0, %v1586
    %v1588 = vtanh.pop %v1568
    %v1589 = vmul.f32 %v1585, %v1255
    %v1590 = vmul.f32 %v1583, %v1588
    %v1591 = vadd.f32 %v1589, %v1590
    %v1592 = vtanh.pop %v1591
    %v1593 = vmul.f32 %v1587, %v1592
    %1594 = vmatprep.subr.mxu0 %v75
    %1595 = vmatpush1.msra.mxu0 %v74
    %1596 = vmatprep.subr.mxu0 %v79
    %1597 = vmatpush1.msra.mxu0 %v78
    %1598 = vmatprep.subr.mxu0 %v83
    %1599 = vmatpush1.msra.mxu0 %v82
    %1600 = vmatprep.subr.mxu0 %v87
    %1601 = vmatpush1.msra.mxu0 %v86
    %1602 = vmatprep.subr.mxu0 %v91
    %1603 = vmatpush1.msra.mxu0 %v90
    %1604 = vmatprep.subr.mxu0 %v95
    %1605 = vmatpush1.msra.mxu0 %v94
    %1606 = vmatprep.subr.mxu0 %v99
    %1607 = vmatpush1.msra.mxu0 %v98
    %1608 = vmatprep.subr.mxu0 %v103
    %1609 = vmatpush1.msra.mxu0 %v102
    %1610 = vmatprep.subr.mxu0 %v107
    %1611 = vmatpush1.msra.mxu0 %v106
    %1612 = vmatprep.subr.mxu0 %v111
    %1613 = vmatpush1.msra.mxu0 %v110
    %1614 = vmatprep.subr.mxu0 %v115
    %1615 = vmatpush1.msra.mxu0 %v114
    %1616 = vmatprep.subr.mxu0 %v119
    %1617 = vmatpush1.msra.mxu0 %v118
    %1618 = vmatprep.subr.mxu0 %v123
    %1619 = vmatpush1.msra.mxu0 %v122
    %1620 = vmatprep.subr.mxu0 %v127
    %1621 = vmatpush1.msra.mxu0 %v126
    %1622 = vmatprep.subr.mxu0 %v131
    %1623 = vmatpush1.msra.mxu0 %v130
    %1624 = vmatprep.subr.mxu0 %v135
    %1625 = vmatpush1.msra.mxu0 %v134
    %1626 = vmatprep.subr.mxu0 0.0
    %1627 = vmatpush1.msra.mxu0 0.0
    %1628 = vmatprep.subr.mxu0 0.0
    %1629 = vmatpush1.msra.mxu0 0.0
    %1630 = vmatprep.subr.mxu0 0.0
    %1631 = vmatpush1.msra.mxu0 0.0
    %1632 = vmatprep.subr.mxu0 0.0
    %1633 = vmatpush1.msra.mxu0 0.0
    %1634 = vmatprep.subr.mxu0 0.0
    %1635 = vmatpush1.msra.mxu0 0.0
    %1636 = vmatprep.subr.mxu0 0.0
    %1637 = vmatpush1.msra.mxu0 0.0
    %1638 = vmatprep.subr.mxu0 0.0
    %1639 = vmatpush1.msra.mxu0 0.0
    %1640 = vmatprep.subr.mxu0 0.0
    %1641 = vmatpush1.msra.mxu0 0.0
    %1642 = vmatprep.subr.mxu0 0.0
    %1643 = vmatpush1.msra.mxu0 0.0
    %1644 = vmatprep.subr.mxu0 0.0
    %1645 = vmatpush1.msra.mxu0 0.0
    %1646 = vmatprep.subr.mxu0 0.0
    %1647 = vmatpush1.msra.mxu0 0.0
    %1648 = vmatprep.subr.mxu0 0.0
    %1649 = vmatpush1.msra.mxu0 0.0
    %1650 = vmatprep.subr.mxu0 0.0
    %1651 = vmatpush1.msra.mxu0 0.0
    %1652 = vmatprep.subr.mxu0 0.0
    %1653 = vmatpush1.msra.mxu0 0.0
    %1654 = vmatprep.subr.mxu0 0.0
    %1655 = vmatpush1.msra.mxu0 0.0
    %1656 = vmatprep.subr.mxu0 0.0
    %1657 = vmatpush1.msra.mxu0 0.0
    %1658 = vmatprep.mubr.f32.mxu0 0.0
    %1659 = vmatmul.mubr.f32.gmra.mrb[0].mxu0 %v1427
    %v1660 = vpop.f32.mrb[0].mxu0
    %v1661 = vadd.f32 0.0, %v1660
    %v1662 = vpop.f32.mrb[0].mxu0
    %v1663 = vadd.f32 0.0, %v1662
    %1664 = vdwg.mxu0
    %1665 = vmatprep.subr.mxu0 %v77
    %1666 = vmatpush1.msra.mxu0 %v76
    %1667 = vmatprep.subr.mxu0 %v81
    %1668 = vmatpush1.msra.mxu0 %v80
    %1669 = vmatprep.subr.mxu0 %v85
    %1670 = vmatpush1.msra.mxu0 %v84
    %1671 = vmatprep.subr.mxu0 %v89
    %1672 = vmatpush1.msra.mxu0 %v88
    %1673 = vmatprep.subr.mxu0 %v93
    %1674 = vmatpush1.msra.mxu0 %v92
    %1675 = vmatprep.subr.mxu0 %v97
    %1676 = vmatpush1.msra.mxu0 %v96
    %1677 = vmatprep.subr.mxu0 %v101
    %1678 = vmatpush1.msra.mxu0 %v100
    %1679 = vmatprep.subr.mxu0 %v105
    %1680 = vmatpush1.msra.mxu0 %v104
    %1681 = vmatprep.subr.mxu0 %v109
    %1682 = vmatpush1.msra.mxu0 %v108
    %1683 = vmatprep.subr.mxu0 %v113
    %1684 = vmatpush1.msra.mxu0 %v112
    %1685 = vmatprep.subr.mxu0 %v117
    %1686 = vmatpush1.msra.mxu0 %v116
    %1687 = vmatprep.subr.mxu0 %v121
    %1688 = vmatpush1.msra.mxu0 %v120
    %1689 = vmatprep.subr.mxu0 %v125
    %1690 = vmatpush1.msra.mxu0 %v124
    %1691 = vmatprep.subr.mxu0 %v129
    %1692 = vmatpush1.msra.mxu0 %v128
    %1693 = vmatprep.subr.mxu0 %v133
    %1694 = vmatpush1.msra.mxu0 %v132
    %1695 = vmatprep.subr.mxu0 %v137
    %1696 = vmatpush1.msra.mxu0 %v136
    %1697 = vmatprep.subr.mxu0 0.0
    %1698 = vmatpush1.msra.mxu0 0.0
    %1699 = vmatprep.subr.mxu0 0.0
    %1700 = vmatpush1.msra.mxu0 0.0
    %1701 = vmatprep.subr.mxu0 0.0
    %1702 = vmatpush1.msra.mxu0 0.0
    %1703 = vmatprep.subr.mxu0 0.0
    %1704 = vmatpush1.msra.mxu0 0.0
    %1705 = vmatprep.subr.mxu0 0.0
    %1706 = vmatpush1.msra.mxu0 0.0
    %1707 = vmatprep.subr.mxu0 0.0
    %1708 = vmatpush1.msra.mxu0 0.0
    %1709 = vmatprep.subr.mxu0 0.0
    %1710 = vmatpush1.msra.mxu0 0.0
    %1711 = vmatprep.subr.mxu0 0.0
    %1712 = vmatpush1.msra.mxu0 0.0
    %1713 = vmatprep.subr.mxu0 0.0
    %1714 = vmatpush1.msra.mxu0 0.0
    %1715 = vmatprep.subr.mxu0 0.0
    %1716 = vmatpush1.msra.mxu0 0.0
    %1717 = vmatprep.subr.mxu0 0.0
    %1718 = vmatpush1.msra.mxu0 0.0
    %1719 = vmatprep.subr.mxu0 0.0
    %1720 = vmatpush1.msra.mxu0 0.0
    %1721 = vmatprep.subr.mxu0 0.0
    %1722 = vmatpush1.msra.mxu0 0.0
    %1723 = vmatprep.subr.mxu0 0.0
    %1724 = vmatpush1.msra.mxu0 0.0
    %1725 = vmatprep.subr.mxu0 0.0
    %1726 = vmatpush1.msra.mxu0 0.0
    %1727 = vmatprep.subr.mxu0 0.0
    %1728 = vmatpush1.msra.mxu0 0.0
    %1729 = vmatprep.mubr.f32.mxu0 0.0
    %1730 = vmatmul.mubr.f32.gmra.mrb[0].mxu0 %v1427
    %v1731 = vpop.f32.mrb[0].mxu0
    %v1732 = vadd.f32 0.0, %v1731
    %v1733 = vpop.f32.mrb[0].mxu0
    %v1734 = vadd.f32 0.0, %v1733
    %1735 = vdwg.mxu0
    %v1736 = vadd.f32 %v424, %v1661
    %v1737 = vadd.f32 %v426, %v1663
    %v1738 = vadd.f32 %v537, %v1732
    %v1739 = vadd.f32 %v539, %v1734
    %v1740 = vxor.u32 %v1736, 2147483648
    %v1741 = vxor.u32 %v1737, 2147483648
    %v1742 = vxor.u32 %v1738, 2147483648
    %v1743 = vmul.f32 %v1740, 1.442695
    %v1744 = vpow.pop %v1743
    %v1745 = vmul.f32 %v1741, 1.442695
    %v1746 = vpow.pop %v1745
    %v1747 = vmul.f32 %v1742, 1.442695
    %v1748 = vpow.pop %v1747
    %v1749 = vadd.f32 %v1744, 1.0
    %v1750 = vadd.f32 %v1746, 1.0
    %v1751 = vadd.f32 %v1748, 1.0
    %v1752 = vrcp.pop %v1749
    %v1753 = vmul.f32 1.0, %v1752
    %v1754 = vrcp.pop %v1750
    %v1755 = vmul.f32 1.0, %v1754
    %v1756 = vrcp.pop %v1751
    %v1757 = vmul.f32 1.0, %v1756
    %v1758 = vtanh.pop %v1739
    %v1759 = vmul.f32 %v1755, %v1425
    %v1760 = vmul.f32 %v1753, %v1758
    %v1761 = vadd.f32 %v1759, %v1760
    %v1762 = vtanh.pop %v1761
    %v1763 = vmul.f32 %v1757, %v1762
    %1764 = vmatprep.subr.mxu0 %v140
    %1765 = vmatpush1.msra.mxu0 %v139
    %1766 = vmatprep.subr.mxu0 %v144
    %1767 = vmatpush1.msra.mxu0 %v143
    %1768 = vmatprep.subr.mxu0 %v148
    %1769 = vmatpush1.msra.mxu0 %v147
    %1770 = vmatprep.subr.mxu0 %v152
    %1771 = vmatpush1.msra.mxu0 %v151
    %1772 = vmatprep.subr.mxu0 %v156
    %1773 = vmatpush1.msra.mxu0 %v155
    %1774 = vmatprep.subr.mxu0 %v160
    %1775 = vmatpush1.msra.mxu0 %v159
    %1776 = vmatprep.subr.mxu0 %v164
    %1777 = vmatpush1.msra.mxu0 %v163
    %1778 = vmatprep.subr.mxu0 %v168
    %1779 = vmatpush1.msra.mxu0 %v167
    %1780 = vmatprep.subr.mxu0 %v172
    %1781 = vmatpush1.msra.mxu0 %v171
    %1782 = vmatprep.subr.mxu0 %v176
    %1783 = vmatpush1.msra.mxu0 %v175
    %1784 = vmatprep.subr.mxu0 %v180
    %1785 = vmatpush1.msra.mxu0 %v179
    %1786 = vmatprep.subr.mxu0 %v184
    %1787 = vmatpush1.msra.mxu0 %v183
    %1788 = vmatprep.subr.mxu0 %v188
    %1789 = vmatpush1.msra.mxu0 %v187
    %1790 = vmatprep.subr.mxu0 %v192
    %1791 = vmatpush1.msra.mxu0 %v191
    %1792 = vmatprep.subr.mxu0 %v196
    %1793 = vmatpush1.msra.mxu0 %v195
    %1794 = vmatprep.subr.mxu0 %v200
    %1795 = vmatpush1.msra.mxu0 %v199
    %1796 = vmatprep.subr.mxu0 %v204
    %1797 = vmatpush1.msra.mxu0 %v203
    %1798 = vmatprep.subr.mxu0 %v208
    %1799 = vmatpush1.msra.mxu0 %v207
    %1800 = vmatprep.subr.mxu0 %v212
    %1801 = vmatpush1.msra.mxu0 %v211
    %1802 = vmatprep.subr.mxu0 %v216
    %1803 = vmatpush1.msra.mxu0 %v215
    %1804 = vmatprep.subr.mxu0 %v220
    %1805 = vmatpush1.msra.mxu0 %v219
    %1806 = vmatprep.subr.mxu0 %v224
    %1807 = vmatpush1.msra.mxu0 %v223
    %1808 = vmatprep.subr.mxu0 %v228
    %1809 = vmatpush1.msra.mxu0 %v227
    %1810 = vmatprep.subr.mxu0 %v232
    %1811 = vmatpush1.msra.mxu0 %v231
    %1812 = vmatprep.subr.mxu0 %v236
    %1813 = vmatpush1.msra.mxu0 %v235
    %1814 = vmatprep.subr.mxu0 %v240
    %1815 = vmatpush1.msra.mxu0 %v239
    %1816 = vmatprep.subr.mxu0 %v244
    %1817 = vmatpush1.msra.mxu0 %v243
    %1818 = vmatprep.subr.mxu0 %v248
    %1819 = vmatpush1.msra.mxu0 %v247
    %1820 = vmatprep.subr.mxu0 %v252
    %1821 = vmatpush1.msra.mxu0 %v251
    %1822 = vmatprep.subr.mxu0 %v256
    %1823 = vmatpush1.msra.mxu0 %v255
    %1824 = vmatprep.subr.mxu0 %v260
    %1825 = vmatpush1.msra.mxu0 %v259
    %1826 = vmatprep.subr.mxu0 %v264
    %1827 = vmatpush1.msra.mxu0 %v263
    %1828 = vmatprep.mubr.f32.mxu0 %v1593
    %1829 = vmatmul.mubr.f32.gmra.mrb[0].mxu0 %v1763
    %v1830 = vpop.f32.mrb[0].mxu0
    %v1831 = vadd.f32 %v739, %v1830
    %v1832 = vpop.f32.mrb[0].mxu0
    %v1833 = vadd.f32 %v743, %v1832
    %1834 = vdwg.mxu0
    %1835 = vmatprep.subr.mxu0 %v142
    %1836 = vmatpush1.msra.mxu0 %v141
    %1837 = vmatprep.subr.mxu0 %v146
    %1838 = vmatpush1.msra.mxu0 %v145
    %1839 = vmatprep.subr.mxu0 %v150
    %1840 = vmatpush1.msra.mxu0 %v149
    %1841 = vmatprep.subr.mxu0 %v154
    %1842 = vmatpush1.msra.mxu0 %v153
    %1843 = vmatprep.subr.mxu0 %v158
    %1844 = vmatpush1.msra.mxu0 %v157
    %1845 = vmatprep.subr.mxu0 %v162
    %1846 = vmatpush1.msra.mxu0 %v161
    %1847 = vmatprep.subr.mxu0 %v166
    %1848 = vmatpush1.msra.mxu0 %v165
    %1849 = vmatprep.subr.mxu0 %v170
    %1850 = vmatpush1.msra.mxu0 %v169
    %1851 = vmatprep.subr.mxu0 %v174
    %1852 = vmatpush1.msra.mxu0 %v173
    %1853 = vmatprep.subr.mxu0 %v178
    %1854 = vmatpush1.msra.mxu0 %v177
    %1855 = vmatprep.subr.mxu0 %v182
    %1856 = vmatpush1.msra.mxu0 %v181
    %1857 = vmatprep.subr.mxu0 %v186
    %1858 = vmatpush1.msra.mxu0 %v185
    %1859 = vmatprep.subr.mxu0 %v190
    %1860 = vmatpush1.msra.mxu0 %v189
    %1861 = vmatprep.subr.mxu0 %v194
    %1862 = vmatpush1.msra.mxu0 %v193
    %1863 = vmatprep.subr.mxu0 %v198
    %1864 = vmatpush1.msra.mxu0 %v197
    %1865 = vmatprep.subr.mxu0 %v202
    %1866 = vmatpush1.msra.mxu0 %v201
    %1867 = vmatprep.subr.mxu0 %v206
    %1868 = vmatpush1.msra.mxu0 %v205
    %1869 = vmatprep.subr.mxu0 %v210
    %1870 = vmatpush1.msra.mxu0 %v209
    %1871 = vmatprep.subr.mxu0 %v214
    %1872 = vmatpush1.msra.mxu0 %v213
    %1873 = vmatprep.subr.mxu0 %v218
    %1874 = vmatpush1.msra.mxu0 %v217
    %1875 = vmatprep.subr.mxu0 %v222
    %1876 = vmatpush1.msra.mxu0 %v221
    %1877 = vmatprep.subr.mxu0 %v226
    %1878 = vmatpush1.msra.mxu0 %v225
    %1879 = vmatprep.subr.mxu0 %v230
    %1880 = vmatpush1.msra.mxu0 %v229
    %1881 = vmatprep.subr.mxu0 %v234
    %1882 = vmatpush1.msra.mxu0 %v233
    %1883 = vmatprep.subr.mxu0 %v238
    %1884 = vmatpush1.msra.mxu0 %v237
    %1885 = vmatprep.subr.mxu0 %v242
    %1886 = vmatpush1.msra.mxu0 %v241
    %1887 = vmatprep.subr.mxu0 %v246
    %1888 = vmatpush1.msra.mxu0 %v245
    %1889 = vmatprep.subr.mxu0 %v250
    %1890 = vmatpush1.msra.mxu0 %v249
    %1891 = vmatprep.subr.mxu0 %v254
    %1892 = vmatpush1.msra.mxu0 %v253
    %1893 = vmatprep.subr.mxu0 %v258
    %1894 = vmatpush1.msra.mxu0 %v257
    %1895 = vmatprep.subr.mxu0 %v262
    %1896 = vmatpush1.msra.mxu0 %v261
    %1897 = vmatprep.subr.mxu0 %v266
    %1898 = vmatpush1.msra.mxu0 %v265
    %1899 = vmatprep.mubr.f32.mxu0 %v1593
    %1900 = vmatmul.mubr.f32.gmra.mrb[0].mxu0 %v1763
    %v1901 = vpop.f32.mrb[0].mxu0
    %v1902 = vadd.f32 %v747, %v1901
    %v1903 = vpop.f32.mrb[0].mxu0
    %v1904 = vadd.f32 %v751, %v1903
    %1905 = vdwg.mxu0
    %v1906 = vxor.u32 %v1831, 2147483648
    %v1907 = vxor.u32 %v1833, 2147483648
    %v1908 = vxor.u32 %v1902, 2147483648
    %v1909 = vmul.f32 %v1906, 1.442695
    %v1910 = vpow.pop %v1909
    %v1911 = vmul.f32 %v1907, 1.442695
    %v1912 = vpow.pop %v1911
    %v1913 = vmul.f32 %v1908, 1.442695
    %v1914 = vpow.pop %v1913
    %v1915 = vadd.f32 %v1910, 1.0
    %v1916 = vadd.f32 %v1912, 1.0
    %v1917 = vadd.f32 %v1914, 1.0
    %v1918 = vrcp.pop %v1915
    %v1919 = vmul.f32 1.0, %v1918
    %v1920 = vrcp.pop %v1916
    %v1921 = vmul.f32 1.0, %v1920
    %v1922 = vrcp.pop %v1917
    %v1923 = vmul.f32 1.0, %v1922
    %v1924 = vtanh.pop %v1904
    %v1925 = vmul.f32 %v1921, %v1591
    %v1926 = vmul.f32 %v1919, %v1924
    %v1927 = vadd.f32 %v1925, %v1926
    %v1928 = vtanh.pop %v1927
    %v1929 = vmul.f32 %v1923, %v1928
    %1930 = vmatprep.subr.mxu0 %v75
    %1931 = vmatpush1.msra.mxu0 %v74
    %1932 = vmatprep.subr.mxu0 %v79
    %1933 = vmatpush1.msra.mxu0 %v78
    %1934 = vmatprep.subr.mxu0 %v83
    %1935 = vmatpush1.msra.mxu0 %v82
    %1936 = vmatprep.subr.mxu0 %v87
    %1937 = vmatpush1.msra.mxu0 %v86
    %1938 = vmatprep.subr.mxu0 %v91
    %1939 = vmatpush1.msra.mxu0 %v90
    %1940 = vmatprep.subr.mxu0 %v95
    %1941 = vmatpush1.msra.mxu0 %v94
    %1942 = vmatprep.subr.mxu0 %v99
    %1943 = vmatpush1.msra.mxu0 %v98
    %1944 = vmatprep.subr.mxu0 %v103
    %1945 = vmatpush1.msra.mxu0 %v102
    %1946 = vmatprep.subr.mxu0 %v107
    %1947 = vmatpush1.msra.mxu0 %v106
    %1948 = vmatprep.subr.mxu0 %v111
    %1949 = vmatpush1.msra.mxu0 %v110
    %1950 = vmatprep.subr.mxu0 %v115
    %1951 = vmatpush1.msra.mxu0 %v114
    %1952 = vmatprep.subr.mxu0 %v119
    %1953 = vmatpush1.msra.mxu0 %v118
    %1954 = vmatprep.subr.mxu0 %v123
    %1955 = vmatpush1.msra.mxu0 %v122
    %1956 = vmatprep.subr.mxu0 %v127
    %1957 = vmatpush1.msra.mxu0 %v126
    %1958 = vmatprep.subr.mxu0 %v131
    %1959 = vmatpush1.msra.mxu0 %v130
    %1960 = vmatprep.subr.mxu0 %v135
    %1961 = vmatpush1.msra.mxu0 %v134
    %1962 = vmatprep.subr.mxu0 0.0
    %1963 = vmatpush1.msra.mxu0 0.0
    %1964 = vmatprep.subr.mxu0 0.0
    %1965 = vmatpush1.msra.mxu0 0.0
    %1966 = vmatprep.subr.mxu0 0.0
    %1967 = vmatpush1.msra.mxu0 0.0
    %1968 = vmatprep.subr.mxu0 0.0
    %1969 = vmatpush1.msra.mxu0 0.0
    %1970 = vmatprep.subr.mxu0 0.0
    %1971 = vmatpush1.msra.mxu0 0.0
    %1972 = vmatprep.subr.mxu0 0.0
    %1973 = vmatpush1.msra.mxu0 0.0
    %1974 = vmatprep.subr.mxu0 0.0
    %1975 = vmatpush1.msra.mxu0 0.0
    %1976 = vmatprep.subr.mxu0 0.0
    %1977 = vmatpush1.msra.mxu0 0.0
    %1978 = vmatprep.subr.mxu0 0.0
    %1979 = vmatpush1.msra.mxu0 0.0
    %1980 = vmatprep.subr.mxu0 0.0
    %1981 = vmatpush1.msra.mxu0 0.0
    %1982 = vmatprep.subr.mxu0 0.0
    %1983 = vmatpush1.msra.mxu0 0.0
    %1984 = vmatprep.subr.mxu0 0.0
    %1985 = vmatpush1.msra.mxu0 0.0
    %1986 = vmatprep.subr.mxu0 0.0
    %1987 = vmatpush1.msra.mxu0 0.0
    %1988 = vmatprep.subr.mxu0 0.0
    %1989 = vmatpush1.msra.mxu0 0.0
    %1990 = vmatprep.subr.mxu0 0.0
    %1991 = vmatpush1.msra.mxu0 0.0
    %1992 = vmatprep.subr.mxu0 0.0
    %1993 = vmatpush1.msra.mxu0 0.0
    %1994 = vmatprep.mubr.f32.mxu0 0.0
    %1995 = vmatmul.mubr.f32.gmra.mrb[0].mxu0 %v1763
    %v1996 = vpop.f32.mrb[0].mxu0
    %v1997 = vadd.f32 0.0, %v1996
    %v1998 = vpop.f32.mrb[0].mxu0
    %v1999 = vadd.f32 0.0, %v1998
    %2000 = vdwg.mxu0
    %2001 = vmatprep.subr.mxu0 %v77
    %2002 = vmatpush1.msra.mxu0 %v76
    %2003 = vmatprep.subr.mxu0 %v81
    %2004 = vmatpush1.msra.mxu0 %v80
    %2005 = vmatprep.subr.mxu0 %v85
    %2006 = vmatpush1.msra.mxu0 %v84
    %2007 = vmatprep.subr.mxu0 %v89
    %2008 = vmatpush1.msra.mxu0 %v88
    %2009 = vmatprep.subr.mxu0 %v93
    %2010 = vmatpush1.msra.mxu0 %v92
    %2011 = vmatprep.subr.mxu0 %v97
    %2012 = vmatpush1.msra.mxu0 %v96
    %2013 = vmatprep.subr.mxu0 %v101
    %2014 = vmatpush1.msra.mxu0 %v100
    %2015 = vmatprep.subr.mxu0 %v105
    %2016 = vmatpush1.msra.mxu0 %v104
    %2017 = vmatprep.subr.mxu0 %v109
    %2018 = vmatpush1.msra.mxu0 %v108
    %2019 = vmatprep.subr.mxu0 %v113
    %2020 = vmatpush1.msra.mxu0 %v112
    %2021 = vmatprep.subr.mxu0 %v117
    %2022 = vmatpush1.msra.mxu0 %v116
    %2023 = vmatprep.subr.mxu0 %v121
    %2024 = vmatpush1.msra.mxu0 %v120
    %2025 = vmatprep.subr.mxu0 %v125
    %2026 = vmatpush1.msra.mxu0 %v124
    %2027 = vmatprep.subr.mxu0 %v129
    %2028 = vmatpush1.msra.mxu0 %v128
    %2029 = vmatprep.subr.mxu0 %v133
    %2030 = vmatpush1.msra.mxu0 %v132
    %2031 = vmatprep.subr.mxu0 %v137
    %2032 = vmatpush1.msra.mxu0 %v136
    %2033 = vmatprep.subr.mxu0 0.0
    %2034 = vmatpush1.msra.mxu0 0.0
    %2035 = vmatprep.subr.mxu0 0.0
    %2036 = vmatpush1.msra.mxu0 0.0
    %2037 = vmatprep.subr.mxu0 0.0
    %2038 = vmatpush1.msra.mxu0 0.0
    %2039 = vmatprep.subr.mxu0 0.0
    %2040 = vmatpush1.msra.mxu0 0.0
    %2041 = vmatprep.subr.mxu0 0.0
    %2042 = vmatpush1.msra.mxu0 0.0
    %2043 = vmatprep.subr.mxu0 0.0
    %2044 = vmatpush1.msra.mxu0 0.0
    %2045 = vmatprep.subr.mxu0 0.0
    %2046 = vmatpush1.msra.mxu0 0.0
    %2047 = vmatprep.subr.mxu0 0.0
    %2048 = vmatpush1.msra.mxu0 0.0
    %2049 = vmatprep.subr.mxu0 0.0
    %2050 = vmatpush1.msra.mxu0 0.0
    %2051 = vmatprep.subr.mxu0 0.0
    %2052 = vmatpush1.msra.mxu0 0.0
    %2053 = vmatprep.subr.mxu0 0.0
    %2054 = vmatpush1.msra.mxu0 0.0
    %2055 = vmatprep.subr.mxu0 0.0
    %2056 = vmatpush1.msra.mxu0 0.0
    %2057 = vmatprep.subr.mxu0 0.0
    %2058 = vmatpush1.msra.mxu0 0.0
    %2059 = vmatprep.subr.mxu0 0.0
    %2060 = vmatpush1.msra.mxu0 0.0
    %2061 = vmatprep.subr.mxu0 0.0
    %2062 = vmatpush1.msra.mxu0 0.0
    %2063 = vmatprep.subr.mxu0 0.0
    %2064 = vmatpush1.msra.mxu0 0.0
    %2065 = vmatprep.mubr.f32.mxu0 0.0
    %2066 = vmatmul.mubr.f32.gmra.mrb[0].mxu0 %v1763
    %v2067 = vpop.f32.mrb[0].mxu0
    %v2068 = vadd.f32 0.0, %v2067
    %v2069 = vpop.f32.mrb[0].mxu0
    %v2070 = vadd.f32 0.0, %v2069
    %2071 = vdwg.mxu0
    %v2072 = vadd.f32 %v430, %v1997
    %v2073 = vadd.f32 %v432, %v1999
    %v2074 = vadd.f32 %v543, %v2068
    %v2075 = vadd.f32 %v545, %v2070
    %v2076 = vxor.u32 %v2072, 2147483648
    %v2077 = vxor.u32 %v2073, 2147483648
    %v2078 = vxor.u32 %v2074, 2147483648
    %v2079 = vmul.f32 %v2076, 1.442695
    %v2080 = vpow.pop %v2079
    %v2081 = vmul.f32 %v2077, 1.442695
    %v2082 = vpow.pop %v2081
    %v2083 = vmul.f32 %v2078, 1.442695
    %v2084 = vpow.pop %v2083
    %v2085 = vadd.f32 %v2080, 1.0
    %v2086 = vadd.f32 %v2082, 1.0
    %v2087 = vadd.f32 %v2084, 1.0
    %v2088 = vrcp.pop %v2085
    %v2089 = vmul.f32 1.0, %v2088
    %v2090 = vrcp.pop %v2086
    %v2091 = vmul.f32 1.0, %v2090
    %v2092 = vrcp.pop %v2087
    %v2093 = vmul.f32 1.0, %v2092
    %v2094 = vtanh.pop %v2075
    %v2095 = vmul.f32 %v2091, %v1761
    %v2096 = vmul.f32 %v2089, %v2094
    %v2097 = vadd.f32 %v2095, %v2096
    %v2098 = vtanh.pop %v2097
    %v2099 = vmul.f32 %v2093, %v2098
    %2100 = vmatprep.subr.mxu0 %v140
    %2101 = vmatpush1.msra.mxu0 %v139
    %2102 = vmatprep.subr.mxu0 %v144
    %2103 = vmatpush1.msra.mxu0 %v143
    %2104 = vmatprep.subr.mxu0 %v148
    %2105 = vmatpush1.msra.mxu0 %v147
    %2106 = vmatprep.subr.mxu0 %v152
    %2107 = vmatpush1.msra.mxu0 %v151
    %2108 = vmatprep.subr.mxu0 %v156
    %2109 = vmatpush1.msra.mxu0 %v155
    %2110 = vmatprep.subr.mxu0 %v160
    %2111 = vmatpush1.msra.mxu0 %v159
    %2112 = vmatprep.subr.mxu0 %v164
    %2113 = vmatpush1.msra.mxu0 %v163
    %2114 = vmatprep.subr.mxu0 %v168
    %2115 = vmatpush1.msra.mxu0 %v167
    %2116 = vmatprep.subr.mxu0 %v172
    %2117 = vmatpush1.msra.mxu0 %v171
    %2118 = vmatprep.subr.mxu0 %v176
    %2119 = vmatpush1.msra.mxu0 %v175
    %2120 = vmatprep.subr.mxu0 %v180
    %2121 = vmatpush1.msra.mxu0 %v179
    %2122 = vmatprep.subr.mxu0 %v184
    %2123 = vmatpush1.msra.mxu0 %v183
    %2124 = vmatprep.subr.mxu0 %v188
    %2125 = vmatpush1.msra.mxu0 %v187
    %2126 = vmatprep.subr.mxu0 %v192
    %2127 = vmatpush1.msra.mxu0 %v191
    %2128 = vmatprep.subr.mxu0 %v196
    %2129 = vmatpush1.msra.mxu0 %v195
    %2130 = vmatprep.subr.mxu0 %v200
    %2131 = vmatpush1.msra.mxu0 %v199
    %2132 = vmatprep.subr.mxu0 %v204
    %2133 = vmatpush1.msra.mxu0 %v203
    %2134 = vmatprep.subr.mxu0 %v208
    %2135 = vmatpush1.msra.mxu0 %v207
    %2136 = vmatprep.subr.mxu0 %v212
    %2137 = vmatpush1.msra.mxu0 %v211
    %2138 = vmatprep.subr.mxu0 %v216
    %2139 = vmatpush1.msra.mxu0 %v215
    %2140 = vmatprep.subr.mxu0 %v220
    %2141 = vmatpush1.msra.mxu0 %v219
    %2142 = vmatprep.subr.mxu0 %v224
    %2143 = vmatpush1.msra.mxu0 %v223
    %2144 = vmatprep.subr.mxu0 %v228
    %2145 = vmatpush1.msra.mxu0 %v227
    %2146 = vmatprep.subr.mxu0 %v232
    %2147 = vmatpush1.msra.mxu0 %v231
    %2148 = vmatprep.subr.mxu0 %v236
    %2149 = vmatpush1.msra.mxu0 %v235
    %2150 = vmatprep.subr.mxu0 %v240
    %2151 = vmatpush1.msra.mxu0 %v239
    %2152 = vmatprep.subr.mxu0 %v244
    %2153 = vmatpush1.msra.mxu0 %v243
    %2154 = vmatprep.subr.mxu0 %v248
    %2155 = vmatpush1.msra.mxu0 %v247
    %2156 = vmatprep.subr.mxu0 %v252
    %2157 = vmatpush1.msra.mxu0 %v251
    %2158 = vmatprep.subr.mxu0 %v256
    %2159 = vmatpush1.msra.mxu0 %v255
    %2160 = vmatprep.subr.mxu0 %v260
    %2161 = vmatpush1.msra.mxu0 %v259
    %2162 = vmatprep.subr.mxu0 %v264
    %2163 = vmatpush1.msra.mxu0 %v263
    %2164 = vmatprep.mubr.f32.mxu0 %v1929
    %2165 = vmatmul.mubr.f32.gmra.mrb[0].mxu0 %v2099
    %v2166 = vpop.f32.mrb[0].mxu0
    %v2167 = vadd.f32 %v739, %v2166
    %v2168 = vpop.f32.mrb[0].mxu0
    %v2169 = vadd.f32 %v743, %v2168
    %2170 = vdwg.mxu0
    %2171 = vmatprep.subr.mxu0 %v142
    %2172 = vmatpush1.msra.mxu0 %v141
    %2173 = vmatprep.subr.mxu0 %v146
    %2174 = vmatpush1.msra.mxu0 %v145
    %2175 = vmatprep.subr.mxu0 %v150
    %2176 = vmatpush1.msra.mxu0 %v149
    %2177 = vmatprep.subr.mxu0 %v154
    %2178 = vmatpush1.msra.mxu0 %v153
    %2179 = vmatprep.subr.mxu0 %v158
    %2180 = vmatpush1.msra.mxu0 %v157
    %2181 = vmatprep.subr.mxu0 %v162
    %2182 = vmatpush1.msra.mxu0 %v161
    %2183 = vmatprep.subr.mxu0 %v166
    %2184 = vmatpush1.msra.mxu0 %v165
    %2185 = vmatprep.subr.mxu0 %v170
    %2186 = vmatpush1.msra.mxu0 %v169
    %2187 = vmatprep.subr.mxu0 %v174
    %2188 = vmatpush1.msra.mxu0 %v173
    %2189 = vmatprep.subr.mxu0 %v178
    %2190 = vmatpush1.msra.mxu0 %v177
    %2191 = vmatprep.subr.mxu0 %v182
    %2192 = vmatpush1.msra.mxu0 %v181
    %2193 = vmatprep.subr.mxu0 %v186
    %2194 = vmatpush1.msra.mxu0 %v185
    %2195 = vmatprep.subr.mxu0 %v190
    %2196 = vmatpush1.msra.mxu0 %v189
    %2197 = vmatprep.subr.mxu0 %v194
    %2198 = vmatpush1.msra.mxu0 %v193
    %2199 = vmatprep.subr.mxu0 %v198
    %2200 = vmatpush1.msra.mxu0 %v197
    %2201 = vmatprep.subr.mxu0 %v202
    %2202 = vmatpush1.msra.mxu0 %v201
    %2203 = vmatprep.subr.mxu0 %v206
    %2204 = vmatpush1.msra.mxu0 %v205
    %2205 = vmatprep.subr.mxu0 %v210
    %2206 = vmatpush1.msra.mxu0 %v209
    %2207 = vmatprep.subr.mxu0 %v214
    %2208 = vmatpush1.msra.mxu0 %v213
    %2209 = vmatprep.subr.mxu0 %v218
    %2210 = vmatpush1.msra.mxu0 %v217
    %2211 = vmatprep.subr.mxu0 %v222
    %2212 = vmatpush1.msra.mxu0 %v221
    %2213 = vmatprep.subr.mxu0 %v226
    %2214 = vmatpush1.msra.mxu0 %v225
    %2215 = vmatprep.subr.mxu0 %v230
    %2216 = vmatpush1.msra.mxu0 %v229
    %2217 = vmatprep.subr.mxu0 %v234
    %2218 = vmatpush1.msra.mxu0 %v233
    %2219 = vmatprep.subr.mxu0 %v238
    %2220 = vmatpush1.msra.mxu0 %v237
    %2221 = vmatprep.subr.mxu0 %v242
    %2222 = vmatpush1.msra.mxu0 %v241
    %2223 = vmatprep.subr.mxu0 %v246
    %2224 = vmatpush1.msra.mxu0 %v245
    %2225 = vmatprep.subr.mxu0 %v250
    %2226 = vmatpush1.msra.mxu0 %v249
    %2227 = vmatprep.subr.mxu0 %v254
    %2228 = vmatpush1.msra.mxu0 %v253
    %2229 = vmatprep.subr.mxu0 %v258
    %2230 = vmatpush1.msra.mxu0 %v257
    %2231 = vmatprep.subr.mxu0 %v262
    %2232 = vmatpush1.msra.mxu0 %v261
    %2233 = vmatprep.subr.mxu0 %v266
    %2234 = vmatpush1.msra.mxu0 %v265
    %2235 = vmatprep.mubr.f32.mxu0 %v1929
    %2236 = vmatmul.mubr.f32.gmra.mrb[0].mxu0 %v2099
    %v2237 = vpop.f32.mrb[0].mxu0
    %v2238 = vadd.f32 %v747, %v2237
    %v2239 = vpop.f32.mrb[0].mxu0
    %v2240 = vadd.f32 %v751, %v2239
    %2241 = vdwg.mxu0
    %v2242 = vxor.u32 %v2167, 2147483648
    %v2243 = vxor.u32 %v2169, 2147483648
    %v2244 = vxor.u32 %v2238, 2147483648
    %v2245 = vmul.f32 %v2242, 1.442695
    %v2246 = vpow.pop %v2245
    %v2247 = vmul.f32 %v2243, 1.442695
    %v2248 = vpow.pop %v2247
    %v2249 = vmul.f32 %v2244, 1.442695
    %v2250 = vpow.pop %v2249
    %v2251 = vadd.f32 %v2246, 1.0
    %v2252 = vadd.f32 %v2248, 1.0
    %v2253 = vadd.f32 %v2250, 1.0
    %v2254 = vrcp.pop %v2251
    %v2255 = vmul.f32 1.0, %v2254
    %v2256 = vrcp.pop %v2252
    %v2257 = vmul.f32 1.0, %v2256
    %v2258 = vrcp.pop %v2253
    %v2259 = vmul.f32 1.0, %v2258
    %v2260 = vtanh.pop %v2240
    %v2261 = vmul.f32 %v2257, %v1927
    %v2262 = vmul.f32 %v2255, %v2260
    %v2263 = vadd.f32 %v2261, %v2262
    %v2264 = vtanh.pop %v2263
    %v2265 = vmul.f32 %v2259, %v2264
    %2266 = vmatprep.subr.mxu0 %v75
    %2267 = vmatpush1.msra.mxu0 %v74
    %2268 = vmatprep.subr.mxu0 %v79
    %2269 = vmatpush1.msra.mxu0 %v78
    %2270 = vmatprep.subr.mxu0 %v83
    %2271 = vmatpush1.msra.mxu0 %v82
    %2272 = vmatprep.subr.mxu0 %v87
    %2273 = vmatpush1.msra.mxu0 %v86
    %2274 = vmatprep.subr.mxu0 %v91
    %2275 = vmatpush1.msra.mxu0 %v90
    %2276 = vmatprep.subr.mxu0 %v95
    %2277 = vmatpush1.msra.mxu0 %v94
    %2278 = vmatprep.subr.mxu0 %v99
    %2279 = vmatpush1.msra.mxu0 %v98
    %2280 = vmatprep.subr.mxu0 %v103
    %2281 = vmatpush1.msra.mxu0 %v102
    %2282 = vmatprep.subr.mxu0 %v107
    %2283 = vmatpush1.msra.mxu0 %v106
    %2284 = vmatprep.subr.mxu0 %v111
    %2285 = vmatpush1.msra.mxu0 %v110
    %2286 = vmatprep.subr.mxu0 %v115
    %2287 = vmatpush1.msra.mxu0 %v114
    %2288 = vmatprep.subr.mxu0 %v119
    %2289 = vmatpush1.msra.mxu0 %v118
    %2290 = vmatprep.subr.mxu0 %v123
    %2291 = vmatpush1.msra.mxu0 %v122
    %2292 = vmatprep.subr.mxu0 %v127
    %2293 = vmatpush1.msra.mxu0 %v126
    %2294 = vmatprep.subr.mxu0 %v131
    %2295 = vmatpush1.msra.mxu0 %v130
    %2296 = vmatprep.subr.mxu0 %v135
    %2297 = vmatpush1.msra.mxu0 %v134
    %2298 = vmatprep.subr.mxu0 0.0
    %2299 = vmatpush1.msra.mxu0 0.0
    %2300 = vmatprep.subr.mxu0 0.0
    %2301 = vmatpush1.msra.mxu0 0.0
    %2302 = vmatprep.subr.mxu0 0.0
    %2303 = vmatpush1.msra.mxu0 0.0
    %2304 = vmatprep.subr.mxu0 0.0
    %2305 = vmatpush1.msra.mxu0 0.0
    %2306 = vmatprep.subr.mxu0 0.0
    %2307 = vmatpush1.msra.mxu0 0.0
    %2308 = vmatprep.subr.mxu0 0.0
    %2309 = vmatpush1.msra.mxu0 0.0
    %2310 = vmatprep.subr.mxu0 0.0
    %2311 = vmatpush1.msra.mxu0 0.0
    %2312 = vmatprep.subr.mxu0 0.0
    %2313 = vmatpush1.msra.mxu0 0.0
    %2314 = vmatprep.subr.mxu0 0.0
    %2315 = vmatpush1.msra.mxu0 0.0
    %2316 = vmatprep.subr.mxu0 0.0
    %2317 = vmatpush1.msra.mxu0 0.0
    %2318 = vmatprep.subr.mxu0 0.0
    %2319 = vmatpush1.msra.mxu0 0.0
    %2320 = vmatprep.subr.mxu0 0.0
    %2321 = vmatpush1.msra.mxu0 0.0
    %2322 = vmatprep.subr.mxu0 0.0
    %2323 = vmatpush1.msra.mxu0 0.0
    %2324 = vmatprep.subr.mxu0 0.0
    %2325 = vmatpush1.msra.mxu0 0.0
    %2326 = vmatprep.subr.mxu0 0.0
    %2327 = vmatpush1.msra.mxu0 0.0
    %2328 = vmatprep.subr.mxu0 0.0
    %2329 = vmatpush1.msra.mxu0 0.0
    %2330 = vmatprep.mubr.f32.mxu0 0.0
    %2331 = vmatmul.mubr.f32.gmra.mrb[0].mxu0 %v2099
    %v2332 = vpop.f32.mrb[0].mxu0
    %v2333 = vadd.f32 0.0, %v2332
    %v2334 = vpop.f32.mrb[0].mxu0
    %v2335 = vadd.f32 0.0, %v2334
    %2336 = vdwg.mxu0
    %2337 = vmatprep.subr.mxu0 %v77
    %2338 = vmatpush1.msra.mxu0 %v76
    %2339 = vmatprep.subr.mxu0 %v81
    %2340 = vmatpush1.msra.mxu0 %v80
    %2341 = vmatprep.subr.mxu0 %v85
    %2342 = vmatpush1.msra.mxu0 %v84
    %2343 = vmatprep.subr.mxu0 %v89
    %2344 = vmatpush1.msra.mxu0 %v88
    %2345 = vmatprep.subr.mxu0 %v93
    %2346 = vmatpush1.msra.mxu0 %v92
    %2347 = vmatprep.subr.mxu0 %v97
    %2348 = vmatpush1.msra.mxu0 %v96
    %2349 = vmatprep.subr.mxu0 %v101
    %2350 = vmatpush1.msra.mxu0 %v100
    %2351 = vmatprep.subr.mxu0 %v105
    %2352 = vmatpush1.msra.mxu0 %v104
    %2353 = vmatprep.subr.mxu0 %v109
    %2354 = vmatpush1.msra.mxu0 %v108
    %2355 = vmatprep.subr.mxu0 %v113
    %2356 = vmatpush1.msra.mxu0 %v112
    %2357 = vmatprep.subr.mxu0 %v117
    %2358 = vmatpush1.msra.mxu0 %v116
    %2359 = vmatprep.subr.mxu0 %v121
    %2360 = vmatpush1.msra.mxu0 %v120
    %2361 = vmatprep.subr.mxu0 %v125
    %2362 = vmatpush1.msra.mxu0 %v124
    %2363 = vmatprep.subr.mxu0 %v129
    %2364 = vmatpush1.msra.mxu0 %v128
    %2365 = vmatprep.subr.mxu0 %v133
    %2366 = vmatpush1.msra.mxu0 %v132
    %2367 = vmatprep.subr.mxu0 %v137
    %2368 = vmatpush1.msra.mxu0 %v136
    %2369 = vmatprep.subr.mxu0 0.0
    %2370 = vmatpush1.msra.mxu0 0.0
    %2371 = vmatprep.subr.mxu0 0.0
    %2372 = vmatpush1.msra.mxu0 0.0
    %2373 = vmatprep.subr.mxu0 0.0
    %2374 = vmatpush1.msra.mxu0 0.0
    %2375 = vmatprep.subr.mxu0 0.0
    %2376 = vmatpush1.msra.mxu0 0.0
    %2377 = vmatprep.subr.mxu0 0.0
    %2378 = vmatpush1.msra.mxu0 0.0
    %2379 = vmatprep.subr.mxu0 0.0
    %2380 = vmatpush1.msra.mxu0 0.0
    %2381 = vmatprep.subr.mxu0 0.0
    %2382 = vmatpush1.msra.mxu0 0.0
    %2383 = vmatprep.subr.mxu0 0.0
    %2384 = vmatpush1.msra.mxu0 0.0
    %2385 = vmatprep.subr.mxu0 0.0
    %2386 = vmatpush1.msra.mxu0 0.0
    %2387 = vmatprep.subr.mxu0 0.0
    %2388 = vmatpush1.msra.mxu0 0.0
    %2389 = vmatprep.subr.mxu0 0.0
    %2390 = vmatpush1.msra.mxu0 0.0
    %2391 = vmatprep.subr.mxu0 0.0
    %2392 = vmatpush1.msra.mxu0 0.0
    %2393 = vmatprep.subr.mxu0 0.0
    %2394 = vmatpush1.msra.mxu0 0.0
    %2395 = vmatprep.subr.mxu0 0.0
    %2396 = vmatpush1.msra.mxu0 0.0
    %2397 = vmatprep.subr.mxu0 0.0
    %2398 = vmatpush1.msra.mxu0 0.0
    %2399 = vmatprep.subr.mxu0 0.0
    %2400 = vmatpush1.msra.mxu0 0.0
    %2401 = vmatprep.mubr.f32.mxu0 0.0
    %2402 = vmatmul.mubr.f32.gmra.mrb[0].mxu0 %v2099
    %v2403 = vpop.f32.mrb[0].mxu0
    %v2404 = vadd.f32 0.0, %v2403
    %v2405 = vpop.f32.mrb[0].mxu0
    %v2406 = vadd.f32 0.0, %v2405
    %2407 = vdwg.mxu0
    %v2408 = vadd.f32 %v436, %v2333
    %v2409 = vadd.f32 %v438, %v2335
    %v2410 = vadd.f32 %v549, %v2404
    %v2411 = vadd.f32 %v551, %v2406
    %v2412 = vxor.u32 %v2408, 2147483648
    %v2413 = vxor.u32 %v2409, 2147483648
    %v2414 = vxor.u32 %v2410, 2147483648
    %v2415 = vmul.f32 %v2412, 1.442695
    %v2416 = vpow.pop %v2415
    %v2417 = vmul.f32 %v2413, 1.442695
    %v2418 = vpow.pop %v2417
    %v2419 = vmul.f32 %v2414, 1.442695
    %v2420 = vpow.pop %v2419
    %v2421 = vadd.f32 %v2416, 1.0
    %v2422 = vadd.f32 %v2418, 1.0
    %v2423 = vadd.f32 %v2420, 1.0
    %v2424 = vrcp.pop %v2421
    %v2425 = vmul.f32 1.0, %v2424
    %v2426 = vrcp.pop %v2422
    %v2427 = vmul.f32 1.0, %v2426
    %v2428 = vrcp.pop %v2423
    %v2429 = vmul.f32 1.0, %v2428
    %v2430 = vtanh.pop %v2411
    %v2431 = vmul.f32 %v2427, %v2097
    %v2432 = vmul.f32 %v2425, %v2430
    %v2433 = vadd.f32 %v2431, %v2432
    %v2434 = vtanh.pop %v2433
    %v2435 = vmul.f32 %v2429, %v2434
    %2436 = vmatprep.subr.mxu0 %v140
    %2437 = vmatpush1.msra.mxu0 %v139
    %2438 = vmatprep.subr.mxu0 %v144
    %2439 = vmatpush1.msra.mxu0 %v143
    %2440 = vmatprep.subr.mxu0 %v148
    %2441 = vmatpush1.msra.mxu0 %v147
    %2442 = vmatprep.subr.mxu0 %v152
    %2443 = vmatpush1.msra.mxu0 %v151
    %2444 = vmatprep.subr.mxu0 %v156
    %2445 = vmatpush1.msra.mxu0 %v155
    %2446 = vmatprep.subr.mxu0 %v160
    %2447 = vmatpush1.msra.mxu0 %v159
    %2448 = vmatprep.subr.mxu0 %v164
    %2449 = vmatpush1.msra.mxu0 %v163
    %2450 = vmatprep.subr.mxu0 %v168
    %2451 = vmatpush1.msra.mxu0 %v167
    %2452 = vmatprep.subr.mxu0 %v172
    %2453 = vmatpush1.msra.mxu0 %v171
    %2454 = vmatprep.subr.mxu0 %v176
    %2455 = vmatpush1.msra.mxu0 %v175
    %2456 = vmatprep.subr.mxu0 %v180
    %2457 = vmatpush1.msra.mxu0 %v179
    %2458 = vmatprep.subr.mxu0 %v184
    %2459 = vmatpush1.msra.mxu0 %v183
    %2460 = vmatprep.subr.mxu0 %v188
    %2461 = vmatpush1.msra.mxu0 %v187
    %2462 = vmatprep.subr.mxu0 %v192
    %2463 = vmatpush1.msra.mxu0 %v191
    %2464 = vmatprep.subr.mxu0 %v196
    %2465 = vmatpush1.msra.mxu0 %v195
    %2466 = vmatprep.subr.mxu0 %v200
    %2467 = vmatpush1.msra.mxu0 %v199
    %2468 = vmatprep.subr.mxu0 %v204
    %2469 = vmatpush1.msra.mxu0 %v203
    %2470 = vmatprep.subr.mxu0 %v208
    %2471 = vmatpush1.msra.mxu0 %v207
    %2472 = vmatprep.subr.mxu0 %v212
    %2473 = vmatpush1.msra.mxu0 %v211
    %2474 = vmatprep.subr.mxu0 %v216
    %2475 = vmatpush1.msra.mxu0 %v215
    %2476 = vmatprep.subr.mxu0 %v220
    %2477 = vmatpush1.msra.mxu0 %v219
    %2478 = vmatprep.subr.mxu0 %v224
    %2479 = vmatpush1.msra.mxu0 %v223
    %2480 = vmatprep.subr.mxu0 %v228
    %2481 = vmatpush1.msra.mxu0 %v227
    %2482 = vmatprep.subr.mxu0 %v232
    %2483 = vmatpush1.msra.mxu0 %v231
    %2484 = vmatprep.subr.mxu0 %v236
    %2485 = vmatpush1.msra.mxu0 %v235
    %2486 = vmatprep.subr.mxu0 %v240
    %2487 = vmatpush1.msra.mxu0 %v239
    %2488 = vmatprep.subr.mxu0 %v244
    %2489 = vmatpush1.msra.mxu0 %v243
    %2490 = vmatprep.subr.mxu0 %v248
    %2491 = vmatpush1.msra.mxu0 %v247
    %2492 = vmatprep.subr.mxu0 %v252
    %2493 = vmatpush1.msra.mxu0 %v251
    %2494 = vmatprep.subr.mxu0 %v256
    %2495 = vmatpush1.msra.mxu0 %v255
    %2496 = vmatprep.subr.mxu0 %v260
    %2497 = vmatpush1.msra.mxu0 %v259
    %2498 = vmatprep.subr.mxu0 %v264
    %2499 = vmatpush1.msra.mxu0 %v263
    %2500 = vmatprep.mubr.f32.mxu0 %v2265
    %2501 = vmatmul.mubr.f32.gmra.mrb[0].mxu0 %v2435
    %v2502 = vpop.f32.mrb[0].mxu0
    %v2503 = vadd.f32 %v739, %v2502
    %v2504 = vpop.f32.mrb[0].mxu0
    %v2505 = vadd.f32 %v743, %v2504
    %2506 = vdwg.mxu0
    %2507 = vmatprep.subr.mxu0 %v142
    %2508 = vmatpush1.msra.mxu0 %v141
    %2509 = vmatprep.subr.mxu0 %v146
    %2510 = vmatpush1.msra.mxu0 %v145
    %2511 = vmatprep.subr.mxu0 %v150
    %2512 = vmatpush1.msra.mxu0 %v149
    %2513 = vmatprep.subr.mxu0 %v154
    %2514 = vmatpush1.msra.mxu0 %v153
    %2515 = vmatprep.subr.mxu0 %v158
    %2516 = vmatpush1.msra.mxu0 %v157
    %2517 = vmatprep.subr.mxu0 %v162
    %2518 = vmatpush1.msra.mxu0 %v161
    %2519 = vmatprep.subr.mxu0 %v166
    %2520 = vmatpush1.msra.mxu0 %v165
    %2521 = vmatprep.subr.mxu0 %v170
    %2522 = vmatpush1.msra.mxu0 %v169
    %2523 = vmatprep.subr.mxu0 %v174
    %2524 = vmatpush1.msra.mxu0 %v173
    %2525 = vmatprep.subr.mxu0 %v178
    %2526 = vmatpush1.msra.mxu0 %v177
    %2527 = vmatprep.subr.mxu0 %v182
    %2528 = vmatpush1.msra.mxu0 %v181
    %2529 = vmatprep.subr.mxu0 %v186
    %2530 = vmatpush1.msra.mxu0 %v185
    %2531 = vmatprep.subr.mxu0 %v190
    %2532 = vmatpush1.msra.mxu0 %v189
    %2533 = vmatprep.subr.mxu0 %v194
    %2534 = vmatpush1.msra.mxu0 %v193
    %2535 = vmatprep.subr.mxu0 %v198
    %2536 = vmatpush1.msra.mxu0 %v197
    %2537 = vmatprep.subr.mxu0 %v202
    %2538 = vmatpush1.msra.mxu0 %v201
    %2539 = vmatprep.subr.mxu0 %v206
    %2540 = vmatpush1.msra.mxu0 %v205
    %2541 = vmatprep.subr.mxu0 %v210
    %2542 = vmatpush1.msra.mxu0 %v209
    %2543 = vmatprep.subr.mxu0 %v214
    %2544 = vmatpush1.msra.mxu0 %v213
    %2545 = vmatprep.subr.mxu0 %v218
    %2546 = vmatpush1.msra.mxu0 %v217
    %2547 = vmatprep.subr.mxu0 %v222
    %2548 = vmatpush1.msra.mxu0 %v221
    %2549 = vmatprep.subr.mxu0 %v226
    %2550 = vmatpush1.msra.mxu0 %v225
    %2551 = vmatprep.subr.mxu0 %v230
    %2552 = vmatpush1.msra.mxu0 %v229
    %2553 = vmatprep.subr.mxu0 %v234
    %2554 = vmatpush1.msra.mxu0 %v233
    %2555 = vmatprep.subr.mxu0 %v238
    %2556 = vmatpush1.msra.mxu0 %v237
    %2557 = vmatprep.subr.mxu0 %v242
    %2558 = vmatpush1.msra.mxu0 %v241
    %2559 = vmatprep.subr.mxu0 %v246
    %2560 = vmatpush1.msra.mxu0 %v245
    %2561 = vmatprep.subr.mxu0 %v250
    %2562 = vmatpush1.msra.mxu0 %v249
    %2563 = vmatprep.subr.mxu0 %v254
    %2564 = vmatpush1.msra.mxu0 %v253
    %2565 = vmatprep.subr.mxu0 %v258
    %2566 = vmatpush1.msra.mxu0 %v257
    %2567 = vmatprep.subr.mxu0 %v262
    %2568 = vmatpush1.msra.mxu0 %v261
    %2569 = vmatprep.subr.mxu0 %v266
    %2570 = vmatpush1.msra.mxu0 %v265
    %2571 = vmatprep.mubr.f32.mxu0 %v2265
    %2572 = vmatmul.mubr.f32.gmra.mrb[0].mxu0 %v2435
    %v2573 = vpop.f32.mrb[0].mxu0
    %v2574 = vadd.f32 %v747, %v2573
    %v2575 = vpop.f32.mrb[0].mxu0
    %v2576 = vadd.f32 %v751, %v2575
    %2577 = vdwg.mxu0
    %v2578 = vxor.u32 %v2503, 2147483648
    %v2579 = vxor.u32 %v2505, 2147483648
    %v2580 = vxor.u32 %v2574, 2147483648
    %v2581 = vmul.f32 %v2578, 1.442695
    %v2582 = vpow.pop %v2581
    %v2583 = vmul.f32 %v2579, 1.442695
    %v2584 = vpow.pop %v2583
    %v2585 = vmul.f32 %v2580, 1.442695
    %v2586 = vpow.pop %v2585
    %v2587 = vadd.f32 %v2582, 1.0
    %v2588 = vadd.f32 %v2584, 1.0
    %v2589 = vadd.f32 %v2586, 1.0
    %v2590 = vrcp.pop %v2587
    %v2591 = vmul.f32 1.0, %v2590
    %v2592 = vrcp.pop %v2588
    %v2593 = vmul.f32 1.0, %v2592
    %v2594 = vrcp.pop %v2589
    %v2595 = vmul.f32 1.0, %v2594
    %v2596 = vtanh.pop %v2576
    %v2597 = vmul.f32 %v2593, %v2263
    %v2598 = vmul.f32 %v2591, %v2596
    %v2599 = vadd.f32 %v2597, %v2598
    %v2600 = vtanh.pop %v2599
    %v2601 = vmul.f32 %v2595, %v2600
    %2602 = vmatprep.subr.mxu0 %v75
    %2603 = vmatpush1.msra.mxu0 %v74
    %2604 = vmatprep.subr.mxu0 %v79
    %2605 = vmatpush1.msra.mxu0 %v78
    %2606 = vmatprep.subr.mxu0 %v83
    %2607 = vmatpush1.msra.mxu0 %v82
    %2608 = vmatprep.subr.mxu0 %v87
    %2609 = vmatpush1.msra.mxu0 %v86
    %2610 = vmatprep.subr.mxu0 %v91
    %2611 = vmatpush1.msra.mxu0 %v90
    %2612 = vmatprep.subr.mxu0 %v95
    %2613 = vmatpush1.msra.mxu0 %v94
    %2614 = vmatprep.subr.mxu0 %v99
    %2615 = vmatpush1.msra.mxu0 %v98
    %2616 = vmatprep.subr.mxu0 %v103
    %2617 = vmatpush1.msra.mxu0 %v102
    %2618 = vmatprep.subr.mxu0 %v107
    %2619 = vmatpush1.msra.mxu0 %v106
    %2620 = vmatprep.subr.mxu0 %v111
    %2621 = vmatpush1.msra.mxu0 %v110
    %2622 = vmatprep.subr.mxu0 %v115
    %2623 = vmatpush1.msra.mxu0 %v114
    %2624 = vmatprep.subr.mxu0 %v119
    %2625 = vmatpush1.msra.mxu0 %v118
    %2626 = vmatprep.subr.mxu0 %v123
    %2627 = vmatpush1.msra.mxu0 %v122
    %2628 = vmatprep.subr.mxu0 %v127
    %2629 = vmatpush1.msra.mxu0 %v126
    %2630 = vmatprep.subr.mxu0 %v131
    %2631 = vmatpush1.msra.mxu0 %v130
    %2632 = vmatprep.subr.mxu0 %v135
    %2633 = vmatpush1.msra.mxu0 %v134
    %2634 = vmatprep.subr.mxu0 0.0
    %2635 = vmatpush1.msra.mxu0 0.0
    %2636 = vmatprep.subr.mxu0 0.0
    %2637 = vmatpush1.msra.mxu0 0.0
    %2638 = vmatprep.subr.mxu0 0.0
    %2639 = vmatpush1.msra.mxu0 0.0
    %2640 = vmatprep.subr.mxu0 0.0
    %2641 = vmatpush1.msra.mxu0 0.0
    %2642 = vmatprep.subr.mxu0 0.0
    %2643 = vmatpush1.msra.mxu0 0.0
    %2644 = vmatprep.subr.mxu0 0.0
    %2645 = vmatpush1.msra.mxu0 0.0
    %2646 = vmatprep.subr.mxu0 0.0
    %2647 = vmatpush1.msra.mxu0 0.0
    %2648 = vmatprep.subr.mxu0 0.0
    %2649 = vmatpush1.msra.mxu0 0.0
    %2650 = vmatprep.subr.mxu0 0.0
    %2651 = vmatpush1.msra.mxu0 0.0
    %2652 = vmatprep.subr.mxu0 0.0
    %2653 = vmatpush1.msra.mxu0 0.0
    %2654 = vmatprep.subr.mxu0 0.0
    %2655 = vmatpush1.msra.mxu0 0.0
    %2656 = vmatprep.subr.mxu0 0.0
    %2657 = vmatpush1.msra.mxu0 0.0
    %2658 = vmatprep.subr.mxu0 0.0
    %2659 = vmatpush1.msra.mxu0 0.0
    %2660 = vmatprep.subr.mxu0 0.0
    %2661 = vmatpush1.msra.mxu0 0.0
    %2662 = vmatprep.subr.mxu0 0.0
    %2663 = vmatpush1.msra.mxu0 0.0
    %2664 = vmatprep.subr.mxu0 0.0
    %2665 = vmatpush1.msra.mxu0 0.0
    %2666 = vmatprep.mubr.f32.mxu0 0.0
    %2667 = vmatmul.mubr.f32.gmra.mrb[0].mxu0 %v2435
    %v2668 = vpop.f32.mrb[0].mxu0
    %v2669 = vadd.f32 0.0, %v2668
    %v2670 = vpop.f32.mrb[0].mxu0
    %v2671 = vadd.f32 0.0, %v2670
    %2672 = vdwg.mxu0
    %2673 = vmatprep.subr.mxu0 %v77
    %2674 = vmatpush1.msra.mxu0 %v76
    %2675 = vmatprep.subr.mxu0 %v81
    %2676 = vmatpush1.msra.mxu0 %v80
    %2677 = vmatprep.subr.mxu0 %v85
    %2678 = vmatpush1.msra.mxu0 %v84
    %2679 = vmatprep.subr.mxu0 %v89
    %2680 = vmatpush1.msra.mxu0 %v88
    %2681 = vmatprep.subr.mxu0 %v93
    %2682 = vmatpush1.msra.mxu0 %v92
    %2683 = vmatprep.subr.mxu0 %v97
    %2684 = vmatpush1.msra.mxu0 %v96
    %2685 = vmatprep.subr.mxu0 %v101
    %2686 = vmatpush1.msra.mxu0 %v100
    %2687 = vmatprep.subr.mxu0 %v105
    %2688 = vmatpush1.msra.mxu0 %v104
    %2689 = vmatprep.subr.mxu0 %v109
    %2690 = vmatpush1.msra.mxu0 %v108
    %2691 = vmatprep.subr.mxu0 %v113
    %2692 = vmatpush1.msra.mxu0 %v112
    %2693 = vmatprep.subr.mxu0 %v117
    %2694 = vmatpush1.msra.mxu0 %v116
    %2695 = vmatprep.subr.mxu0 %v121
    %2696 = vmatpush1.msra.mxu0 %v120
    %2697 = vmatprep.subr.mxu0 %v125
    %2698 = vmatpush1.msra.mxu0 %v124
    %2699 = vmatprep.subr.mxu0 %v129
    %2700 = vmatpush1.msra.mxu0 %v128
    %2701 = vmatprep.subr.mxu0 %v133
    %2702 = vmatpush1.msra.mxu0 %v132
    %2703 = vmatprep.subr.mxu0 %v137
    %2704 = vmatpush1.msra.mxu0 %v136
    %2705 = vmatprep.subr.mxu0 0.0
    %2706 = vmatpush1.msra.mxu0 0.0
    %2707 = vmatprep.subr.mxu0 0.0
    %2708 = vmatpush1.msra.mxu0 0.0
    %2709 = vmatprep.subr.mxu0 0.0
    %2710 = vmatpush1.msra.mxu0 0.0
    %2711 = vmatprep.subr.mxu0 0.0
    %2712 = vmatpush1.msra.mxu0 0.0
    %2713 = vmatprep.subr.mxu0 0.0
    %2714 = vmatpush1.msra.mxu0 0.0
    %2715 = vmatprep.subr.mxu0 0.0
    %2716 = vmatpush1.msra.mxu0 0.0
    %2717 = vmatprep.subr.mxu0 0.0
    %2718 = vmatpush1.msra.mxu0 0.0
    %2719 = vmatprep.subr.mxu0 0.0
    %2720 = vmatpush1.msra.mxu0 0.0
    %2721 = vmatprep.subr.mxu0 0.0
    %2722 = vmatpush1.msra.mxu0 0.0
    %2723 = vmatprep.subr.mxu0 0.0
    %2724 = vmatpush1.msra.mxu0 0.0
    %2725 = vmatprep.subr.mxu0 0.0
    %2726 = vmatpush1.msra.mxu0 0.0
    %2727 = vmatprep.subr.mxu0 0.0
    %2728 = vmatpush1.msra.mxu0 0.0
    %2729 = vmatprep.subr.mxu0 0.0
    %2730 = vmatpush1.msra.mxu0 0.0
    %2731 = vmatprep.subr.mxu0 0.0
    %2732 = vmatpush1.msra.mxu0 0.0
    %2733 = vmatprep.subr.mxu0 0.0
    %2734 = vmatpush1.msra.mxu0 0.0
    %2735 = vmatprep.subr.mxu0 0.0
    %2736 = vmatpush1.msra.mxu0 0.0
    %2737 = vmatprep.mubr.f32.mxu0 0.0
    %2738 = vmatmul.mubr.f32.gmra.mrb[0].mxu0 %v2435
    %v2739 = vpop.f32.mrb[0].mxu0
    %v2740 = vadd.f32 0.0, %v2739
    %v2741 = vpop.f32.mrb[0].mxu0
    %v2742 = vadd.f32 0.0, %v2741
    %2743 = vdwg.mxu0
    %v2744 = vadd.f32 %v442, %v2669
    %v2745 = vadd.f32 %v444, %v2671
    %v2746 = vadd.f32 %v555, %v2740
    %v2747 = vadd.f32 %v557, %v2742
    %v2748 = vxor.u32 %v2744, 2147483648
    %v2749 = vxor.u32 %v2745, 2147483648
    %v2750 = vxor.u32 %v2746, 2147483648
    %v2751 = vmul.f32 %v2748, 1.442695
    %v2752 = vpow.pop %v2751
    %v2753 = vmul.f32 %v2749, 1.442695
    %v2754 = vpow.pop %v2753
    %v2755 = vmul.f32 %v2750, 1.442695
    %v2756 = vpow.pop %v2755
    %v2757 = vadd.f32 %v2752, 1.0
    %v2758 = vadd.f32 %v2754, 1.0
    %v2759 = vadd.f32 %v2756, 1.0
    %v2760 = vrcp.pop %v2757
    %v2761 = vmul.f32 1.0, %v2760
    %v2762 = vrcp.pop %v2758
    %v2763 = vmul.f32 1.0, %v2762
    %v2764 = vrcp.pop %v2759
    %v2765 = vmul.f32 1.0, %v2764
    %v2766 = vtanh.pop %v2747
    %v2767 = vmul.f32 %v2763, %v2433
    %v2768 = vmul.f32 %v2761, %v2766
    %v2769 = vadd.f32 %v2767, %v2768
    %v2770 = vtanh.pop %v2769
    %v2771 = vmul.f32 %v2765, %v2770
    %2772 = vmatprep.subr.mxu0 %v140
    %2773 = vmatpush1.msra.mxu0 %v139
    %2774 = vmatprep.subr.mxu0 %v144
    %2775 = vmatpush1.msra.mxu0 %v143
    %2776 = vmatprep.subr.mxu0 %v148
    %2777 = vmatpush1.msra.mxu0 %v147
    %2778 = vmatprep.subr.mxu0 %v152
    %2779 = vmatpush1.msra.mxu0 %v151
    %2780 = vmatprep.subr.mxu0 %v156
    %2781 = vmatpush1.msra.mxu0 %v155
    %2782 = vmatprep.subr.mxu0 %v160
    %2783 = vmatpush1.msra.mxu0 %v159
    %2784 = vmatprep.subr.mxu0 %v164
    %2785 = vmatpush1.msra.mxu0 %v163
    %2786 = vmatprep.subr.mxu0 %v168
    %2787 = vmatpush1.msra.mxu0 %v167
    %2788 = vmatprep.subr.mxu0 %v172
    %2789 = vmatpush1.msra.mxu0 %v171
    %2790 = vmatprep.subr.mxu0 %v176
    %2791 = vmatpush1.msra.mxu0 %v175
    %2792 = vmatprep.subr.mxu0 %v180
    %2793 = vmatpush1.msra.mxu0 %v179
    %2794 = vmatprep.subr.mxu0 %v184
    %2795 = vmatpush1.msra.mxu0 %v183
    %2796 = vmatprep.subr.mxu0 %v188
    %2797 = vmatpush1.msra.mxu0 %v187
    %2798 = vmatprep.subr.mxu0 %v192
    %2799 = vmatpush1.msra.mxu0 %v191
    %2800 = vmatprep.subr.mxu0 %v196
    %2801 = vmatpush1.msra.mxu0 %v195
    %2802 = vmatprep.subr.mxu0 %v200
    %2803 = vmatpush1.msra.mxu0 %v199
    %2804 = vmatprep.subr.mxu0 %v204
    %2805 = vmatpush1.msra.mxu0 %v203
    %2806 = vmatprep.subr.mxu0 %v208
    %2807 = vmatpush1.msra.mxu0 %v207
    %2808 = vmatprep.subr.mxu0 %v212
    %2809 = vmatpush1.msra.mxu0 %v211
    %2810 = vmatprep.subr.mxu0 %v216
    %2811 = vmatpush1.msra.mxu0 %v215
    %2812 = vmatprep.subr.mxu0 %v220
    %2813 = vmatpush1.msra.mxu0 %v219
    %2814 = vmatprep.subr.mxu0 %v224
    %2815 = vmatpush1.msra.mxu0 %v223
    %2816 = vmatprep.subr.mxu0 %v228
    %2817 = vmatpush1.msra.mxu0 %v227
    %2818 = vmatprep.subr.mxu0 %v232
    %2819 = vmatpush1.msra.mxu0 %v231
    %2820 = vmatprep.subr.mxu0 %v236
    %2821 = vmatpush1.msra.mxu0 %v235
    %2822 = vmatprep.subr.mxu0 %v240
    %2823 = vmatpush1.msra.mxu0 %v239
    %2824 = vmatprep.subr.mxu0 %v244
    %2825 = vmatpush1.msra.mxu0 %v243
    %2826 = vmatprep.subr.mxu0 %v248
    %2827 = vmatpush1.msra.mxu0 %v247
    %2828 = vmatprep.subr.mxu0 %v252
    %2829 = vmatpush1.msra.mxu0 %v251
    %2830 = vmatprep.subr.mxu0 %v256
    %2831 = vmatpush1.msra.mxu0 %v255
    %2832 = vmatprep.subr.mxu0 %v260
    %2833 = vmatpush1.msra.mxu0 %v259
    %2834 = vmatprep.subr.mxu0 %v264
    %2835 = vmatpush1.msra.mxu0 %v263
    %2836 = vmatprep.mubr.f32.mxu0 %v2601
    %2837 = vmatmul.mubr.f32.gmra.mrb[0].mxu0 %v2771
    %v2838 = vpop.f32.mrb[0].mxu0
    %v2839 = vadd.f32 %v739, %v2838
    %v2840 = vpop.f32.mrb[0].mxu0
    %v2841 = vadd.f32 %v743, %v2840
    %2842 = vdwg.mxu0
    %2843 = vmatprep.subr.mxu0 %v142
    %2844 = vmatpush1.msra.mxu0 %v141
    %2845 = vmatprep.subr.mxu0 %v146
    %2846 = vmatpush1.msra.mxu0 %v145
    %2847 = vmatprep.subr.mxu0 %v150
    %2848 = vmatpush1.msra.mxu0 %v149
    %2849 = vmatprep.subr.mxu0 %v154
    %2850 = vmatpush1.msra.mxu0 %v153
    %2851 = vmatprep.subr.mxu0 %v158
    %2852 = vmatpush1.msra.mxu0 %v157
    %2853 = vmatprep.subr.mxu0 %v162
    %2854 = vmatpush1.msra.mxu0 %v161
    %2855 = vmatprep.subr.mxu0 %v166
    %2856 = vmatpush1.msra.mxu0 %v165
    %2857 = vmatprep.subr.mxu0 %v170
    %2858 = vmatpush1.msra.mxu0 %v169
    %2859 = vmatprep.subr.mxu0 %v174
    %2860 = vmatpush1.msra.mxu0 %v173
    %2861 = vmatprep.subr.mxu0 %v178
    %2862 = vmatpush1.msra.mxu0 %v177
    %2863 = vmatprep.subr.mxu0 %v182
    %2864 = vmatpush1.msra.mxu0 %v181
    %2865 = vmatprep.subr.mxu0 %v186
    %2866 = vmatpush1.msra.mxu0 %v185
    %2867 = vmatprep.subr.mxu0 %v190
    %2868 = vmatpush1.msra.mxu0 %v189
    %2869 = vmatprep.subr.mxu0 %v194
    %2870 = vmatpush1.msra.mxu0 %v193
    %2871 = vmatprep.subr.mxu0 %v198
    %2872 = vmatpush1.msra.mxu0 %v197
    %2873 = vmatprep.subr.mxu0 %v202
    %2874 = vmatpush1.msra.mxu0 %v201
    %2875 = vmatprep.subr.mxu0 %v206
    %2876 = vmatpush1.msra.mxu0 %v205
    %2877 = vmatprep.subr.mxu0 %v210
    %2878 = vmatpush1.msra.mxu0 %v209
    %2879 = vmatprep.subr.mxu0 %v214
    %2880 = vmatpush1.msra.mxu0 %v213
    %2881 = vmatprep.subr.mxu0 %v218
    %2882 = vmatpush1.msra.mxu0 %v217
    %2883 = vmatprep.subr.mxu0 %v222
    %2884 = vmatpush1.msra.mxu0 %v221
    %2885 = vmatprep.subr.mxu0 %v226
    %2886 = vmatpush1.msra.mxu0 %v225
    %2887 = vmatprep.subr.mxu0 %v230
    %2888 = vmatpush1.msra.mxu0 %v229
    %2889 = vmatprep.subr.mxu0 %v234
    %2890 = vmatpush1.msra.mxu0 %v233
    %2891 = vmatprep.subr.mxu0 %v238
    %2892 = vmatpush1.msra.mxu0 %v237
    %2893 = vmatprep.subr.mxu0 %v242
    %2894 = vmatpush1.msra.mxu0 %v241
    %2895 = vmatprep.subr.mxu0 %v246
    %2896 = vmatpush1.msra.mxu0 %v245
    %2897 = vmatprep.subr.mxu0 %v250
    %2898 = vmatpush1.msra.mxu0 %v249
    %2899 = vmatprep.subr.mxu0 %v254
    %2900 = vmatpush1.msra.mxu0 %v253
    %2901 = vmatprep.subr.mxu0 %v258
    %2902 = vmatpush1.msra.mxu0 %v257
    %2903 = vmatprep.subr.mxu0 %v262
    %2904 = vmatpush1.msra.mxu0 %v261
    %2905 = vmatprep.subr.mxu0 %v266
    %2906 = vmatpush1.msra.mxu0 %v265
    %2907 = vmatprep.mubr.f32.mxu0 %v2601
    %2908 = vmatmul.mubr.f32.gmra.mrb[0].mxu0 %v2771
    %v2909 = vpop.f32.mrb[0].mxu0
    %v2910 = vadd.f32 %v747, %v2909
    %v2911 = vpop.f32.mrb[0].mxu0
    %v2912 = vadd.f32 %v751, %v2911
    %2913 = vdwg.mxu0
    %v2914 = vxor.u32 %v2839, 2147483648
    %v2915 = vxor.u32 %v2841, 2147483648
    %v2916 = vxor.u32 %v2910, 2147483648
    %v2917 = vmul.f32 %v2914, 1.442695
    %v2918 = vpow.pop %v2917
    %v2919 = vmul.f32 %v2915, 1.442695
    %v2920 = vpow.pop %v2919
    %v2921 = vmul.f32 %v2916, 1.442695
    %v2922 = vpow.pop %v2921
    %v2923 = vadd.f32 %v2918, 1.0
    %v2924 = vadd.f32 %v2920, 1.0
    %v2925 = vadd.f32 %v2922, 1.0
    %v2926 = vrcp.pop %v2923
    %v2927 = vmul.f32 1.0, %v2926
    %v2928 = vrcp.pop %v2924
    %v2929 = vmul.f32 1.0, %v2928
    %v2930 = vrcp.pop %v2925
    %v2931 = vmul.f32 1.0, %v2930
    %v2932 = vtanh.pop %v2912
    %v2933 = vmul.f32 %v2929, %v2599
    %v2934 = vmul.f32 %v2927, %v2932
    %v2935 = vadd.f32 %v2933, %v2934
    %v2936 = vtanh.pop %v2935
    %v2937 = vmul.f32 %v2931, %v2936
    %2938 = vmatprep.subr.mxu0 %v75
    %2939 = vmatpush1.msra.mxu0 %v74
    %2940 = vmatprep.subr.mxu0 %v79
    %2941 = vmatpush1.msra.mxu0 %v78
    %2942 = vmatprep.subr.mxu0 %v83
    %2943 = vmatpush1.msra.mxu0 %v82
    %2944 = vmatprep.subr.mxu0 %v87
    %2945 = vmatpush1.msra.mxu0 %v86
    %2946 = vmatprep.subr.mxu0 %v91
    %2947 = vmatpush1.msra.mxu0 %v90
    %2948 = vmatprep.subr.mxu0 %v95
    %2949 = vmatpush1.msra.mxu0 %v94
    %2950 = vmatprep.subr.mxu0 %v99
    %2951 = vmatpush1.msra.mxu0 %v98
    %2952 = vmatprep.subr.mxu0 %v103
    %2953 = vmatpush1.msra.mxu0 %v102
    %2954 = vmatprep.subr.mxu0 %v107
    %2955 = vmatpush1.msra.mxu0 %v106
    %2956 = vmatprep.subr.mxu0 %v111
    %2957 = vmatpush1.msra.mxu0 %v110
    %2958 = vmatprep.subr.mxu0 %v115
    %2959 = vmatpush1.msra.mxu0 %v114
    %2960 = vmatprep.subr.mxu0 %v119
    %2961 = vmatpush1.msra.mxu0 %v118
    %2962 = vmatprep.subr.mxu0 %v123
    %2963 = vmatpush1.msra.mxu0 %v122
    %2964 = vmatprep.subr.mxu0 %v127
    %2965 = vmatpush1.msra.mxu0 %v126
    %2966 = vmatprep.subr.mxu0 %v131
    %2967 = vmatpush1.msra.mxu0 %v130
    %2968 = vmatprep.subr.mxu0 %v135
    %2969 = vmatpush1.msra.mxu0 %v134
    %2970 = vmatprep.subr.mxu0 0.0
    %2971 = vmatpush1.msra.mxu0 0.0
    %2972 = vmatprep.subr.mxu0 0.0
    %2973 = vmatpush1.msra.mxu0 0.0
    %2974 = vmatprep.subr.mxu0 0.0
    %2975 = vmatpush1.msra.mxu0 0.0
    %2976 = vmatprep.subr.mxu0 0.0
    %2977 = vmatpush1.msra.mxu0 0.0
    %2978 = vmatprep.subr.mxu0 0.0
    %2979 = vmatpush1.msra.mxu0 0.0
    %2980 = vmatprep.subr.mxu0 0.0
    %2981 = vmatpush1.msra.mxu0 0.0
    %2982 = vmatprep.subr.mxu0 0.0
    %2983 = vmatpush1.msra.mxu0 0.0
    %2984 = vmatprep.subr.mxu0 0.0
    %2985 = vmatpush1.msra.mxu0 0.0
    %2986 = vmatprep.subr.mxu0 0.0
    %2987 = vmatpush1.msra.mxu0 0.0
    %2988 = vmatprep.subr.mxu0 0.0
    %2989 = vmatpush1.msra.mxu0 0.0
    %2990 = vmatprep.subr.mxu0 0.0
    %2991 = vmatpush1.msra.mxu0 0.0
    %2992 = vmatprep.subr.mxu0 0.0
    %2993 = vmatpush1.msra.mxu0 0.0
    %2994 = vmatprep.subr.mxu0 0.0
    %2995 = vmatpush1.msra.mxu0 0.0
    %2996 = vmatprep.subr.mxu0 0.0
    %2997 = vmatpush1.msra.mxu0 0.0
    %2998 = vmatprep.subr.mxu0 0.0
    %2999 = vmatpush1.msra.mxu0 0.0
    %3000 = vmatprep.subr.mxu0 0.0
    %3001 = vmatpush1.msra.mxu0 0.0
    %3002 = vmatprep.mubr.f32.mxu0 0.0
    %3003 = vmatmul.mubr.f32.gmra.mrb[0].mxu0 %v2771
    %v3004 = vpop.f32.mrb[0].mxu0
    %v3005 = vadd.f32 0.0, %v3004
    %v3006 = vpop.f32.mrb[0].mxu0
    %v3007 = vadd.f32 0.0, %v3006
    %3008 = vdwg.mxu0
    %3009 = vmatprep.subr.mxu0 %v77
    %3010 = vmatpush1.msra.mxu0 %v76
    %3011 = vmatprep.subr.mxu0 %v81
    %3012 = vmatpush1.msra.mxu0 %v80
    %3013 = vmatprep.subr.mxu0 %v85
    %3014 = vmatpush1.msra.mxu0 %v84
    %3015 = vmatprep.subr.mxu0 %v89
    %3016 = vmatpush1.msra.mxu0 %v88
    %3017 = vmatprep.subr.mxu0 %v93
    %3018 = vmatpush1.msra.mxu0 %v92
    %3019 = vmatprep.subr.mxu0 %v97
    %3020 = vmatpush1.msra.mxu0 %v96
    %3021 = vmatprep.subr.mxu0 %v101
    %3022 = vmatpush1.msra.mxu0 %v100
    %3023 = vmatprep.subr.mxu0 %v105
    %3024 = vmatpush1.msra.mxu0 %v104
    %3025 = vmatprep.subr.mxu0 %v109
    %3026 = vmatpush1.msra.mxu0 %v108
    %3027 = vmatprep.subr.mxu0 %v113
    %3028 = vmatpush1.msra.mxu0 %v112
    %3029 = vmatprep.subr.mxu0 %v117
    %3030 = vmatpush1.msra.mxu0 %v116
    %3031 = vmatprep.subr.mxu0 %v121
    %3032 = vmatpush1.msra.mxu0 %v120
    %3033 = vmatprep.subr.mxu0 %v125
    %3034 = vmatpush1.msra.mxu0 %v124
    %3035 = vmatprep.subr.mxu0 %v129
    %3036 = vmatpush1.msra.mxu0 %v128
    %3037 = vmatprep.subr.mxu0 %v133
    %3038 = vmatpush1.msra.mxu0 %v132
    %3039 = vmatprep.subr.mxu0 %v137
    %3040 = vmatpush1.msra.mxu0 %v136
    %3041 = vmatprep.subr.mxu0 0.0
    %3042 = vmatpush1.msra.mxu0 0.0
    %3043 = vmatprep.subr.mxu0 0.0
    %3044 = vmatpush1.msra.mxu0 0.0
    %3045 = vmatprep.subr.mxu0 0.0
    %3046 = vmatpush1.msra.mxu0 0.0
    %3047 = vmatprep.subr.mxu0 0.0
    %3048 = vmatpush1.msra.mxu0 0.0
    %3049 = vmatprep.subr.mxu0 0.0
    %3050 = vmatpush1.msra.mxu0 0.0
    %3051 = vmatprep.subr.mxu0 0.0
    %3052 = vmatpush1.msra.mxu0 0.0
    %3053 = vmatprep.subr.mxu0 0.0
    %3054 = vmatpush1.msra.mxu0 0.0
    %3055 = vmatprep.subr.mxu0 0.0
    %3056 = vmatpush1.msra.mxu0 0.0
    %3057 = vmatprep.subr.mxu0 0.0
    %3058 = vmatpush1.msra.mxu0 0.0
    %3059 = vmatprep.subr.mxu0 0.0
    %3060 = vmatpush1.msra.mxu0 0.0
    %3061 = vmatprep.subr.mxu0 0.0
    %3062 = vmatpush1.msra.mxu0 0.0
    %3063 = vmatprep.subr.mxu0 0.0
    %3064 = vmatpush1.msra.mxu0 0.0
    %3065 = vmatprep.subr.mxu0 0.0
    %3066 = vmatpush1.msra.mxu0 0.0
    %3067 = vmatprep.subr.mxu0 0.0
    %3068 = vmatpush1.msra.mxu0 0.0
    %3069 = vmatprep.subr.mxu0 0.0
    %3070 = vmatpush1.msra.mxu0 0.0
    %3071 = vmatprep.subr.mxu0 0.0
    %3072 = vmatpush1.msra.mxu0 0.0
    %3073 = vmatprep.mubr.f32.mxu0 0.0
    %3074 = vmatmul.mubr.f32.gmra.mrb[0].mxu0 %v2771
    %v3075 = vpop.f32.mrb[0].mxu0
    %v3076 = vadd.f32 0.0, %v3075
    %v3077 = vpop.f32.mrb[0].mxu0
    %v3078 = vadd.f32 0.0, %v3077
    %3079 = vdwg.mxu0
    %v3080 = vadd.f32 %v448, %v3005
    %v3081 = vadd.f32 %v450, %v3007
    %v3082 = vadd.f32 %v561, %v3076
    %v3083 = vadd.f32 %v563, %v3078
    %v3084 = vxor.u32 %v3080, 2147483648
    %v3085 = vxor.u32 %v3081, 2147483648
    %v3086 = vxor.u32 %v3082, 2147483648
    %v3087 = vmul.f32 %v3084, 1.442695
    %v3088 = vpow.pop %v3087
    %v3089 = vmul.f32 %v3085, 1.442695
    %v3090 = vpow.pop %v3089
    %v3091 = vmul.f32 %v3086, 1.442695
    %v3092 = vpow.pop %v3091
    %v3093 = vadd.f32 %v3088, 1.0
    %v3094 = vadd.f32 %v3090, 1.0
    %v3095 = vadd.f32 %v3092, 1.0
    %v3096 = vrcp.pop %v3093
    %v3097 = vmul.f32 1.0, %v3096
    %v3098 = vrcp.pop %v3094
    %v3099 = vmul.f32 1.0, %v3098
    %v3100 = vrcp.pop %v3095
    %v3101 = vmul.f32 1.0, %v3100
    %v3102 = vtanh.pop %v3083
    %v3103 = vmul.f32 %v3099, %v2769
    %v3104 = vmul.f32 %v3097, %v3102
    %v3105 = vadd.f32 %v3103, %v3104
    %v3106 = vtanh.pop %v3105
    %v3107 = vmul.f32 %v3101, %v3106
    %3108 = vmatprep.subr.mxu0 %v140
    %3109 = vmatpush1.msra.mxu0 %v139
    %3110 = vmatprep.subr.mxu0 %v144
    %3111 = vmatpush1.msra.mxu0 %v143
    %3112 = vmatprep.subr.mxu0 %v148
    %3113 = vmatpush1.msra.mxu0 %v147
    %3114 = vmatprep.subr.mxu0 %v152
    %3115 = vmatpush1.msra.mxu0 %v151
    %3116 = vmatprep.subr.mxu0 %v156
    %3117 = vmatpush1.msra.mxu0 %v155
    %3118 = vmatprep.subr.mxu0 %v160
    %3119 = vmatpush1.msra.mxu0 %v159
    %3120 = vmatprep.subr.mxu0 %v164
    %3121 = vmatpush1.msra.mxu0 %v163
    %3122 = vmatprep.subr.mxu0 %v168
    %3123 = vmatpush1.msra.mxu0 %v167
    %3124 = vmatprep.subr.mxu0 %v172
    %3125 = vmatpush1.msra.mxu0 %v171
    %3126 = vmatprep.subr.mxu0 %v176
    %3127 = vmatpush1.msra.mxu0 %v175
    %3128 = vmatprep.subr.mxu0 %v180
    %3129 = vmatpush1.msra.mxu0 %v179
    %3130 = vmatprep.subr.mxu0 %v184
    %3131 = vmatpush1.msra.mxu0 %v183
    %3132 = vmatprep.subr.mxu0 %v188
    %3133 = vmatpush1.msra.mxu0 %v187
    %3134 = vmatprep.subr.mxu0 %v192
    %3135 = vmatpush1.msra.mxu0 %v191
    %3136 = vmatprep.subr.mxu0 %v196
    %3137 = vmatpush1.msra.mxu0 %v195
    %3138 = vmatprep.subr.mxu0 %v200
    %3139 = vmatpush1.msra.mxu0 %v199
    %3140 = vmatprep.subr.mxu0 %v204
    %3141 = vmatpush1.msra.mxu0 %v203
    %3142 = vmatprep.subr.mxu0 %v208
    %3143 = vmatpush1.msra.mxu0 %v207
    %3144 = vmatprep.subr.mxu0 %v212
    %3145 = vmatpush1.msra.mxu0 %v211
    %3146 = vmatprep.subr.mxu0 %v216
    %3147 = vmatpush1.msra.mxu0 %v215
    %3148 = vmatprep.subr.mxu0 %v220
    %3149 = vmatpush1.msra.mxu0 %v219
    %3150 = vmatprep.subr.mxu0 %v224
    %3151 = vmatpush1.msra.mxu0 %v223
    %3152 = vmatprep.subr.mxu0 %v228
    %3153 = vmatpush1.msra.mxu0 %v227
    %3154 = vmatprep.subr.mxu0 %v232
    %3155 = vmatpush1.msra.mxu0 %v231
    %3156 = vmatprep.subr.mxu0 %v236
    %3157 = vmatpush1.msra.mxu0 %v235
    %3158 = vmatprep.subr.mxu0 %v240
    %3159 = vmatpush1.msra.mxu0 %v239
    %3160 = vmatprep.subr.mxu0 %v244
    %3161 = vmatpush1.msra.mxu0 %v243
    %3162 = vmatprep.subr.mxu0 %v248
    %3163 = vmatpush1.msra.mxu0 %v247
    %3164 = vmatprep.subr.mxu0 %v252
    %3165 = vmatpush1.msra.mxu0 %v251
    %3166 = vmatprep.subr.mxu0 %v256
    %3167 = vmatpush1.msra.mxu0 %v255
    %3168 = vmatprep.subr.mxu0 %v260
    %3169 = vmatpush1.msra.mxu0 %v259
    %3170 = vmatprep.subr.mxu0 %v264
    %3171 = vmatpush1.msra.mxu0 %v263
    %3172 = vmatprep.mubr.f32.mxu0 %v2937
    %3173 = vmatmul.mubr.f32.gmra.mrb[0].mxu0 %v3107
    %v3174 = vpop.f32.mrb[0].mxu0
    %v3175 = vadd.f32 %v739, %v3174
    %v3176 = vpop.f32.mrb[0].mxu0
    %v3177 = vadd.f32 %v743, %v3176
    %3178 = vdwg.mxu0
    %3179 = vmatprep.subr.mxu0 %v142
    %3180 = vmatpush1.msra.mxu0 %v141
    %3181 = vmatprep.subr.mxu0 %v146
    %3182 = vmatpush1.msra.mxu0 %v145
    %3183 = vmatprep.subr.mxu0 %v150
    %3184 = vmatpush1.msra.mxu0 %v149
    %3185 = vmatprep.subr.mxu0 %v154
    %3186 = vmatpush1.msra.mxu0 %v153
    %3187 = vmatprep.subr.mxu0 %v158
    %3188 = vmatpush1.msra.mxu0 %v157
    %3189 = vmatprep.subr.mxu0 %v162
    %3190 = vmatpush1.msra.mxu0 %v161
    %3191 = vmatprep.subr.mxu0 %v166
    %3192 = vmatpush1.msra.mxu0 %v165
    %3193 = vmatprep.subr.mxu0 %v170
    %3194 = vmatpush1.msra.mxu0 %v169
    %3195 = vmatprep.subr.mxu0 %v174
    %3196 = vmatpush1.msra.mxu0 %v173
    %3197 = vmatprep.subr.mxu0 %v178
    %3198 = vmatpush1.msra.mxu0 %v177
    %3199 = vmatprep.subr.mxu0 %v182
    %3200 = vmatpush1.msra.mxu0 %v181
    %3201 = vmatprep.subr.mxu0 %v186
    %3202 = vmatpush1.msra.mxu0 %v185
    %3203 = vmatprep.subr.mxu0 %v190
    %3204 = vmatpush1.msra.mxu0 %v189
    %3205 = vmatprep.subr.mxu0 %v194
    %3206 = vmatpush1.msra.mxu0 %v193
    %3207 = vmatprep.subr.mxu0 %v198
    %3208 = vmatpush1.msra.mxu0 %v197
    %3209 = vmatprep.subr.mxu0 %v202
    %3210 = vmatpush1.msra.mxu0 %v201
    %3211 = vmatprep.subr.mxu0 %v206
    %3212 = vmatpush1.msra.mxu0 %v205
    %3213 = vmatprep.subr.mxu0 %v210
    %3214 = vmatpush1.msra.mxu0 %v209
    %3215 = vmatprep.subr.mxu0 %v214
    %3216 = vmatpush1.msra.mxu0 %v213
    %3217 = vmatprep.subr.mxu0 %v218
    %3218 = vmatpush1.msra.mxu0 %v217
    %3219 = vmatprep.subr.mxu0 %v222
    %3220 = vmatpush1.msra.mxu0 %v221
    %3221 = vmatprep.subr.mxu0 %v226
    %3222 = vmatpush1.msra.mxu0 %v225
    %3223 = vmatprep.subr.mxu0 %v230
    %3224 = vmatpush1.msra.mxu0 %v229
    %3225 = vmatprep.subr.mxu0 %v234
    %3226 = vmatpush1.msra.mxu0 %v233
    %3227 = vmatprep.subr.mxu0 %v238
    %3228 = vmatpush1.msra.mxu0 %v237
    %3229 = vmatprep.subr.mxu0 %v242
    %3230 = vmatpush1.msra.mxu0 %v241
    %3231 = vmatprep.subr.mxu0 %v246
    %3232 = vmatpush1.msra.mxu0 %v245
    %3233 = vmatprep.subr.mxu0 %v250
    %3234 = vmatpush1.msra.mxu0 %v249
    %3235 = vmatprep.subr.mxu0 %v254
    %3236 = vmatpush1.msra.mxu0 %v253
    %3237 = vmatprep.subr.mxu0 %v258
    %3238 = vmatpush1.msra.mxu0 %v257
    %3239 = vmatprep.subr.mxu0 %v262
    %3240 = vmatpush1.msra.mxu0 %v261
    %3241 = vmatprep.subr.mxu0 %v266
    %3242 = vmatpush1.msra.mxu0 %v265
    %3243 = vmatprep.mubr.f32.mxu0 %v2937
    %3244 = vmatmul.mubr.f32.gmra.mrb[0].mxu0 %v3107
    %v3245 = vpop.f32.mrb[0].mxu0
    %v3246 = vadd.f32 %v747, %v3245
    %v3247 = vpop.f32.mrb[0].mxu0
    %v3248 = vadd.f32 %v751, %v3247
    %3249 = vdwg.mxu0
    %v3250 = vxor.u32 %v3175, 2147483648
    %v3251 = vxor.u32 %v3177, 2147483648
    %v3252 = vxor.u32 %v3246, 2147483648
    %v3253 = vmul.f32 %v3250, 1.442695
    %v3254 = vpow.pop %v3253
    %v3255 = vmul.f32 %v3251, 1.442695
    %v3256 = vpow.pop %v3255
    %v3257 = vmul.f32 %v3252, 1.442695
    %v3258 = vpow.pop %v3257
    %v3259 = vadd.f32 %v3254, 1.0
    %v3260 = vadd.f32 %v3256, 1.0
    %v3261 = vadd.f32 %v3258, 1.0
    %v3262 = vrcp.pop %v3259
    %v3263 = vmul.f32 1.0, %v3262
    %v3264 = vrcp.pop %v3260
    %v3265 = vmul.f32 1.0, %v3264
    %v3266 = vrcp.pop %v3261
    %v3267 = vmul.f32 1.0, %v3266
    %v3268 = vtanh.pop %v3248
    %v3269 = vmul.f32 %v3265, %v2935
    %v3270 = vmul.f32 %v3263, %v3268
    %v3271 = vadd.f32 %v3269, %v3270
    %v3272 = vtanh.pop %v3271
    %v3273 = vmul.f32 %v3267, %v3272
    %v3275 = vlaneseq
    %v3276 = vshrl.u32 %v3275, 7
    %v3277 = vsub.s32 0, %v3276
    %v3278 = vrot.slane %v284, %v3277
    %3280 = vmatprep.subr.mxu0 0.0
    %3281 = vmatpush1.msra.mxu0 %v268
    %3282 = vmatprep.subr.mxu0 0.0
    %3283 = vmatpush1.msra.mxu0 %v269
    %3284 = vmatprep.subr.mxu0 0.0
    %3285 = vmatpush1.msra.mxu0 %v270
    %3286 = vmatprep.subr.mxu0 0.0
    %3287 = vmatpush1.msra.mxu0 %v271
    %3288 = vmatprep.subr.mxu0 0.0
    %3289 = vmatpush1.msra.mxu0 %v272
    %3290 = vmatprep.subr.mxu0 0.0
    %3291 = vmatpush1.msra.mxu0 %v273
    %3292 = vmatprep.subr.mxu0 0.0
    %3293 = vmatpush1.msra.mxu0 %v274
    %3294 = vmatprep.subr.mxu0 0.0
    %3295 = vmatpush1.msra.mxu0 %v275
    %3296 = vmatprep.subr.mxu0 0.0
    %3297 = vmatpush1.msra.mxu0 %v276
    %3298 = vmatprep.subr.mxu0 0.0
    %3299 = vmatpush1.msra.mxu0 %v277
    %3300 = vmatprep.subr.mxu0 0.0
    %3301 = vmatpush1.msra.mxu0 %v278
    %3302 = vmatprep.subr.mxu0 0.0
    %3303 = vmatpush1.msra.mxu0 %v279
    %3304 = vmatprep.subr.mxu0 0.0
    %3305 = vmatpush1.msra.mxu0 %v280
    %3306 = vmatprep.subr.mxu0 0.0
    %3307 = vmatpush1.msra.mxu0 %v281
    %3308 = vmatprep.subr.mxu0 0.0
    %3309 = vmatpush1.msra.mxu0 %v282
    %3310 = vmatprep.subr.mxu0 0.0
    %3311 = vmatpush1.msra.mxu0 %v283
    %3312 = vmatprep.subr.mxu0 0.0
    %3313 = vmatpush1.msra.mxu0 0.0
    %3314 = vmatprep.subr.mxu0 0.0
    %3315 = vmatpush1.msra.mxu0 0.0
    %3316 = vmatprep.subr.mxu0 0.0
    %3317 = vmatpush1.msra.mxu0 0.0
    %3318 = vmatprep.subr.mxu0 0.0
    %3319 = vmatpush1.msra.mxu0 0.0
    %3320 = vmatprep.subr.mxu0 0.0
    %3321 = vmatpush1.msra.mxu0 0.0
    %3322 = vmatprep.subr.mxu0 0.0
    %3323 = vmatpush1.msra.mxu0 0.0
    %3324 = vmatprep.subr.mxu0 0.0
    %3325 = vmatpush1.msra.mxu0 0.0
    %3326 = vmatprep.subr.mxu0 0.0
    %3327 = vmatpush1.msra.mxu0 0.0
    %3328 = vmatprep.subr.mxu0 0.0
    %3329 = vmatpush1.msra.mxu0 0.0
    %3330 = vmatprep.subr.mxu0 0.0
    %3331 = vmatpush1.msra.mxu0 0.0
    %3332 = vmatprep.subr.mxu0 0.0
    %3333 = vmatpush1.msra.mxu0 0.0
    %3334 = vmatprep.subr.mxu0 0.0
    %3335 = vmatpush1.msra.mxu0 0.0
    %3336 = vmatprep.subr.mxu0 0.0
    %3337 = vmatpush1.msra.mxu0 0.0
    %3338 = vmatprep.subr.mxu0 0.0
    %3339 = vmatpush1.msra.mxu0 0.0
    %3340 = vmatprep.subr.mxu0 0.0
    %3341 = vmatpush1.msra.mxu0 0.0
    %3342 = vmatprep.subr.mxu0 0.0
    %3343 = vmatpush1.msra.mxu0 0.0
    %3344 = vmatprep.mubr.f32.mxu0 0.0
    %3345 = vmatmul.mubr.f32.gmra.mrb[0].mxu0 %v3273
    %v3346 = vpop.f32.mrb[0].mxu0
    %v3347 = vadd.f32 %v3278, %v3346
    %v3348 = vpop.f32.mrb[0].mxu0
    %3349 = vdwg.mxu0
    %3350 = vst [vmem:[%s8] sm:$0xff] %v3347
    // Predicated region
    $region46: #{basic_lstm_forward.1} parent=1 // pred_check
      _
    $region47: #{basic_lstm_forward.1} parent=1 // pred_check_branch
      %3352 = sbr.rel (0) target = $region49
    $region48: #{basic_lstm_forward.1} parent=1 // pred_region
      _
    $region49: #{basic_lstm_forward.1} parent=1 // pred_fallthru
      _
    // Predicated region
    $region50: #{basic_lstm_forward.1} parent=1 // pred_check
      _
    $region51: #{basic_lstm_forward.1} parent=1 // pred_check_branch
      %3354 = sbr.rel (0) target = $region53
    $region52: #{basic_lstm_forward.1} parent=1 // pred_region
      _
    $region53: #{basic_lstm_forward.1} parent=1 // pred_fallthru
      _
    %3355 = vsyncpa [#allocation3], 1
    %3356 = vsyncpa [#allocation5], 1

</llo_original>
